<compile_context>
chip_gen: v7x
topology: tpu7x:2x2x1
jax: 0.10.0
libtpu: 0.0.40
codegen_flags: <defaults>
</compile_context>

<pallas_src>
import jax
import jax.numpy as jnp
from jax import lax
from jax.experimental import pallas as pl
from jax.experimental.pallas import tpu as pltpu


def _round_up(x, m):
    return ((x + m - 1) // m) * m


def lstm_kernel(x_ref, wih_ref, b_ref, whh_ref, wlin_ref, blin_ref,
                v_ref, hlast_ref, gx_ref, zs_ref):
    """Whole-sequence LSTM forward in a single invocation (everything VMEM-resident).

    x_ref    : (T*B, I)      time-major input, batch padded to a sublane multiple, flattened
    wih_ref  : (I, 4H)       LSTM input weights with the input scaling folded in
    b_ref    : (1, 4H)       b_ih + b_hh + (scaler_bias*scaler) @ W_ih
    whh_ref  : (H, 4H)       LSTM recurrent weights (transposed weight_hh_l0)
    wlin_ref : (H, O_pad)    linear head weight, zero-padded to 128 lanes
    blin_ref : (1, O_pad)    linear head bias, zero-padded
    v_ref    : (T*B, O_pad)  per-step head output (output)
    hlast_ref: (B, H)        last hidden state (output)
    gx_ref   : (T*B, 4H)     scratch: per-step input-gate preactivations
    zs_ref   : (T*B, H)      scratch: all hidden states (never written back to HBM)
    """
    TB = x_ref.shape[0]
    B, H = hlast_ref.shape
    T = TB // B

    # Input projection for ALL timesteps at once — off the serial critical path.
    gx_ref[...] = (jnp.dot(x_ref[...], wih_ref[...],
                           preferred_element_type=jnp.float32) + b_ref[...])

    whh = whh_ref[...]  # hoisted; constant across the recurrence

    def step(t, carry):
        h, c = carry
        row = pl.multiple_of(t * B, B)                       # sublane-aligned window
        gates = gx_ref[pl.ds(row, B), :] + jnp.dot(
            h, whh, preferred_element_type=jnp.float32)      # (B, 4H), PyTorch order i,f,g,o
        i_g = jax.nn.sigmoid(gates[:, 0 * H:1 * H])
        f_g = jax.nn.sigmoid(gates[:, 1 * H:2 * H])
        g_g = jnp.tanh(gates[:, 2 * H:3 * H])
        o_g = jax.nn.sigmoid(gates[:, 3 * H:4 * H])
        c_new = f_g * c + i_g * g_g
        h_new = o_g * jnp.tanh(c_new)
        zs_ref[pl.ds(row, B), :] = h_new
        return (h_new, c_new)

    h0 = jnp.zeros((B, H), jnp.float32)
    c0 = jnp.zeros((B, H), jnp.float32)
    h_last, _ = lax.fori_loop(0, T, step, (h0, c0), unroll=True)
    hlast_ref[...] = h_last

    # Per-step linear head as one lane-dense matmul after the recurrence.
    v_ref[...] = (jnp.dot(zs_ref[...], wlin_ref[...],
                          preferred_element_type=jnp.float32) + blin_ref[...])


def sequence_model_forward(x, params):
    """x: (B, T, I) batch-first (PyTorch convention). Returns (v, z) like the nn.Module."""
    B, T, I = x.shape
    H = params["w_hh_t"].shape[0]
    O = params["w_lin_t"].shape[1]

    B_pad = _round_up(B, 8)      # fill sublanes
    O_pad = _round_up(O, 128)    # lane-dense head output -> unmasked stores

    # Fold (x + sb) * sc into the input projection.
    sc = params["scaler"]        # (1, I)
    sb = params["scaler_bias"]   # (1, I)
    wih_s = sc.T * params["w_ih_t"]                             # (I, 4H)
    b_eff = params["b_lstm"] + (sb * sc) @ params["w_ih_t"]     # (1, 4H)

    wlin_p = jnp.zeros((H, O_pad), jnp.float32).at[:, :O].set(params["w_lin_t"])
    blin_p = jnp.zeros((1, O_pad), jnp.float32).at[:, :O].set(params["b_lin"])

    x_tm = jnp.transpose(x, (1, 0, 2))                          # (T, B, I) time-major
    x_tm = jnp.pad(x_tm, ((0, 0), (0, B_pad - B), (0, 0)))      # pad batch to sublanes
    x_flat = x_tm.reshape(T * B_pad, I)

    vmem = pltpu.MemorySpace.VMEM
    v_flat, h_last = pl.pallas_call(
        lstm_kernel,
        out_shape=(jax.ShapeDtypeStruct((T * B_pad, O_pad), jnp.float32),
                   jax.ShapeDtypeStruct((B_pad, H), jnp.float32)),
        in_specs=[pl.BlockSpec(memory_space=vmem)] * 6,
        out_specs=(pl.BlockSpec(memory_space=vmem),
                   pl.BlockSpec(memory_space=vmem)),
        scratch_shapes=[pltpu.VMEM((T * B_pad, 4 * H), jnp.float32),   # gx
                        pltpu.VMEM((T * B_pad, H), jnp.float32)],      # zs
        compiler_params=pltpu.CompilerParams(vmem_limit_bytes=32 * 1024 * 1024),
    )(x_flat, wih_s, b_eff, params["w_hh_t"], wlin_p, blin_p)

    v = v_flat.reshape(T, B_pad, O_pad)[:, :B, :O]              # (T, B, O)
    v = jnp.transpose(v, (1, 0, 2))                             # (B, T, O)
    z = h_last[:B]                                              # (B, H) last hidden state
    return v, z


def reference_forward(x, params):
    """Pure-JAX reference (same math as the PyTorch module) for correctness checking."""
    B, T, I = x.shape
    H = params["w_hh_t"].shape[0]
    x = (x + params["scaler_bias"]) * params["scaler"]

    def step(carry, x_t):
        h, c = carry
        gates = x_t @ params["w_ih_t"] + h @ params["w_hh_t"] + params["b_lstm"]
        i_g = jax.nn.sigmoid(gates[:, 0 * H:1 * H])
        f_g = jax.nn.sigmoid(gates[:, 1 * H:2 * H])
        g_g = jnp.tanh(gates[:, 2 * H:3 * H])
        o_g = jax.nn.sigmoid(gates[:, 3 * H:4 * H])
        c = f_g * c + i_g * g_g
        h = o_g * jnp.tanh(c)
        return (h, c), h

    h0 = jnp.zeros((B, H), jnp.float32)
    c0 = jnp.zeros((B, H), jnp.float32)
    (_, _), hs = lax.scan(step, (h0, c0), jnp.transpose(x, (1, 0, 2)))
    zs = jnp.transpose(hs, (1, 0, 2))
    v = zs @ params["w_lin_t"] + params["b_lin"]
    return v, zs[:, -1]


def init_params(key, input_size=4, hidden_size=256, output_dim=4):
    """Deterministic synthetic parameters (shapes follow nn.LSTM / nn.Linear)."""
    ks = jax.random.split(key, 6)
    k = 1.0 / jnp.sqrt(hidden_size)
    u = lambda kk, shape: jax.random.uniform(kk, shape, jnp.float32, -k, k)
    # PyTorch: weight_ih_l0 (4H, I), weight_hh_l0 (4H, H); stored transposed for x @ W.
    w_ih_t = u(ks[0], (input_size, 4 * hidden_size))
    w_hh_t = u(ks[1], (hidden_size, 4 * hidden_size))
    b_lstm = u(ks[2], (1, 4 * hidden_size)) + u(ks[3], (1, 4 * hidden_size))  # b_ih + b_hh
    w_lin_t = u(ks[4], (hidden_size, output_dim))
    b_lin = u(ks[5], (1, output_dim))
    return {
        "scaler_bias": jnp.ones((1, input_size), jnp.float32),  # nn.Parameter(torch.ones)
        "scaler": jnp.ones((1, input_size), jnp.float32),       # nn.Parameter(torch.ones)
        "w_ih_t": w_ih_t,
        "w_hh_t": w_hh_t,
        "b_lstm": b_lstm,
        "w_lin_t": w_lin_t,
        "b_lin": b_lin,
    }


if __name__ == "__main__":
    key = jax.random.PRNGKey(0)
    k_x, k_p = jax.random.split(key)

    B, T, I, H, O = 2, 8, 4, 256, 4
    x = jax.random.normal(k_x, (B, T, I), jnp.float32)
    params = init_params(k_p, input_size=I, hidden_size=H, output_dim=O)

    v, z = jax.jit(sequence_model_forward)(x, params)
    jax.block_until_ready((v, z))

    v_ref, z_ref = reference_forward(x, params)
    assert v.shape == (B, T, O) and z.shape == (B, H)
    assert jnp.allclose(v, v_ref, atol=1e-4, rtol=1e-4)
    assert jnp.allclose(z, z_ref, atol=1e-4, rtol=1e-4)

    print("KERNEL_OK")
</pallas_src>

<mosaic_0001>
module attributes {stable_mosaic.version = 11 : i64} {
  func.func @lstm_kernel(%arg0: memref<64x4xf32, #tpu.memory_space<vmem>>, %arg1: memref<4x1024xf32, #tpu.memory_space<vmem>>, %arg2: memref<1x1024xf32, #tpu.memory_space<vmem>>, %arg3: memref<256x1024xf32, #tpu.memory_space<vmem>>, %arg4: memref<256x128xf32, #tpu.memory_space<vmem>>, %arg5: memref<1x128xf32, #tpu.memory_space<vmem>>, %arg6: memref<64x128xf32, #tpu.memory_space<vmem>>, %arg7: memref<8x256xf32, #tpu.memory_space<vmem>>, %arg8: memref<64x1024xf32, #tpu.memory_space<vmem>>, %arg9: memref<64x256xf32, #tpu.memory_space<vmem>>) attributes {dimension_semantics = [], scalar_prefetch = 0 : i64, scratch_operands = 2 : i64, tpu.core_type = #tpu.core_type<tc>} {
    %c0 = arith.constant 0 : index
    %c0_0 = arith.constant 0 : index
    %0 = vector.load %arg0[%c0, %c0_0] : memref<64x4xf32, #tpu.memory_space<vmem>>, vector<64x4xf32>
    %c0_1 = arith.constant 0 : index
    %c0_2 = arith.constant 0 : index
    %1 = vector.load %arg1[%c0_1, %c0_2] : memref<4x1024xf32, #tpu.memory_space<vmem>>, vector<4x1024xf32>
    %cst = arith.constant dense<0.000000e+00> : vector<64x1024xf32>
    %2 = tpu.matmul %0, %1, %cst {dimension_numbers = #tpu.dot_dimension_numbers<[1], [0], [0], [1], [0, 0, 1, 1], [], []>} : vector<64x4xf32>, vector<4x1024xf32>, vector<64x1024xf32> -> vector<64x1024xf32>
    %c0_3 = arith.constant 0 : index
    %c0_4 = arith.constant 0 : index
    %3 = vector.load %arg2[%c0_3, %c0_4] : memref<1x1024xf32, #tpu.memory_space<vmem>>, vector<1x1024xf32>
    %4 = vector.broadcast %3 : vector<1x1024xf32> to vector<64x1024xf32>
    %5 = arith.addf %2, %4 : vector<64x1024xf32>
    %c0_5 = arith.constant 0 : index
    %c0_6 = arith.constant 0 : index
    %6 = vector.load %arg8[%c0_5, %c0_6] : memref<64x1024xf32, #tpu.memory_space<vmem>>, vector<64x1024xf32>
    tpu.vector_store %arg8[%c0_5, %c0_6], %5 {strides = array<i32>} : memref<64x1024xf32, #tpu.memory_space<vmem>>, vector<64x1024xf32>,
    %c0_7 = arith.constant 0 : index
    %c0_8 = arith.constant 0 : index
    %7 = vector.load %arg3[%c0_7, %c0_8] : memref<256x1024xf32, #tpu.memory_space<vmem>>, vector<256x1024xf32>
    %cst_9 = arith.constant 0.000000e+00 : f32
    %8 = vector.broadcast %cst_9 : f32 to vector<8x256xf32>
    %cst_10 = arith.constant 0.000000e+00 : f32
    %9 = vector.broadcast %cst_10 : f32 to vector<8x256xf32>
    %c0_i32 = arith.constant 0 : i32
    %c8_i32 = arith.constant 8 : i32
    %10 = arith.muli %c0_i32, %c8_i32 : i32
    %11 = tpu.assume_multiple %10, 8 : i32
    %12 = arith.index_cast %11 : i32 to index
    %c0_11 = arith.constant 0 : index
    %13 = vector.load %arg8[%12, %c0_11] : memref<64x1024xf32, #tpu.memory_space<vmem>>, vector<8x1024xf32>
    %cst_12 = arith.constant dense<0.000000e+00> : vector<8x1024xf32>
    %14 = tpu.matmul %8, %7, %cst_12 {dimension_numbers = #tpu.dot_dimension_numbers<[1], [0], [0], [1], [0, 0, 1, 1], [], []>} : vector<8x256xf32>, vector<256x1024xf32>, vector<8x1024xf32> -> vector<8x1024xf32>
    %15 = arith.addf %13, %14 : vector<8x1024xf32>
    %16 = vector.extract_strided_slice %15 {offsets = [0, 0], sizes = [8, 256], strides = [1, 1]} : vector<8x1024xf32> to vector<8x256xf32>
    %17 = arith.negf %16 : vector<8x256xf32>
    %18 = math.exp %17 : vector<8x256xf32>
    %cst_13 = arith.constant 1.000000e+00 : f32
    %19 = vector.broadcast %cst_13 : f32 to vector<8x256xf32>
    %20 = arith.addf %19, %18 : vector<8x256xf32>
    %21 = arith.divf %19, %20 : vector<8x256xf32>
    %22 = vector.extract_strided_slice %15 {offsets = [0, 256], sizes = [8, 256], strides = [1, 1]} : vector<8x1024xf32> to vector<8x256xf32>
    %23 = arith.negf %22 : vector<8x256xf32>
    %24 = math.exp %23 : vector<8x256xf32>
    %cst_14 = arith.constant 1.000000e+00 : f32
    %25 = vector.broadcast %cst_14 : f32 to vector<8x256xf32>
    %26 = arith.addf %25, %24 : vector<8x256xf32>
    %27 = arith.divf %25, %26 : vector<8x256xf32>
    %28 = vector.extract_strided_slice %15 {offsets = [0, 512], sizes = [8, 256], strides = [1, 1]} : vector<8x1024xf32> to vector<8x256xf32>
    %29 = math.tanh %28 : vector<8x256xf32>
    %30 = vector.extract_strided_slice %15 {offsets = [0, 768], sizes = [8, 256], strides = [1, 1]} : vector<8x1024xf32> to vector<8x256xf32>
    %31 = arith.negf %30 : vector<8x256xf32>
    %32 = math.exp %31 : vector<8x256xf32>
    %cst_15 = arith.constant 1.000000e+00 : f32
    %33 = vector.broadcast %cst_15 : f32 to vector<8x256xf32>
    %34 = arith.addf %33, %32 : vector<8x256xf32>
    %35 = arith.divf %33, %34 : vector<8x256xf32>
    %36 = arith.mulf %27, %9 : vector<8x256xf32>
    %37 = arith.mulf %21, %29 : vector<8x256xf32>
    %38 = arith.addf %36, %37 : vector<8x256xf32>
    %39 = math.tanh %38 : vector<8x256xf32>
    %40 = arith.mulf %35, %39 : vector<8x256xf32>
    %41 = arith.index_cast %11 : i32 to index
    %c0_16 = arith.constant 0 : index
    %42 = vector.load %arg9[%41, %c0_16] : memref<64x256xf32, #tpu.memory_space<vmem>>, vector<8x256xf32>
    tpu.vector_store %arg9[%41, %c0_16], %40 {strides = array<i32>} : memref<64x256xf32, #tpu.memory_space<vmem>>, vector<8x256xf32>,
    %c1_i32 = arith.constant 1 : i32
    %c8_i32_17 = arith.constant 8 : i32
    %43 = arith.muli %c1_i32, %c8_i32_17 : i32
    %44 = tpu.assume_multiple %43, 8 : i32
    %45 = arith.index_cast %44 : i32 to index
    %c0_18 = arith.constant 0 : index
    %46 = vector.load %arg8[%45, %c0_18] : memref<64x1024xf32, #tpu.memory_space<vmem>>, vector<8x1024xf32>
    %cst_19 = arith.constant dense<0.000000e+00> : vector<8x1024xf32>
    %47 = tpu.matmul %40, %7, %cst_19 {dimension_numbers = #tpu.dot_dimension_numbers<[1], [0], [0], [1], [0, 0, 1, 1], [], []>} : vector<8x256xf32>, vector<256x1024xf32>, vector<8x1024xf32> -> vector<8x1024xf32>
    %48 = arith.addf %46, %47 : vector<8x1024xf32>
    %49 = vector.extract_strided_slice %48 {offsets = [0, 0], sizes = [8, 256], strides = [1, 1]} : vector<8x1024xf32> to vector<8x256xf32>
    %50 = arith.negf %49 : vector<8x256xf32>
    %51 = math.exp %50 : vector<8x256xf32>
    %cst_20 = arith.constant 1.000000e+00 : f32
    %52 = vector.broadcast %cst_20 : f32 to vector<8x256xf32>
    %53 = arith.addf %52, %51 : vector<8x256xf32>
    %54 = arith.divf %52, %53 : vector<8x256xf32>
    %55 = vector.extract_strided_slice %48 {offsets = [0, 256], sizes = [8, 256], strides = [1, 1]} : vector<8x1024xf32> to vector<8x256xf32>
    %56 = arith.negf %55 : vector<8x256xf32>
    %57 = math.exp %56 : vector<8x256xf32>
    %cst_21 = arith.constant 1.000000e+00 : f32
    %58 = vector.broadcast %cst_21 : f32 to vector<8x256xf32>
    %59 = arith.addf %58, %57 : vector<8x256xf32>
    %60 = arith.divf %58, %59 : vector<8x256xf32>
    %61 = vector.extract_strided_slice %48 {offsets = [0, 512], sizes = [8, 256], strides = [1, 1]} : vector<8x1024xf32> to vector<8x256xf32>
    %62 = math.tanh %61 : vector<8x256xf32>
    %63 = vector.extract_strided_slice %48 {offsets = [0, 768], sizes = [8, 256], strides = [1, 1]} : vector<8x1024xf32> to vector<8x256xf32>
    %64 = arith.negf %63 : vector<8x256xf32>
    %65 = math.exp %64 : vector<8x256xf32>
    %cst_22 = arith.constant 1.000000e+00 : f32
    %66 = vector.broadcast %cst_22 : f32 to vector<8x256xf32>
    %67 = arith.addf %66, %65 : vector<8x256xf32>
    %68 = arith.divf %66, %67 : vector<8x256xf32>
    %69 = arith.mulf %60, %38 : vector<8x256xf32>
    %70 = arith.mulf %54, %62 : vector<8x256xf32>
    %71 = arith.addf %69, %70 : vector<8x256xf32>
    %72 = math.tanh %71 : vector<8x256xf32>
    %73 = arith.mulf %68, %72 : vector<8x256xf32>
    %74 = arith.index_cast %44 : i32 to index
    %c0_23 = arith.constant 0 : index
    %75 = vector.load %arg9[%74, %c0_23] : memref<64x256xf32, #tpu.memory_space<vmem>>, vector<8x256xf32>
    tpu.vector_store %arg9[%74, %c0_23], %73 {strides = array<i32>} : memref<64x256xf32, #tpu.memory_space<vmem>>, vector<8x256xf32>,
    %c2_i32 = arith.constant 2 : i32
    %c8_i32_24 = arith.constant 8 : i32
    %76 = arith.muli %c2_i32, %c8_i32_24 : i32
    %77 = tpu.assume_multiple %76, 8 : i32
    %78 = arith.index_cast %77 : i32 to index
    %c0_25 = arith.constant 0 : index
    %79 = vector.load %arg8[%78, %c0_25] : memref<64x1024xf32, #tpu.memory_space<vmem>>, vector<8x1024xf32>
    %cst_26 = arith.constant dense<0.000000e+00> : vector<8x1024xf32>
    %80 = tpu.matmul %73, %7, %cst_26 {dimension_numbers = #tpu.dot_dimension_numbers<[1], [0], [0], [1], [0, 0, 1, 1], [], []>} : vector<8x256xf32>, vector<256x1024xf32>, vector<8x1024xf32> -> vector<8x1024xf32>
    %81 = arith.addf %79, %80 : vector<8x1024xf32>
    %82 = vector.extract_strided_slice %81 {offsets = [0, 0], sizes = [8, 256], strides = [1, 1]} : vector<8x1024xf32> to vector<8x256xf32>
    %83 = arith.negf %82 : vector<8x256xf32>
    %84 = math.exp %83 : vector<8x256xf32>
    %cst_27 = arith.constant 1.000000e+00 : f32
    %85 = vector.broadcast %cst_27 : f32 to vector<8x256xf32>
    %86 = arith.addf %85, %84 : vector<8x256xf32>
    %87 = arith.divf %85, %86 : vector<8x256xf32>
    %88 = vector.extract_strided_slice %81 {offsets = [0, 256], sizes = [8, 256], strides = [1, 1]} : vector<8x1024xf32> to vector<8x256xf32>
    %89 = arith.negf %88 : vector<8x256xf32>
    %90 = math.exp %89 : vector<8x256xf32>
    %cst_28 = arith.constant 1.000000e+00 : f32
    %91 = vector.broadcast %cst_28 : f32 to vector<8x256xf32>
    %92 = arith.addf %91, %90 : vector<8x256xf32>
    %93 = arith.divf %91, %92 : vector<8x256xf32>
    %94 = vector.extract_strided_slice %81 {offsets = [0, 512], sizes = [8, 256], strides = [1, 1]} : vector<8x1024xf32> to vector<8x256xf32>
    %95 = math.tanh %94 : vector<8x256xf32>
    %96 = vector.extract_strided_slice %81 {offsets = [0, 768], sizes = [8, 256], strides = [1, 1]} : vector<8x1024xf32> to vector<8x256xf32>
    %97 = arith.negf %96 : vector<8x256xf32>
    %98 = math.exp %97 : vector<8x256xf32>
    %cst_29 = arith.constant 1.000000e+00 : f32
    %99 = vector.broadcast %cst_29 : f32 to vector<8x256xf32>
    %100 = arith.addf %99, %98 : vector<8x256xf32>
    %101 = arith.divf %99, %100 : vector<8x256xf32>
    %102 = arith.mulf %93, %71 : vector<8x256xf32>
    %103 = arith.mulf %87, %95 : vector<8x256xf32>
    %104 = arith.addf %102, %103 : vector<8x256xf32>
    %105 = math.tanh %104 : vector<8x256xf32>
    %106 = arith.mulf %101, %105 : vector<8x256xf32>
    %107 = arith.index_cast %77 : i32 to index
    %c0_30 = arith.constant 0 : index
    %108 = vector.load %arg9[%107, %c0_30] : memref<64x256xf32, #tpu.memory_space<vmem>>, vector<8x256xf32>
    tpu.vector_store %arg9[%107, %c0_30], %106 {strides = array<i32>} : memref<64x256xf32, #tpu.memory_space<vmem>>, vector<8x256xf32>,
    %c3_i32 = arith.constant 3 : i32
    %c8_i32_31 = arith.constant 8 : i32
    %109 = arith.muli %c3_i32, %c8_i32_31 : i32
    %110 = tpu.assume_multiple %109, 8 : i32
    %111 = arith.index_cast %110 : i32 to index
    %c0_32 = arith.constant 0 : index
    %112 = vector.load %arg8[%111, %c0_32] : memref<64x1024xf32, #tpu.memory_space<vmem>>, vector<8x1024xf32>
    %cst_33 = arith.constant dense<0.000000e+00> : vector<8x1024xf32>
    %113 = tpu.matmul %106, %7, %cst_33 {dimension_numbers = #tpu.dot_dimension_numbers<[1], [0], [0], [1], [0, 0, 1, 1], [], []>} : vector<8x256xf32>, vector<256x1024xf32>, vector<8x1024xf32> -> vector<8x1024xf32>
    %114 = arith.addf %112, %113 : vector<8x1024xf32>
    %115 = vector.extract_strided_slice %114 {offsets = [0, 0], sizes = [8, 256], strides = [1, 1]} : vector<8x1024xf32> to vector<8x256xf32>
    %116 = arith.negf %115 : vector<8x256xf32>
    %117 = math.exp %116 : vector<8x256xf32>
    %cst_34 = arith.constant 1.000000e+00 : f32
    %118 = vector.broadcast %cst_34 : f32 to vector<8x256xf32>
    %119 = arith.addf %118, %117 : vector<8x256xf32>
    %120 = arith.divf %118, %119 : vector<8x256xf32>
    %121 = vector.extract_strided_slice %114 {offsets = [0, 256], sizes = [8, 256], strides = [1, 1]} : vector<8x1024xf32> to vector<8x256xf32>
    %122 = arith.negf %121 : vector<8x256xf32>
    %123 = math.exp %122 : vector<8x256xf32>
    %cst_35 = arith.constant 1.000000e+00 : f32
    %124 = vector.broadcast %cst_35 : f32 to vector<8x256xf32>
    %125 = arith.addf %124, %123 : vector<8x256xf32>
    %126 = arith.divf %124, %125 : vector<8x256xf32>
    %127 = vector.extract_strided_slice %114 {offsets = [0, 512], sizes = [8, 256], strides = [1, 1]} : vector<8x1024xf32> to vector<8x256xf32>
    %128 = math.tanh %127 : vector<8x256xf32>
    %129 = vector.extract_strided_slice %114 {offsets = [0, 768], sizes = [8, 256], strides = [1, 1]} : vector<8x1024xf32> to vector<8x256xf32>
    %130 = arith.negf %129 : vector<8x256xf32>
    %131 = math.exp %130 : vector<8x256xf32>
    %cst_36 = arith.constant 1.000000e+00 : f32
    %132 = vector.broadcast %cst_36 : f32 to vector<8x256xf32>
    %133 = arith.addf %132, %131 : vector<8x256xf32>
    %134 = arith.divf %132, %133 : vector<8x256xf32>
    %135 = arith.mulf %126, %104 : vector<8x256xf32>
    %136 = arith.mulf %120, %128 : vector<8x256xf32>
    %137 = arith.addf %135, %136 : vector<8x256xf32>
    %138 = math.tanh %137 : vector<8x256xf32>
    %139 = arith.mulf %134, %138 : vector<8x256xf32>
    %140 = arith.index_cast %110 : i32 to index
    %c0_37 = arith.constant 0 : index
    %141 = vector.load %arg9[%140, %c0_37] : memref<64x256xf32, #tpu.memory_space<vmem>>, vector<8x256xf32>
    tpu.vector_store %arg9[%140, %c0_37], %139 {strides = array<i32>} : memref<64x256xf32, #tpu.memory_space<vmem>>, vector<8x256xf32>,
    %c4_i32 = arith.constant 4 : i32
    %c8_i32_38 = arith.constant 8 : i32
    %142 = arith.muli %c4_i32, %c8_i32_38 : i32
    %143 = tpu.assume_multiple %142, 8 : i32
    %144 = arith.index_cast %143 : i32 to index
    %c0_39 = arith.constant 0 : index
    %145 = vector.load %arg8[%144, %c0_39] : memref<64x1024xf32, #tpu.memory_space<vmem>>, vector<8x1024xf32>
    %cst_40 = arith.constant dense<0.000000e+00> : vector<8x1024xf32>
    %146 = tpu.matmul %139, %7, %cst_40 {dimension_numbers = #tpu.dot_dimension_numbers<[1], [0], [0], [1], [0, 0, 1, 1], [], []>} : vector<8x256xf32>, vector<256x1024xf32>, vector<8x1024xf32> -> vector<8x1024xf32>
    %147 = arith.addf %145, %146 : vector<8x1024xf32>
    %148 = vector.extract_strided_slice %147 {offsets = [0, 0], sizes = [8, 256], strides = [1, 1]} : vector<8x1024xf32> to vector<8x256xf32>
    %149 = arith.negf %148 : vector<8x256xf32>
    %150 = math.exp %149 : vector<8x256xf32>
    %cst_41 = arith.constant 1.000000e+00 : f32
    %151 = vector.broadcast %cst_41 : f32 to vector<8x256xf32>
    %152 = arith.addf %151, %150 : vector<8x256xf32>
    %153 = arith.divf %151, %152 : vector<8x256xf32>
    %154 = vector.extract_strided_slice %147 {offsets = [0, 256], sizes = [8, 256], strides = [1, 1]} : vector<8x1024xf32> to vector<8x256xf32>
    %155 = arith.negf %154 : vector<8x256xf32>
    %156 = math.exp %155 : vector<8x256xf32>
    %cst_42 = arith.constant 1.000000e+00 : f32
    %157 = vector.broadcast %cst_42 : f32 to vector<8x256xf32>
    %158 = arith.addf %157, %156 : vector<8x256xf32>
    %159 = arith.divf %157, %158 : vector<8x256xf32>
    %160 = vector.extract_strided_slice %147 {offsets = [0, 512], sizes = [8, 256], strides = [1, 1]} : vector<8x1024xf32> to vector<8x256xf32>
    %161 = math.tanh %160 : vector<8x256xf32>
    %162 = vector.extract_strided_slice %147 {offsets = [0, 768], sizes = [8, 256], strides = [1, 1]} : vector<8x1024xf32> to vector<8x256xf32>
    %163 = arith.negf %162 : vector<8x256xf32>
    %164 = math.exp %163 : vector<8x256xf32>
    %cst_43 = arith.constant 1.000000e+00 : f32
    %165 = vector.broadcast %cst_43 : f32 to vector<8x256xf32>
    %166 = arith.addf %165, %164 : vector<8x256xf32>
    %167 = arith.divf %165, %166 : vector<8x256xf32>
    %168 = arith.mulf %159, %137 : vector<8x256xf32>
    %169 = arith.mulf %153, %161 : vector<8x256xf32>
    %170 = arith.addf %168, %169 : vector<8x256xf32>
    %171 = math.tanh %170 : vector<8x256xf32>
    %172 = arith.mulf %167, %171 : vector<8x256xf32>
    %173 = arith.index_cast %143 : i32 to index
    %c0_44 = arith.constant 0 : index
    %174 = vector.load %arg9[%173, %c0_44] : memref<64x256xf32, #tpu.memory_space<vmem>>, vector<8x256xf32>
    tpu.vector_store %arg9[%173, %c0_44], %172 {strides = array<i32>} : memref<64x256xf32, #tpu.memory_space<vmem>>, vector<8x256xf32>,
    %c5_i32 = arith.constant 5 : i32
    %c8_i32_45 = arith.constant 8 : i32
    %175 = arith.muli %c5_i32, %c8_i32_45 : i32
    %176 = tpu.assume_multiple %175, 8 : i32
    %177 = arith.index_cast %176 : i32 to index
    %c0_46 = arith.constant 0 : index
    %178 = vector.load %arg8[%177, %c0_46] : memref<64x1024xf32, #tpu.memory_space<vmem>>, vector<8x1024xf32>
    %cst_47 = arith.constant dense<0.000000e+00> : vector<8x1024xf32>
    %179 = tpu.matmul %172, %7, %cst_47 {dimension_numbers = #tpu.dot_dimension_numbers<[1], [0], [0], [1], [0, 0, 1, 1], [], []>} : vector<8x256xf32>, vector<256x1024xf32>, vector<8x1024xf32> -> vector<8x1024xf32>
    %180 = arith.addf %178, %179 : vector<8x1024xf32>
    %181 = vector.extract_strided_slice %180 {offsets = [0, 0], sizes = [8, 256], strides = [1, 1]} : vector<8x1024xf32> to vector<8x256xf32>
    %182 = arith.negf %181 : vector<8x256xf32>
    %183 = math.exp %182 : vector<8x256xf32>
    %cst_48 = arith.constant 1.000000e+00 : f32
    %184 = vector.broadcast %cst_48 : f32 to vector<8x256xf32>
    %185 = arith.addf %184, %183 : vector<8x256xf32>
    %186 = arith.divf %184, %185 : vector<8x256xf32>
    %187 = vector.extract_strided_slice %180 {offsets = [0, 256], sizes = [8, 256], strides = [1, 1]} : vector<8x1024xf32> to vector<8x256xf32>
    %188 = arith.negf %187 : vector<8x256xf32>
    %189 = math.exp %188 : vector<8x256xf32>
    %cst_49 = arith.constant 1.000000e+00 : f32
    %190 = vector.broadcast %cst_49 : f32 to vector<8x256xf32>
    %191 = arith.addf %190, %189 : vector<8x256xf32>
    %192 = arith.divf %190, %191 : vector<8x256xf32>
    %193 = vector.extract_strided_slice %180 {offsets = [0, 512], sizes = [8, 256], strides = [1, 1]} : vector<8x1024xf32> to vector<8x256xf32>
    %194 = math.tanh %193 : vector<8x256xf32>
    %195 = vector.extract_strided_slice %180 {offsets = [0, 768], sizes = [8, 256], strides = [1, 1]} : vector<8x1024xf32> to vector<8x256xf32>
    %196 = arith.negf %195 : vector<8x256xf32>
    %197 = math.exp %196 : vector<8x256xf32>
    %cst_50 = arith.constant 1.000000e+00 : f32
    %198 = vector.broadcast %cst_50 : f32 to vector<8x256xf32>
    %199 = arith.addf %198, %197 : vector<8x256xf32>
    %200 = arith.divf %198, %199 : vector<8x256xf32>
    %201 = arith.mulf %192, %170 : vector<8x256xf32>
    %202 = arith.mulf %186, %194 : vector<8x256xf32>
    %203 = arith.addf %201, %202 : vector<8x256xf32>
    %204 = math.tanh %203 : vector<8x256xf32>
    %205 = arith.mulf %200, %204 : vector<8x256xf32>
    %206 = arith.index_cast %176 : i32 to index
    %c0_51 = arith.constant 0 : index
    %207 = vector.load %arg9[%206, %c0_51] : memref<64x256xf32, #tpu.memory_space<vmem>>, vector<8x256xf32>
    tpu.vector_store %arg9[%206, %c0_51], %205 {strides = array<i32>} : memref<64x256xf32, #tpu.memory_space<vmem>>, vector<8x256xf32>,
    %c6_i32 = arith.constant 6 : i32
    %c8_i32_52 = arith.constant 8 : i32
    %208 = arith.muli %c6_i32, %c8_i32_52 : i32
    %209 = tpu.assume_multiple %208, 8 : i32
    %210 = arith.index_cast %209 : i32 to index
    %c0_53 = arith.constant 0 : index
    %211 = vector.load %arg8[%210, %c0_53] : memref<64x1024xf32, #tpu.memory_space<vmem>>, vector<8x1024xf32>
    %cst_54 = arith.constant dense<0.000000e+00> : vector<8x1024xf32>
    %212 = tpu.matmul %205, %7, %cst_54 {dimension_numbers = #tpu.dot_dimension_numbers<[1], [0], [0], [1], [0, 0, 1, 1], [], []>} : vector<8x256xf32>, vector<256x1024xf32>, vector<8x1024xf32> -> vector<8x1024xf32>
    %213 = arith.addf %211, %212 : vector<8x1024xf32>
    %214 = vector.extract_strided_slice %213 {offsets = [0, 0], sizes = [8, 256], strides = [1, 1]} : vector<8x1024xf32> to vector<8x256xf32>
    %215 = arith.negf %214 : vector<8x256xf32>
    %216 = math.exp %215 : vector<8x256xf32>
    %cst_55 = arith.constant 1.000000e+00 : f32
    %217 = vector.broadcast %cst_55 : f32 to vector<8x256xf32>
    %218 = arith.addf %217, %216 : vector<8x256xf32>
    %219 = arith.divf %217, %218 : vector<8x256xf32>
    %220 = vector.extract_strided_slice %213 {offsets = [0, 256], sizes = [8, 256], strides = [1, 1]} : vector<8x1024xf32> to vector<8x256xf32>
    %221 = arith.negf %220 : vector<8x256xf32>
    %222 = math.exp %221 : vector<8x256xf32>
    %cst_56 = arith.constant 1.000000e+00 : f32
    %223 = vector.broadcast %cst_56 : f32 to vector<8x256xf32>
    %224 = arith.addf %223, %222 : vector<8x256xf32>
    %225 = arith.divf %223, %224 : vector<8x256xf32>
    %226 = vector.extract_strided_slice %213 {offsets = [0, 512], sizes = [8, 256], strides = [1, 1]} : vector<8x1024xf32> to vector<8x256xf32>
    %227 = math.tanh %226 : vector<8x256xf32>
    %228 = vector.extract_strided_slice %213 {offsets = [0, 768], sizes = [8, 256], strides = [1, 1]} : vector<8x1024xf32> to vector<8x256xf32>
    %229 = arith.negf %228 : vector<8x256xf32>
    %230 = math.exp %229 : vector<8x256xf32>
    %cst_57 = arith.constant 1.000000e+00 : f32
    %231 = vector.broadcast %cst_57 : f32 to vector<8x256xf32>
    %232 = arith.addf %231, %230 : vector<8x256xf32>
    %233 = arith.divf %231, %232 : vector<8x256xf32>
    %234 = arith.mulf %225, %203 : vector<8x256xf32>
    %235 = arith.mulf %219, %227 : vector<8x256xf32>
    %236 = arith.addf %234, %235 : vector<8x256xf32>
    %237 = math.tanh %236 : vector<8x256xf32>
    %238 = arith.mulf %233, %237 : vector<8x256xf32>
    %239 = arith.index_cast %209 : i32 to index
    %c0_58 = arith.constant 0 : index
    %240 = vector.load %arg9[%239, %c0_58] : memref<64x256xf32, #tpu.memory_space<vmem>>, vector<8x256xf32>
    tpu.vector_store %arg9[%239, %c0_58], %238 {strides = array<i32>} : memref<64x256xf32, #tpu.memory_space<vmem>>, vector<8x256xf32>,
    %c7_i32 = arith.constant 7 : i32
    %c8_i32_59 = arith.constant 8 : i32
    %241 = arith.muli %c7_i32, %c8_i32_59 : i32
    %242 = tpu.assume_multiple %241, 8 : i32
    %243 = arith.index_cast %242 : i32 to index
    %c0_60 = arith.constant 0 : index
    %244 = vector.load %arg8[%243, %c0_60] : memref<64x1024xf32, #tpu.memory_space<vmem>>, vector<8x1024xf32>
    %cst_61 = arith.constant dense<0.000000e+00> : vector<8x1024xf32>
    %245 = tpu.matmul %238, %7, %cst_61 {dimension_numbers = #tpu.dot_dimension_numbers<[1], [0], [0], [1], [0, 0, 1, 1], [], []>} : vector<8x256xf32>, vector<256x1024xf32>, vector<8x1024xf32> -> vector<8x1024xf32>
    %246 = arith.addf %244, %245 : vector<8x1024xf32>
    %247 = vector.extract_strided_slice %246 {offsets = [0, 0], sizes = [8, 256], strides = [1, 1]} : vector<8x1024xf32> to vector<8x256xf32>
    %248 = arith.negf %247 : vector<8x256xf32>
    %249 = math.exp %248 : vector<8x256xf32>
    %cst_62 = arith.constant 1.000000e+00 : f32
    %250 = vector.broadcast %cst_62 : f32 to vector<8x256xf32>
    %251 = arith.addf %250, %249 : vector<8x256xf32>
    %252 = arith.divf %250, %251 : vector<8x256xf32>
    %253 = vector.extract_strided_slice %246 {offsets = [0, 256], sizes = [8, 256], strides = [1, 1]} : vector<8x1024xf32> to vector<8x256xf32>
    %254 = arith.negf %253 : vector<8x256xf32>
    %255 = math.exp %254 : vector<8x256xf32>
    %cst_63 = arith.constant 1.000000e+00 : f32
    %256 = vector.broadcast %cst_63 : f32 to vector<8x256xf32>
    %257 = arith.addf %256, %255 : vector<8x256xf32>
    %258 = arith.divf %256, %257 : vector<8x256xf32>
    %259 = vector.extract_strided_slice %246 {offsets = [0, 512], sizes = [8, 256], strides = [1, 1]} : vector<8x1024xf32> to vector<8x256xf32>
    %260 = math.tanh %259 : vector<8x256xf32>
    %261 = vector.extract_strided_slice %246 {offsets = [0, 768], sizes = [8, 256], strides = [1, 1]} : vector<8x1024xf32> to vector<8x256xf32>
    %262 = arith.negf %261 : vector<8x256xf32>
    %263 = math.exp %262 : vector<8x256xf32>
    %cst_64 = arith.constant 1.000000e+00 : f32
    %264 = vector.broadcast %cst_64 : f32 to vector<8x256xf32>
    %265 = arith.addf %264, %263 : vector<8x256xf32>
    %266 = arith.divf %264, %265 : vector<8x256xf32>
    %267 = arith.mulf %258, %236 : vector<8x256xf32>
    %268 = arith.mulf %252, %260 : vector<8x256xf32>
    %269 = arith.addf %267, %268 : vector<8x256xf32>
    %270 = math.tanh %269 : vector<8x256xf32>
    %271 = arith.mulf %266, %270 : vector<8x256xf32>
    %272 = arith.index_cast %242 : i32 to index
    %c0_65 = arith.constant 0 : index
    %273 = vector.load %arg9[%272, %c0_65] : memref<64x256xf32, #tpu.memory_space<vmem>>, vector<8x256xf32>
    tpu.vector_store %arg9[%272, %c0_65], %271 {strides = array<i32>} : memref<64x256xf32, #tpu.memory_space<vmem>>, vector<8x256xf32>,
    %c8_i32_66 = arith.constant 8 : i32
    %c0_67 = arith.constant 0 : index
    %c0_68 = arith.constant 0 : index
    %274 = vector.load %arg7[%c0_67, %c0_68] : memref<8x256xf32, #tpu.memory_space<vmem>>, vector<8x256xf32>
    tpu.vector_store %arg7[%c0_67, %c0_68], %271 {strides = array<i32>} : memref<8x256xf32, #tpu.memory_space<vmem>>, vector<8x256xf32>,
    %c0_69 = arith.constant 0 : index
    %c0_70 = arith.constant 0 : index
    %275 = vector.load %arg9[%c0_69, %c0_70] : memref<64x256xf32, #tpu.memory_space<vmem>>, vector<64x256xf32>
    %c0_71 = arith.constant 0 : index
    %c0_72 = arith.constant 0 : index
    %276 = vector.load %arg4[%c0_71, %c0_72] : memref<256x128xf32, #tpu.memory_space<vmem>>, vector<256x128xf32>
    %cst_73 = arith.constant dense<0.000000e+00> : vector<64x128xf32>
    %277 = tpu.matmul %275, %276, %cst_73 {dimension_numbers = #tpu.dot_dimension_numbers<[1], [0], [0], [1], [0, 0, 1, 1], [], []>} : vector<64x256xf32>, vector<256x128xf32>, vector<64x128xf32> -> vector<64x128xf32>
    %c0_74 = arith.constant 0 : index
    %c0_75 = arith.constant 0 : index
    %278 = vector.load %arg5[%c0_74, %c0_75] : memref<1x128xf32, #tpu.memory_space<vmem>>, vector<1x128xf32>
    %279 = vector.broadcast %278 : vector<1x128xf32> to vector<64x128xf32>
    %280 = arith.addf %277, %279 : vector<64x128xf32>
    %c0_76 = arith.constant 0 : index
    %c0_77 = arith.constant 0 : index
    %281 = vector.load %arg6[%c0_76, %c0_77] : memref<64x128xf32, #tpu.memory_space<vmem>>, vector<64x128xf32>
    tpu.vector_store %arg6[%c0_76, %c0_77], %280 {strides = array<i32>} : memref<64x128xf32, #tpu.memory_space<vmem>>, vector<64x128xf32>,
    return
  }
}

</mosaic_0001>

<llo_original>
// kernel: sequence_model_forward.1
$region0: #{sequence_model_forward.1}
  #allocation0 [shape = 'u32[]', space=smem, size = 0x4, offset = 0x4, fixed_abs, tag = 'smem constant byte address 0x4 - core index']
  #allocation1 [shape = 'u32[144,128]{1,0:T(1,128)}', space=vmem, size = 0x12000, scoped, tag = 'internal scratch']
  #allocation2 [shape = 'f32[64,1024]{1,0:T(8,128)}', space=vmem, size = 0x40000, scoped, tag = 'scratch operand']
  #allocation3 [shape = 'f32[64,256]{1,0:T(8,128)}', space=vmem, size = 0x10000, scoped, tag = 'scratch operand']
  %s0 = inlined_call_operand.vmem [shape: f32[64,4], index: 0, kind: input, shape index: {}]
  %s1 = inlined_call_operand.vmem [shape: f32[4,1024], index: 1, kind: input, shape index: {}]
  %s2 = inlined_call_operand.vmem [shape: f32[1,1024], index: 2, kind: input, shape index: {}]
  %s3 = inlined_call_operand.hbm [shape: f32[256,1024], index: 3, kind: input, shape index: {}]
  %s4 = inlined_call_operand.vmem [shape: f32[256,128], index: 4, kind: input, shape index: {}]
  %s5 = inlined_call_operand.vmem [shape: f32[1,128], index: 5, kind: input, shape index: {}]
  %s6 = inlined_call_operand.vmem [shape: f32[64,128], index: 6, kind: output, shape index: {0}]
  %s7 = inlined_call_operand.vmem [shape: f32[8,256], index: 7, kind: output, shape index: {1}]
  %8 = xla_tuple %s6, %s7
  %s9 = sld [smem:[#allocation0]]
  $region46: #{sequence_model_forward.1} parent=0
    _
  %s11 = ssub.s32 1, %s9
  %s12 = scalar_select 0, %s11, %s9
  $region1: #{sequence_model_forward.1} parent=0
    #allocation4 [shape = 'u8[1048576]{0}', space=vmem, size = 0x100000, scoped, tag = 'input window, operand 3, single buffered']
    #allocation5 [shape = 's32[1]{0}', space=sflag, size = 0x4, scoped, tag = 'scoped memory for sequence_model_forward.1']
    %13 = vsyncpa [#allocation5], 0
    // Predicated region
    $region2: #{sequence_model_forward.1} parent=1 // pred_check
      _
    $region3: #{sequence_model_forward.1} parent=1 // pred_check_branch
      %15 = sbr.rel (0) target = $region5
    $region4: #{sequence_model_forward.1} parent=1 // pred_region
      _
    $region5: #{sequence_model_forward.1} parent=1 // pred_fallthru
      _
    // Predicated region
    $region6: #{sequence_model_forward.1} parent=1 // pred_check
      _
    $region7: #{sequence_model_forward.1} parent=1 // pred_check_branch
      %17 = sbr.rel (0) target = $region9
    $region8: #{sequence_model_forward.1} parent=1 // pred_region
      _
    $region9: #{sequence_model_forward.1} parent=1 // pred_fallthru
      _
    // Predicated region
    $region10: #{sequence_model_forward.1} parent=1 // pred_check
      _
    $region11: #{sequence_model_forward.1} parent=1 // pred_check_branch
      %19 = sbr.rel (0) target = $region13
    $region12: #{sequence_model_forward.1} parent=1 // pred_region
      _
    $region13: #{sequence_model_forward.1} parent=1 // pred_fallthru
      _
    // Predicated region
    $region14: #{sequence_model_forward.1} parent=1 // pred_check
      _
    $region15: #{sequence_model_forward.1} parent=1 // pred_check_branch
      %21 = sbr.rel (0) target = $region17
    $region16: #{sequence_model_forward.1} parent=1 // pred_region
      %s23 = ssub.s32 32768, 32768
      %24 = vsyncadd [#allocation5], %s23
      %s25 = sshll.u32 [#allocation4], 4
      %s26 = int_to_ptr.vmem [resolvable:$true] %s25
      %31 = dma.hbm_to_vmem [thread:$0]  %s3, 32768, %s26, [#allocation5], 1024, 1024, 64
    $region17: #{sequence_model_forward.1} parent=1 // pred_fallthru
      _
    // Predicated region
    $region18: #{sequence_model_forward.1} parent=1 // pred_check
      _
    $region19: #{sequence_model_forward.1} parent=1 // pred_check_branch
      %33 = sbr.rel (0) target = $region21
    $region20: #{sequence_model_forward.1} parent=1 // pred_region
      _
    $region21: #{sequence_model_forward.1} parent=1 // pred_fallthru
      _
    // Predicated region
    $region22: #{sequence_model_forward.1} parent=1 // pred_check
      _
    $region23: #{sequence_model_forward.1} parent=1 // pred_check_branch
      %35 = sbr.rel (0) target = $region25
    $region24: #{sequence_model_forward.1} parent=1 // pred_region
      _
    $region25: #{sequence_model_forward.1} parent=1 // pred_fallthru
      _
    // Predicated region
    $region26: #{sequence_model_forward.1} parent=1 // pred_check
      _
    $region27: #{sequence_model_forward.1} parent=1 // pred_check_branch
      %37 = sbr.rel (0) target = $region29
    $region28: #{sequence_model_forward.1} parent=1 // pred_region
      %38 = dma.done [#allocation5], 32768
    $region29: #{sequence_model_forward.1} parent=1 // pred_fallthru
      _
    %v39 = vld [vmem:[%s0] sm:$0xff]
    %v40 = vld [vmem:[%s0 + $0x8] sm:$0xff]
    %v41 = vld [vmem:[%s0 + $0x10] sm:$0xff]
    %v42 = vld [vmem:[%s0 + $0x18] sm:$0xff]
    %v43 = vld [vmem:[%s0 + $0x20] sm:$0xff]
    %v44 = vld [vmem:[%s0 + $0x28] sm:$0xff]
    %v45 = vld [vmem:[%s0 + $0x30] sm:$0xff]
    %v46 = vld [vmem:[%s0 + $0x38] sm:$0xff]
    %v47 = vld [vmem:[%s1] sm:$0xff]
    %v48 = vld [vmem:[%s1 + $0x8] sm:$0xff]
    %v49 = vld [vmem:[%s1 + $0x10] sm:$0xff]
    %v50 = vld [vmem:[%s1 + $0x18] sm:$0xff]
    %v51 = vld [vmem:[%s2] sm:$0xff]
    %v53 = vlaneseq
    %v54 = vshrl.u32 %v53, 7
    %v55 = vsub.s32 0, %v54
    %v56 = vrot.slane %v51, %v55
    %v57 = vlaneseq
    %v58 = vshrl.u32 %v57, 7
    %v59 = vsub.s32 1, %v58
    %v60 = vrot.slane %v51, %v59
    %v61 = vlaneseq
    %v62 = vshrl.u32 %v61, 7
    %v63 = vsub.s32 2, %v62
    %v64 = vrot.slane %v51, %v63
    %v65 = vlaneseq
    %v66 = vshrl.u32 %v65, 7
    %v67 = vsub.s32 3, %v66
    %v68 = vrot.slane %v51, %v67
    %v69 = vlaneseq
    %v70 = vshrl.u32 %v69, 7
    %v71 = vsub.s32 4, %v70
    %v72 = vrot.slane %v51, %v71
    %v73 = vlaneseq
    %v74 = vshrl.u32 %v73, 7
    %v75 = vsub.s32 5, %v74
    %v76 = vrot.slane %v51, %v75
    %v77 = vlaneseq
    %v78 = vshrl.u32 %v77, 7
    %v79 = vsub.s32 6, %v78
    %v80 = vrot.slane %v51, %v79
    %v81 = vlaneseq
    %v82 = vshrl.u32 %v81, 7
    %v83 = vsub.s32 7, %v82
    %v84 = vrot.slane %v51, %v83
    %v97 = vcombine.high %v47, %v47
    %v98 = vcombine.high %v48, %v48
    %v99 = vcombine.high %v49, %v49
    %v100 = vcombine.high %v50, %v50
    %vm101 = vcmask 31744
    %v103 = vsel %vm101, %v39, 0
    %v106 = vsel %vm101, %v40, 0
    %v109 = vsel %vm101, %v41, 0
    %v112 = vsel %vm101, %v42, 0
    %v115 = vsel %vm101, %v43, 0
    %v118 = vsel %vm101, %v44, 0
    %v121 = vsel %vm101, %v45, 0
    %v124 = vsel %vm101, %v46, 0
    %vm126 = vcmask 1043456
    %v127 = vsel %vm126, %v47, 0
    %v129 = vsel %vm126, %v97, 0
    %v131 = vsel %vm126, %v48, 0
    %v133 = vsel %vm126, %v98, 0
    %v135 = vsel %vm126, %v49, 0
    %v137 = vsel %vm126, %v99, 0
    %v139 = vsel %vm126, %v50, 0
    %v141 = vsel %vm126, %v100, 0
    %143 = vmatprep.subr.mxu0 %v129
    %144 = vmatpush1.msra.mxu0 %v127
    %145 = vmatprep.subr.mxu0 0.0
    %146 = vmatpush1.msra.mxu0 0.0
    %147 = vmatprep.subr.mxu0 0.0
    %148 = vmatpush1.msra.mxu0 0.0
    %149 = vmatprep.subr.mxu0 0.0
    %150 = vmatpush1.msra.mxu0 0.0
    %151 = vmatprep.subr.mxu0 0.0
    %152 = vmatpush1.msra.mxu0 0.0
    %153 = vmatprep.subr.mxu0 0.0
    %154 = vmatpush1.msra.mxu0 0.0
    %155 = vmatprep.subr.mxu0 0.0
    %156 = vmatpush1.msra.mxu0 0.0
    %157 = vmatprep.subr.mxu0 0.0
    %158 = vmatpush1.msra.mxu0 0.0
    %159 = vmatprep.subr.mxu0 0.0
    %160 = vmatpush1.msra.mxu0 0.0
    %161 = vmatprep.subr.mxu0 0.0
    %162 = vmatpush1.msra.mxu0 0.0
    %163 = vmatprep.subr.mxu0 0.0
    %164 = vmatpush1.msra.mxu0 0.0
    %165 = vmatprep.subr.mxu0 0.0
    %166 = vmatpush1.msra.mxu0 0.0
    %167 = vmatprep.subr.mxu0 0.0
    %168 = vmatpush1.msra.mxu0 0.0
    %169 = vmatprep.subr.mxu0 0.0
    %170 = vmatpush1.msra.mxu0 0.0
    %171 = vmatprep.subr.mxu0 0.0
    %172 = vmatpush1.msra.mxu0 0.0
    %173 = vmatprep.subr.mxu0 0.0
    %174 = vmatpush1.msra.mxu0 0.0
    %175 = vmatprep.subr.mxu0 0.0
    %176 = vmatpush1.msra.mxu0 0.0
    %177 = vmatprep.subr.mxu0 0.0
    %178 = vmatpush1.msra.mxu0 0.0
    %179 = vmatprep.subr.mxu0 0.0
    %180 = vmatpush1.msra.mxu0 0.0
    %181 = vmatprep.subr.mxu0 0.0
    %182 = vmatpush1.msra.mxu0 0.0
    %183 = vmatprep.subr.mxu0 0.0
    %184 = vmatpush1.msra.mxu0 0.0
    %185 = vmatprep.subr.mxu0 0.0
    %186 = vmatpush1.msra.mxu0 0.0
    %187 = vmatprep.subr.mxu0 0.0
    %188 = vmatpush1.msra.mxu0 0.0
    %189 = vmatprep.subr.mxu0 0.0
    %190 = vmatpush1.msra.mxu0 0.0
    %191 = vmatprep.subr.mxu0 0.0
    %192 = vmatpush1.msra.mxu0 0.0
    %193 = vmatprep.subr.mxu0 0.0
    %194 = vmatpush1.msra.mxu0 0.0
    %195 = vmatprep.subr.mxu0 0.0
    %196 = vmatpush1.msra.mxu0 0.0
    %197 = vmatprep.subr.mxu0 0.0
    %198 = vmatpush1.msra.mxu0 0.0
    %199 = vmatprep.subr.mxu0 0.0
    %200 = vmatpush1.msra.mxu0 0.0
    %201 = vmatprep.subr.mxu0 0.0
    %202 = vmatpush1.msra.mxu0 0.0
    %203 = vmatprep.subr.mxu0 0.0
    %204 = vmatpush1.msra.mxu0 0.0
    %205 = vmatprep.subr.mxu0 0.0
    %206 = vmatpush1.msra.mxu0 0.0
    %207 = vmatprep.mubr.f32.mxu0 0.0
    %208 = vmatmul.mubr.f32.gmra.mrb[0].mxu0 %v103
    %v209 = vpop.f32.mrb[0].mxu0
    %v210 = vadd.f32 %v56, %v209
    %v211 = vpop.f32.mrb[0].mxu0
    %v212 = vadd.f32 %v60, %v211
    %213 = vmatprep.mubr.f32.mxu0 0.0
    %214 = vmatmul.mubr.f32.gmra.mrb[0].mxu0 %v106
    %v215 = vpop.f32.mrb[0].mxu0
    %v216 = vadd.f32 %v56, %v215
    %v217 = vpop.f32.mrb[0].mxu0
    %v218 = vadd.f32 %v60, %v217
    %219 = vmatprep.mubr.f32.mxu0 0.0
    %220 = vmatmul.mubr.f32.gmra.mrb[0].mxu0 %v109
    %v221 = vpop.f32.mrb[0].mxu0
    %v222 = vadd.f32 %v56, %v221
    %v223 = vpop.f32.mrb[0].mxu0
    %v224 = vadd.f32 %v60, %v223
    %225 = vmatprep.mubr.f32.mxu0 0.0
    %226 = vmatmul.mubr.f32.gmra.mrb[0].mxu0 %v112
    %v227 = vpop.f32.mrb[0].mxu0
    %v228 = vadd.f32 %v56, %v227
    %v229 = vpop.f32.mrb[0].mxu0
    %v230 = vadd.f32 %v60, %v229
    %231 = vmatprep.mubr.f32.mxu0 0.0
    %232 = vmatmul.mubr.f32.gmra.mrb[0].mxu0 %v115
    %v233 = vpop.f32.mrb[0].mxu0
    %v234 = vadd.f32 %v56, %v233
    %v235 = vpop.f32.mrb[0].mxu0
    %v236 = vadd.f32 %v60, %v235
    %237 = vmatprep.mubr.f32.mxu0 0.0
    %238 = vmatmul.mubr.f32.gmra.mrb[0].mxu0 %v118
    %v239 = vpop.f32.mrb[0].mxu0
    %v240 = vadd.f32 %v56, %v239
    %v241 = vpop.f32.mrb[0].mxu0
    %v242 = vadd.f32 %v60, %v241
    %243 = vmatprep.mubr.f32.mxu0 0.0
    %244 = vmatmul.mubr.f32.gmra.mrb[0].mxu0 %v121
    %v245 = vpop.f32.mrb[0].mxu0
    %v246 = vadd.f32 %v56, %v245
    %v247 = vpop.f32.mrb[0].mxu0
    %v248 = vadd.f32 %v60, %v247
    %249 = vmatprep.mubr.f32.mxu0 0.0
    %250 = vmatmul.mubr.f32.gmra.mrb[0].mxu0 %v124
    %v251 = vpop.f32.mrb[0].mxu0
    %v252 = vadd.f32 %v56, %v251
    %v253 = vpop.f32.mrb[0].mxu0
    %v254 = vadd.f32 %v60, %v253
    %255 = vdwg.mxu0
    %256 = vmatprep.subr.mxu0 %v133
    %257 = vmatpush1.msra.mxu0 %v131
    %258 = vmatprep.subr.mxu0 0.0
    %259 = vmatpush1.msra.mxu0 0.0
    %260 = vmatprep.subr.mxu0 0.0
    %261 = vmatpush1.msra.mxu0 0.0
    %262 = vmatprep.subr.mxu0 0.0
    %263 = vmatpush1.msra.mxu0 0.0
    %264 = vmatprep.subr.mxu0 0.0
    %265 = vmatpush1.msra.mxu0 0.0
    %266 = vmatprep.subr.mxu0 0.0
    %267 = vmatpush1.msra.mxu0 0.0
    %268 = vmatprep.subr.mxu0 0.0
    %269 = vmatpush1.msra.mxu0 0.0
    %270 = vmatprep.subr.mxu0 0.0
    %271 = vmatpush1.msra.mxu0 0.0
    %272 = vmatprep.subr.mxu0 0.0
    %273 = vmatpush1.msra.mxu0 0.0
    %274 = vmatprep.subr.mxu0 0.0
    %275 = vmatpush1.msra.mxu0 0.0
    %276 = vmatprep.subr.mxu0 0.0
    %277 = vmatpush1.msra.mxu0 0.0
    %278 = vmatprep.subr.mxu0 0.0
    %279 = vmatpush1.msra.mxu0 0.0
    %280 = vmatprep.subr.mxu0 0.0
    %281 = vmatpush1.msra.mxu0 0.0
    %282 = vmatprep.subr.mxu0 0.0
    %283 = vmatpush1.msra.mxu0 0.0
    %284 = vmatprep.subr.mxu0 0.0
    %285 = vmatpush1.msra.mxu0 0.0
    %286 = vmatprep.subr.mxu0 0.0
    %287 = vmatpush1.msra.mxu0 0.0
    %288 = vmatprep.subr.mxu0 0.0
    %289 = vmatpush1.msra.mxu0 0.0
    %290 = vmatprep.subr.mxu0 0.0
    %291 = vmatpush1.msra.mxu0 0.0
    %292 = vmatprep.subr.mxu0 0.0
    %293 = vmatpush1.msra.mxu0 0.0
    %294 = vmatprep.subr.mxu0 0.0
    %295 = vmatpush1.msra.mxu0 0.0
    %296 = vmatprep.subr.mxu0 0.0
    %297 = vmatpush1.msra.mxu0 0.0
    %298 = vmatprep.subr.mxu0 0.0
    %299 = vmatpush1.msra.mxu0 0.0
    %300 = vmatprep.subr.mxu0 0.0
    %301 = vmatpush1.msra.mxu0 0.0
    %302 = vmatprep.subr.mxu0 0.0
    %303 = vmatpush1.msra.mxu0 0.0
    %304 = vmatprep.subr.mxu0 0.0
    %305 = vmatpush1.msra.mxu0 0.0
    %306 = vmatprep.subr.mxu0 0.0
    %307 = vmatpush1.msra.mxu0 0.0
    %308 = vmatprep.subr.mxu0 0.0
    %309 = vmatpush1.msra.mxu0 0.0
    %310 = vmatprep.subr.mxu0 0.0
    %311 = vmatpush1.msra.mxu0 0.0
    %312 = vmatprep.subr.mxu0 0.0
    %313 = vmatpush1.msra.mxu0 0.0
    %314 = vmatprep.subr.mxu0 0.0
    %315 = vmatpush1.msra.mxu0 0.0
    %316 = vmatprep.subr.mxu0 0.0
    %317 = vmatpush1.msra.mxu0 0.0
    %318 = vmatprep.subr.mxu0 0.0
    %319 = vmatpush1.msra.mxu0 0.0
    %320 = vmatprep.mubr.f32.mxu0 0.0
    %321 = vmatmul.mubr.f32.gmra.mrb[0].mxu0 %v103
    %v322 = vpop.f32.mrb[0].mxu0
    %v323 = vadd.f32 %v64, %v322
    %v324 = vpop.f32.mrb[0].mxu0
    %v325 = vadd.f32 %v68, %v324
    %326 = vmatprep.mubr.f32.mxu0 0.0
    %327 = vmatmul.mubr.f32.gmra.mrb[0].mxu0 %v106
    %v328 = vpop.f32.mrb[0].mxu0
    %v329 = vadd.f32 %v64, %v328
    %v330 = vpop.f32.mrb[0].mxu0
    %v331 = vadd.f32 %v68, %v330
    %332 = vmatprep.mubr.f32.mxu0 0.0
    %333 = vmatmul.mubr.f32.gmra.mrb[0].mxu0 %v109
    %v334 = vpop.f32.mrb[0].mxu0
    %v335 = vadd.f32 %v64, %v334
    %v336 = vpop.f32.mrb[0].mxu0
    %v337 = vadd.f32 %v68, %v336
    %338 = vmatprep.mubr.f32.mxu0 0.0
    %339 = vmatmul.mubr.f32.gmra.mrb[0].mxu0 %v112
    %v340 = vpop.f32.mrb[0].mxu0
    %v341 = vadd.f32 %v64, %v340
    %v342 = vpop.f32.mrb[0].mxu0
    %v343 = vadd.f32 %v68, %v342
    %344 = vmatprep.mubr.f32.mxu0 0.0
    %345 = vmatmul.mubr.f32.gmra.mrb[0].mxu0 %v115
    %v346 = vpop.f32.mrb[0].mxu0
    %v347 = vadd.f32 %v64, %v346
    %v348 = vpop.f32.mrb[0].mxu0
    %v349 = vadd.f32 %v68, %v348
    %350 = vmatprep.mubr.f32.mxu0 0.0
    %351 = vmatmul.mubr.f32.gmra.mrb[0].mxu0 %v118
    %v352 = vpop.f32.mrb[0].mxu0
    %v353 = vadd.f32 %v64, %v352
    %v354 = vpop.f32.mrb[0].mxu0
    %v355 = vadd.f32 %v68, %v354
    %356 = vmatprep.mubr.f32.mxu0 0.0
    %357 = vmatmul.mubr.f32.gmra.mrb[0].mxu0 %v121
    %v358 = vpop.f32.mrb[0].mxu0
    %v359 = vadd.f32 %v64, %v358
    %v360 = vpop.f32.mrb[0].mxu0
    %v361 = vadd.f32 %v68, %v360
    %362 = vmatprep.mubr.f32.mxu0 0.0
    %363 = vmatmul.mubr.f32.gmra.mrb[0].mxu0 %v124
    %v364 = vpop.f32.mrb[0].mxu0
    %v365 = vadd.f32 %v64, %v364
    %v366 = vpop.f32.mrb[0].mxu0
    %v367 = vadd.f32 %v68, %v366
    %368 = vdwg.mxu0
    %369 = vmatprep.subr.mxu0 %v137
    %370 = vmatpush1.msra.mxu0 %v135
    %371 = vmatprep.subr.mxu0 0.0
    %372 = vmatpush1.msra.mxu0 0.0
    %373 = vmatprep.subr.mxu0 0.0
    %374 = vmatpush1.msra.mxu0 0.0
    %375 = vmatprep.subr.mxu0 0.0
    %376 = vmatpush1.msra.mxu0 0.0
    %377 = vmatprep.subr.mxu0 0.0
    %378 = vmatpush1.msra.mxu0 0.0
    %379 = vmatprep.subr.mxu0 0.0
    %380 = vmatpush1.msra.mxu0 0.0
    %381 = vmatprep.subr.mxu0 0.0
    %382 = vmatpush1.msra.mxu0 0.0
    %383 = vmatprep.subr.mxu0 0.0
    %384 = vmatpush1.msra.mxu0 0.0
    %385 = vmatprep.subr.mxu0 0.0
    %386 = vmatpush1.msra.mxu0 0.0
    %387 = vmatprep.subr.mxu0 0.0
    %388 = vmatpush1.msra.mxu0 0.0
    %389 = vmatprep.subr.mxu0 0.0
    %390 = vmatpush1.msra.mxu0 0.0
    %391 = vmatprep.subr.mxu0 0.0
    %392 = vmatpush1.msra.mxu0 0.0
    %393 = vmatprep.subr.mxu0 0.0
    %394 = vmatpush1.msra.mxu0 0.0
    %395 = vmatprep.subr.mxu0 0.0
    %396 = vmatpush1.msra.mxu0 0.0
    %397 = vmatprep.subr.mxu0 0.0
    %398 = vmatpush1.msra.mxu0 0.0
    %399 = vmatprep.subr.mxu0 0.0
    %400 = vmatpush1.msra.mxu0 0.0
    %401 = vmatprep.subr.mxu0 0.0
    %402 = vmatpush1.msra.mxu0 0.0
    %403 = vmatprep.subr.mxu0 0.0
    %404 = vmatpush1.msra.mxu0 0.0
    %405 = vmatprep.subr.mxu0 0.0
    %406 = vmatpush1.msra.mxu0 0.0
    %407 = vmatprep.subr.mxu0 0.0
    %408 = vmatpush1.msra.mxu0 0.0
    %409 = vmatprep.subr.mxu0 0.0
    %410 = vmatpush1.msra.mxu0 0.0
    %411 = vmatprep.subr.mxu0 0.0
    %412 = vmatpush1.msra.mxu0 0.0
    %413 = vmatprep.subr.mxu0 0.0
    %414 = vmatpush1.msra.mxu0 0.0
    %415 = vmatprep.subr.mxu0 0.0
    %416 = vmatpush1.msra.mxu0 0.0
    %417 = vmatprep.subr.mxu0 0.0
    %418 = vmatpush1.msra.mxu0 0.0
    %419 = vmatprep.subr.mxu0 0.0
    %420 = vmatpush1.msra.mxu0 0.0
    %421 = vmatprep.subr.mxu0 0.0
    %422 = vmatpush1.msra.mxu0 0.0
    %423 = vmatprep.subr.mxu0 0.0
    %424 = vmatpush1.msra.mxu0 0.0
    %425 = vmatprep.subr.mxu0 0.0
    %426 = vmatpush1.msra.mxu0 0.0
    %427 = vmatprep.subr.mxu0 0.0
    %428 = vmatpush1.msra.mxu0 0.0
    %429 = vmatprep.subr.mxu0 0.0
    %430 = vmatpush1.msra.mxu0 0.0
    %431 = vmatprep.subr.mxu0 0.0
    %432 = vmatpush1.msra.mxu0 0.0
    %433 = vmatprep.mubr.f32.mxu0 0.0
    %434 = vmatmul.mubr.f32.gmra.mrb[0].mxu0 %v103
    %v435 = vpop.f32.mrb[0].mxu0
    %v436 = vadd.f32 %v72, %v435
    %v437 = vpop.f32.mrb[0].mxu0
    %v438 = vadd.f32 %v76, %v437
    %439 = vmatprep.mubr.f32.mxu0 0.0
    %440 = vmatmul.mubr.f32.gmra.mrb[0].mxu0 %v106
    %v441 = vpop.f32.mrb[0].mxu0
    %v442 = vadd.f32 %v72, %v441
    %v443 = vpop.f32.mrb[0].mxu0
    %v444 = vadd.f32 %v76, %v443
    %445 = vmatprep.mubr.f32.mxu0 0.0
    %446 = vmatmul.mubr.f32.gmra.mrb[0].mxu0 %v109
    %v447 = vpop.f32.mrb[0].mxu0
    %v448 = vadd.f32 %v72, %v447
    %v449 = vpop.f32.mrb[0].mxu0
    %v450 = vadd.f32 %v76, %v449
    %451 = vmatprep.mubr.f32.mxu0 0.0
    %452 = vmatmul.mubr.f32.gmra.mrb[0].mxu0 %v112
    %v453 = vpop.f32.mrb[0].mxu0
    %v454 = vadd.f32 %v72, %v453
    %v455 = vpop.f32.mrb[0].mxu0
    %v456 = vadd.f32 %v76, %v455
    %457 = vmatprep.mubr.f32.mxu0 0.0
    %458 = vmatmul.mubr.f32.gmra.mrb[0].mxu0 %v115
    %v459 = vpop.f32.mrb[0].mxu0
    %v460 = vadd.f32 %v72, %v459
    %v461 = vpop.f32.mrb[0].mxu0
    %v462 = vadd.f32 %v76, %v461
    %463 = vmatprep.mubr.f32.mxu0 0.0
    %464 = vmatmul.mubr.f32.gmra.mrb[0].mxu0 %v118
    %v465 = vpop.f32.mrb[0].mxu0
    %v466 = vadd.f32 %v72, %v465
    %v467 = vpop.f32.mrb[0].mxu0
    %v468 = vadd.f32 %v76, %v467
    %469 = vmatprep.mubr.f32.mxu0 0.0
    %470 = vmatmul.mubr.f32.gmra.mrb[0].mxu0 %v121
    %v471 = vpop.f32.mrb[0].mxu0
    %v472 = vadd.f32 %v72, %v471
    %v473 = vpop.f32.mrb[0].mxu0
    %v474 = vadd.f32 %v76, %v473
    %475 = vmatprep.mubr.f32.mxu0 0.0
    %476 = vmatmul.mubr.f32.gmra.mrb[0].mxu0 %v124
    %v477 = vpop.f32.mrb[0].mxu0
    %v478 = vadd.f32 %v72, %v477
    %v479 = vpop.f32.mrb[0].mxu0
    %v480 = vadd.f32 %v76, %v479
    %481 = vdwg.mxu0
    %482 = vmatprep.subr.mxu0 %v141
    %483 = vmatpush1.msra.mxu0 %v139
    %484 = vmatprep.subr.mxu0 0.0
    %485 = vmatpush1.msra.mxu0 0.0
    %486 = vmatprep.subr.mxu0 0.0
    %487 = vmatpush1.msra.mxu0 0.0
    %488 = vmatprep.subr.mxu0 0.0
    %489 = vmatpush1.msra.mxu0 0.0
    %490 = vmatprep.subr.mxu0 0.0
    %491 = vmatpush1.msra.mxu0 0.0
    %492 = vmatprep.subr.mxu0 0.0
    %493 = vmatpush1.msra.mxu0 0.0
    %494 = vmatprep.subr.mxu0 0.0
    %495 = vmatpush1.msra.mxu0 0.0
    %496 = vmatprep.subr.mxu0 0.0
    %497 = vmatpush1.msra.mxu0 0.0
    %498 = vmatprep.subr.mxu0 0.0
    %499 = vmatpush1.msra.mxu0 0.0
    %500 = vmatprep.subr.mxu0 0.0
    %501 = vmatpush1.msra.mxu0 0.0
    %502 = vmatprep.subr.mxu0 0.0
    %503 = vmatpush1.msra.mxu0 0.0
    %504 = vmatprep.subr.mxu0 0.0
    %505 = vmatpush1.msra.mxu0 0.0
    %506 = vmatprep.subr.mxu0 0.0
    %507 = vmatpush1.msra.mxu0 0.0
    %508 = vmatprep.subr.mxu0 0.0
    %509 = vmatpush1.msra.mxu0 0.0
    %510 = vmatprep.subr.mxu0 0.0
    %511 = vmatpush1.msra.mxu0 0.0
    %512 = vmatprep.subr.mxu0 0.0
    %513 = vmatpush1.msra.mxu0 0.0
    %514 = vmatprep.subr.mxu0 0.0
    %515 = vmatpush1.msra.mxu0 0.0
    %516 = vmatprep.subr.mxu0 0.0
    %517 = vmatpush1.msra.mxu0 0.0
    %518 = vmatprep.subr.mxu0 0.0
    %519 = vmatpush1.msra.mxu0 0.0
    %520 = vmatprep.subr.mxu0 0.0
    %521 = vmatpush1.msra.mxu0 0.0
    %522 = vmatprep.subr.mxu0 0.0
    %523 = vmatpush1.msra.mxu0 0.0
    %524 = vmatprep.subr.mxu0 0.0
    %525 = vmatpush1.msra.mxu0 0.0
    %526 = vmatprep.subr.mxu0 0.0
    %527 = vmatpush1.msra.mxu0 0.0
    %528 = vmatprep.subr.mxu0 0.0
    %529 = vmatpush1.msra.mxu0 0.0
    %530 = vmatprep.subr.mxu0 0.0
    %531 = vmatpush1.msra.mxu0 0.0
    %532 = vmatprep.subr.mxu0 0.0
    %533 = vmatpush1.msra.mxu0 0.0
    %534 = vmatprep.subr.mxu0 0.0
    %535 = vmatpush1.msra.mxu0 0.0
    %536 = vmatprep.subr.mxu0 0.0
    %537 = vmatpush1.msra.mxu0 0.0
    %538 = vmatprep.subr.mxu0 0.0
    %539 = vmatpush1.msra.mxu0 0.0
    %540 = vmatprep.subr.mxu0 0.0
    %541 = vmatpush1.msra.mxu0 0.0
    %542 = vmatprep.subr.mxu0 0.0
    %543 = vmatpush1.msra.mxu0 0.0
    %544 = vmatprep.subr.mxu0 0.0
    %545 = vmatpush1.msra.mxu0 0.0
    %546 = vmatprep.mubr.f32.mxu0 0.0
    %547 = vmatmul.mubr.f32.gmra.mrb[0].mxu0 %v103
    %v548 = vpop.f32.mrb[0].mxu0
    %v549 = vadd.f32 %v80, %v548
    %v550 = vpop.f32.mrb[0].mxu0
    %v551 = vadd.f32 %v84, %v550
    %552 = vmatprep.mubr.f32.mxu0 0.0
    %553 = vmatmul.mubr.f32.gmra.mrb[0].mxu0 %v106
    %v554 = vpop.f32.mrb[0].mxu0
    %v555 = vadd.f32 %v80, %v554
    %v556 = vpop.f32.mrb[0].mxu0
    %v557 = vadd.f32 %v84, %v556
    %558 = vmatprep.mubr.f32.mxu0 0.0
    %559 = vmatmul.mubr.f32.gmra.mrb[0].mxu0 %v109
    %v560 = vpop.f32.mrb[0].mxu0
    %v561 = vadd.f32 %v80, %v560
    %v562 = vpop.f32.mrb[0].mxu0
    %v563 = vadd.f32 %v84, %v562
    %564 = vmatprep.mubr.f32.mxu0 0.0
    %565 = vmatmul.mubr.f32.gmra.mrb[0].mxu0 %v112
    %v566 = vpop.f32.mrb[0].mxu0
    %v567 = vadd.f32 %v80, %v566
    %v568 = vpop.f32.mrb[0].mxu0
    %v569 = vadd.f32 %v84, %v568
    %570 = vmatprep.mubr.f32.mxu0 0.0
    %571 = vmatmul.mubr.f32.gmra.mrb[0].mxu0 %v115
    %v572 = vpop.f32.mrb[0].mxu0
    %v573 = vadd.f32 %v80, %v572
    %v574 = vpop.f32.mrb[0].mxu0
    %v575 = vadd.f32 %v84, %v574
    %576 = vmatprep.mubr.f32.mxu0 0.0
    %577 = vmatmul.mubr.f32.gmra.mrb[0].mxu0 %v118
    %v578 = vpop.f32.mrb[0].mxu0
    %v579 = vadd.f32 %v80, %v578
    %v580 = vpop.f32.mrb[0].mxu0
    %v581 = vadd.f32 %v84, %v580
    %582 = vmatprep.mubr.f32.mxu0 0.0
    %583 = vmatmul.mubr.f32.gmra.mrb[0].mxu0 %v121
    %v584 = vpop.f32.mrb[0].mxu0
    %v585 = vadd.f32 %v80, %v584
    %v586 = vpop.f32.mrb[0].mxu0
    %v587 = vadd.f32 %v84, %v586
    %588 = vmatprep.mubr.f32.mxu0 0.0
    %589 = vmatmul.mubr.f32.gmra.mrb[0].mxu0 %v124
    %v590 = vpop.f32.mrb[0].mxu0
    %v591 = vadd.f32 %v80, %v590
    %v592 = vpop.f32.mrb[0].mxu0
    %v593 = vadd.f32 %v84, %v592
    %594 = vdwg.mxu0
    %595 = vst [vmem:[#allocation2] sm:$0xff] %v210
    %596 = vst [vmem:[#allocation2 + $0x8] sm:$0xff] %v212
    %597 = vst [vmem:[#allocation2 + $0x10] sm:$0xff] %v323
    %598 = vst [vmem:[#allocation2 + $0x18] sm:$0xff] %v325
    %599 = vst [vmem:[#allocation2 + $0x20] sm:$0xff] %v436
    %600 = vst [vmem:[#allocation2 + $0x28] sm:$0xff] %v438
    %601 = vst [vmem:[#allocation2 + $0x30] sm:$0xff] %v549
    %602 = vst [vmem:[#allocation2 + $0x38] sm:$0xff] %v551
    %603 = vst [vmem:[#allocation2 + $0x40] sm:$0xff] %v216
    %604 = vst [vmem:[#allocation2 + $0x48] sm:$0xff] %v218
    %605 = vst [vmem:[#allocation2 + $0x50] sm:$0xff] %v329
    %606 = vst [vmem:[#allocation2 + $0x58] sm:$0xff] %v331
    %607 = vst [vmem:[#allocation2 + $0x60] sm:$0xff] %v442
    %608 = vst [vmem:[#allocation2 + $0x68] sm:$0xff] %v444
    %609 = vst [vmem:[#allocation2 + $0x70] sm:$0xff] %v555
    %610 = vst [vmem:[#allocation2 + $0x78] sm:$0xff] %v557
    %611 = vst [vmem:[#allocation2 + $0x80] sm:$0xff] %v222
    %612 = vst [vmem:[#allocation2 + $0x88] sm:$0xff] %v224
    %613 = vst [vmem:[#allocation2 + $0x90] sm:$0xff] %v335
    %614 = vst [vmem:[#allocation2 + $0x98] sm:$0xff] %v337
    %615 = vst [vmem:[#allocation2 + $0xa0] sm:$0xff] %v448
    %616 = vst [vmem:[#allocation2 + $0xa8] sm:$0xff] %v450
    %617 = vst [vmem:[#allocation2 + $0xb0] sm:$0xff] %v561
    %618 = vst [vmem:[#allocation2 + $0xb8] sm:$0xff] %v563
    %619 = vst [vmem:[#allocation2 + $0xc0] sm:$0xff] %v228
    %620 = vst [vmem:[#allocation2 + $0xc8] sm:$0xff] %v230
    %621 = vst [vmem:[#allocation2 + $0xd0] sm:$0xff] %v341
    %622 = vst [vmem:[#allocation2 + $0xd8] sm:$0xff] %v343
    %623 = vst [vmem:[#allocation2 + $0xe0] sm:$0xff] %v454
    %624 = vst [vmem:[#allocation2 + $0xe8] sm:$0xff] %v456
    %625 = vst [vmem:[#allocation2 + $0xf0] sm:$0xff] %v567
    %626 = vst [vmem:[#allocation2 + $0xf8] sm:$0xff] %v569
    %627 = vst [vmem:[#allocation2 + $0x100] sm:$0xff] %v234
    %628 = vst [vmem:[#allocation2 + $0x108] sm:$0xff] %v236
    %629 = vst [vmem:[#allocation2 + $0x110] sm:$0xff] %v347
    %630 = vst [vmem:[#allocation2 + $0x118] sm:$0xff] %v349
    %631 = vst [vmem:[#allocation2 + $0x120] sm:$0xff] %v460
    %632 = vst [vmem:[#allocation2 + $0x128] sm:$0xff] %v462
    %633 = vst [vmem:[#allocation2 + $0x130] sm:$0xff] %v573
    %634 = vst [vmem:[#allocation2 + $0x138] sm:$0xff] %v575
    %635 = vst [vmem:[#allocation2 + $0x140] sm:$0xff] %v240
    %636 = vst [vmem:[#allocation2 + $0x148] sm:$0xff] %v242
    %637 = vst [vmem:[#allocation2 + $0x150] sm:$0xff] %v353
    %638 = vst [vmem:[#allocation2 + $0x158] sm:$0xff] %v355
    %639 = vst [vmem:[#allocation2 + $0x160] sm:$0xff] %v466
    %640 = vst [vmem:[#allocation2 + $0x168] sm:$0xff] %v468
    %641 = vst [vmem:[#allocation2 + $0x170] sm:$0xff] %v579
    %642 = vst [vmem:[#allocation2 + $0x178] sm:$0xff] %v581
    %643 = vst [vmem:[#allocation2 + $0x180] sm:$0xff] %v246
    %644 = vst [vmem:[#allocation2 + $0x188] sm:$0xff] %v248
    %645 = vst [vmem:[#allocation2 + $0x190] sm:$0xff] %v359
    %646 = vst [vmem:[#allocation2 + $0x198] sm:$0xff] %v361
    %647 = vst [vmem:[#allocation2 + $0x1a0] sm:$0xff] %v472
    %648 = vst [vmem:[#allocation2 + $0x1a8] sm:$0xff] %v474
    %649 = vst [vmem:[#allocation2 + $0x1b0] sm:$0xff] %v585
    %650 = vst [vmem:[#allocation2 + $0x1b8] sm:$0xff] %v587
    %651 = vst [vmem:[#allocation2 + $0x1c0] sm:$0xff] %v252
    %652 = vst [vmem:[#allocation2 + $0x1c8] sm:$0xff] %v254
    %653 = vst [vmem:[#allocation2 + $0x1d0] sm:$0xff] %v365
    %654 = vst [vmem:[#allocation2 + $0x1d8] sm:$0xff] %v367
    %655 = vst [vmem:[#allocation2 + $0x1e0] sm:$0xff] %v478
    %656 = vst [vmem:[#allocation2 + $0x1e8] sm:$0xff] %v480
    %657 = vst [vmem:[#allocation2 + $0x1f0] sm:$0xff] %v591
    %658 = vst [vmem:[#allocation2 + $0x1f8] sm:$0xff] %v593
    %v659 = vld [vmem:[#allocation4] sm:$0xff]
    %v660 = vld [vmem:[#allocation4 + $0x8] sm:$0xff]
    %v661 = vld [vmem:[#allocation4 + $0x10] sm:$0xff]
    %v662 = vld [vmem:[#allocation4 + $0x18] sm:$0xff]
    %v663 = vld [vmem:[#allocation4 + $0x20] sm:$0xff]
    %v664 = vld [vmem:[#allocation4 + $0x28] sm:$0xff]
    %v665 = vld [vmem:[#allocation4 + $0x30] sm:$0xff]
    %v666 = vld [vmem:[#allocation4 + $0x38] sm:$0xff]
    %v667 = vld [vmem:[#allocation4 + $0x40] sm:$0xff]
    %v668 = vld [vmem:[#allocation4 + $0x48] sm:$0xff]
    %v669 = vld [vmem:[#allocation4 + $0x50] sm:$0xff]
    %v670 = vld [vmem:[#allocation4 + $0x58] sm:$0xff]
    %v671 = vld [vmem:[#allocation4 + $0x60] sm:$0xff]
    %v672 = vld [vmem:[#allocation4 + $0x68] sm:$0xff]
    %v673 = vld [vmem:[#allocation4 + $0x70] sm:$0xff]
    %v674 = vld [vmem:[#allocation4 + $0x78] sm:$0xff]
    %v675 = vld [vmem:[#allocation4 + $0x80] sm:$0xff]
    %v676 = vld [vmem:[#allocation4 + $0x88] sm:$0xff]
    %v677 = vld [vmem:[#allocation4 + $0x90] sm:$0xff]
    %v678 = vld [vmem:[#allocation4 + $0x98] sm:$0xff]
    %v679 = vld [vmem:[#allocation4 + $0xa0] sm:$0xff]
    %v680 = vld [vmem:[#allocation4 + $0xa8] sm:$0xff]
    %v681 = vld [vmem:[#allocation4 + $0xb0] sm:$0xff]
    %v682 = vld [vmem:[#allocation4 + $0xb8] sm:$0xff]
    %v683 = vld [vmem:[#allocation4 + $0xc0] sm:$0xff]
    %v684 = vld [vmem:[#allocation4 + $0xc8] sm:$0xff]
    %v685 = vld [vmem:[#allocation4 + $0xd0] sm:$0xff]
    %v686 = vld [vmem:[#allocation4 + $0xd8] sm:$0xff]
    %v687 = vld [vmem:[#allocation4 + $0xe0] sm:$0xff]
    %v688 = vld [vmem:[#allocation4 + $0xe8] sm:$0xff]
    %v689 = vld [vmem:[#allocation4 + $0xf0] sm:$0xff]
    %v690 = vld [vmem:[#allocation4 + $0xf8] sm:$0xff]
    %v691 = vld [vmem:[#allocation4 + $0x100] sm:$0xff]
    %v692 = vld [vmem:[#allocation4 + $0x108] sm:$0xff]
    %v693 = vld [vmem:[#allocation4 + $0x110] sm:$0xff]
    %v694 = vld [vmem:[#allocation4 + $0x118] sm:$0xff]
    %v695 = vld [vmem:[#allocation4 + $0x120] sm:$0xff]
    %v696 = vld [vmem:[#allocation4 + $0x128] sm:$0xff]
    %v697 = vld [vmem:[#allocation4 + $0x130] sm:$0xff]
    %v698 = vld [vmem:[#allocation4 + $0x138] sm:$0xff]
    %v699 = vld [vmem:[#allocation4 + $0x140] sm:$0xff]
    %v700 = vld [vmem:[#allocation4 + $0x148] sm:$0xff]
    %v701 = vld [vmem:[#allocation4 + $0x150] sm:$0xff]
    %v702 = vld [vmem:[#allocation4 + $0x158] sm:$0xff]
    %v703 = vld [vmem:[#allocation4 + $0x160] sm:$0xff]
    %v704 = vld [vmem:[#allocation4 + $0x168] sm:$0xff]
    %v705 = vld [vmem:[#allocation4 + $0x170] sm:$0xff]
    %v706 = vld [vmem:[#allocation4 + $0x178] sm:$0xff]
    %v707 = vld [vmem:[#allocation4 + $0x180] sm:$0xff]
    %v708 = vld [vmem:[#allocation4 + $0x188] sm:$0xff]
    %v709 = vld [vmem:[#allocation4 + $0x190] sm:$0xff]
    %v710 = vld [vmem:[#allocation4 + $0x198] sm:$0xff]
    %v711 = vld [vmem:[#allocation4 + $0x1a0] sm:$0xff]
    %v712 = vld [vmem:[#allocation4 + $0x1a8] sm:$0xff]
    %v713 = vld [vmem:[#allocation4 + $0x1b0] sm:$0xff]
    %v714 = vld [vmem:[#allocation4 + $0x1b8] sm:$0xff]
    %v715 = vld [vmem:[#allocation4 + $0x1c0] sm:$0xff]
    %v716 = vld [vmem:[#allocation4 + $0x1c8] sm:$0xff]
    %v717 = vld [vmem:[#allocation4 + $0x1d0] sm:$0xff]
    %v718 = vld [vmem:[#allocation4 + $0x1d8] sm:$0xff]
    %v719 = vld [vmem:[#allocation4 + $0x1e0] sm:$0xff]
    %v720 = vld [vmem:[#allocation4 + $0x1e8] sm:$0xff]
    %v721 = vld [vmem:[#allocation4 + $0x1f0] sm:$0xff]
    %v722 = vld [vmem:[#allocation4 + $0x1f8] sm:$0xff]
    %v723 = vld [vmem:[#allocation4 + $0x200] sm:$0xff]
    %v724 = vld [vmem:[#allocation4 + $0x208] sm:$0xff]
    %v725 = vld [vmem:[#allocation4 + $0x210] sm:$0xff]
    %v726 = vld [vmem:[#allocation4 + $0x218] sm:$0xff]
    %v727 = vld [vmem:[#allocation4 + $0x220] sm:$0xff]
    %v728 = vld [vmem:[#allocation4 + $0x228] sm:$0xff]
    %v729 = vld [vmem:[#allocation4 + $0x230] sm:$0xff]
    %v730 = vld [vmem:[#allocation4 + $0x238] sm:$0xff]
    %v731 = vld [vmem:[#allocation4 + $0x240] sm:$0xff]
    %v732 = vld [vmem:[#allocation4 + $0x248] sm:$0xff]
    %v733 = vld [vmem:[#allocation4 + $0x250] sm:$0xff]
    %v734 = vld [vmem:[#allocation4 + $0x258] sm:$0xff]
    %v735 = vld [vmem:[#allocation4 + $0x260] sm:$0xff]
    %v736 = vld [vmem:[#allocation4 + $0x268] sm:$0xff]
    %v737 = vld [vmem:[#allocation4 + $0x270] sm:$0xff]
    %v738 = vld [vmem:[#allocation4 + $0x278] sm:$0xff]
    %v739 = vld [vmem:[#allocation4 + $0x280] sm:$0xff]
    %v740 = vld [vmem:[#allocation4 + $0x288] sm:$0xff]
    %v741 = vld [vmem:[#allocation4 + $0x290] sm:$0xff]
    %v742 = vld [vmem:[#allocation4 + $0x298] sm:$0xff]
    %v743 = vld [vmem:[#allocation4 + $0x2a0] sm:$0xff]
    %v744 = vld [vmem:[#allocation4 + $0x2a8] sm:$0xff]
    %v745 = vld [vmem:[#allocation4 + $0x2b0] sm:$0xff]
    %v746 = vld [vmem:[#allocation4 + $0x2b8] sm:$0xff]
    %v747 = vld [vmem:[#allocation4 + $0x2c0] sm:$0xff]
    %v748 = vld [vmem:[#allocation4 + $0x2c8] sm:$0xff]
    %v749 = vld [vmem:[#allocation4 + $0x2d0] sm:$0xff]
    %v750 = vld [vmem:[#allocation4 + $0x2d8] sm:$0xff]
    %v751 = vld [vmem:[#allocation4 + $0x2e0] sm:$0xff]
    %v752 = vld [vmem:[#allocation4 + $0x2e8] sm:$0xff]
    %v753 = vld [vmem:[#allocation4 + $0x2f0] sm:$0xff]
    %v754 = vld [vmem:[#allocation4 + $0x2f8] sm:$0xff]
    %v755 = vld [vmem:[#allocation4 + $0x300] sm:$0xff]
    %v756 = vld [vmem:[#allocation4 + $0x308] sm:$0xff]
    %v757 = vld [vmem:[#allocation4 + $0x310] sm:$0xff]
    %v758 = vld [vmem:[#allocation4 + $0x318] sm:$0xff]
    %v759 = vld [vmem:[#allocation4 + $0x320] sm:$0xff]
    %v760 = vld [vmem:[#allocation4 + $0x328] sm:$0xff]
    %v761 = vld [vmem:[#allocation4 + $0x330] sm:$0xff]
    %v762 = vld [vmem:[#allocation4 + $0x338] sm:$0xff]
    %v763 = vld [vmem:[#allocation4 + $0x340] sm:$0xff]
    %v764 = vld [vmem:[#allocation4 + $0x348] sm:$0xff]
    %v765 = vld [vmem:[#allocation4 + $0x350] sm:$0xff]
    %v766 = vld [vmem:[#allocation4 + $0x358] sm:$0xff]
    %v767 = vld [vmem:[#allocation4 + $0x360] sm:$0xff]
    %v768 = vld [vmem:[#allocation4 + $0x368] sm:$0xff]
    %v769 = vld [vmem:[#allocation4 + $0x370] sm:$0xff]
    %v770 = vld [vmem:[#allocation4 + $0x378] sm:$0xff]
    %v771 = vld [vmem:[#allocation4 + $0x380] sm:$0xff]
    %v772 = vld [vmem:[#allocation4 + $0x388] sm:$0xff]
    %v773 = vld [vmem:[#allocation4 + $0x390] sm:$0xff]
    %v774 = vld [vmem:[#allocation4 + $0x398] sm:$0xff]
    %v775 = vld [vmem:[#allocation4 + $0x3a0] sm:$0xff]
    %v776 = vld [vmem:[#allocation4 + $0x3a8] sm:$0xff]
    %v777 = vld [vmem:[#allocation4 + $0x3b0] sm:$0xff]
    %v778 = vld [vmem:[#allocation4 + $0x3b8] sm:$0xff]
    %v779 = vld [vmem:[#allocation4 + $0x3c0] sm:$0xff]
    %v780 = vld [vmem:[#allocation4 + $0x3c8] sm:$0xff]
    %v781 = vld [vmem:[#allocation4 + $0x3d0] sm:$0xff]
    %v782 = vld [vmem:[#allocation4 + $0x3d8] sm:$0xff]
    %v783 = vld [vmem:[#allocation4 + $0x3e0] sm:$0xff]
    %v784 = vld [vmem:[#allocation4 + $0x3e8] sm:$0xff]
    %v785 = vld [vmem:[#allocation4 + $0x3f0] sm:$0xff]
    %v786 = vld [vmem:[#allocation4 + $0x3f8] sm:$0xff]
    %v787 = vld [vmem:[#allocation4 + $0x400] sm:$0xff]
    %v788 = vld [vmem:[#allocation4 + $0x408] sm:$0xff]
    %v789 = vld [vmem:[#allocation4 + $0x410] sm:$0xff]
    %v790 = vld [vmem:[#allocation4 + $0x418] sm:$0xff]
    %v791 = vld [vmem:[#allocation4 + $0x420] sm:$0xff]
    %v792 = vld [vmem:[#allocation4 + $0x428] sm:$0xff]
    %v793 = vld [vmem:[#allocation4 + $0x430] sm:$0xff]
    %v794 = vld [vmem:[#allocation4 + $0x438] sm:$0xff]
    %v795 = vld [vmem:[#allocation4 + $0x440] sm:$0xff]
    %v796 = vld [vmem:[#allocation4 + $0x448] sm:$0xff]
    %v797 = vld [vmem:[#allocation4 + $0x450] sm:$0xff]
    %v798 = vld [vmem:[#allocation4 + $0x458] sm:$0xff]
    %v799 = vld [vmem:[#allocation4 + $0x460] sm:$0xff]
    %v800 = vld [vmem:[#allocation4 + $0x468] sm:$0xff]
    %v801 = vld [vmem:[#allocation4 + $0x470] sm:$0xff]
    %v802 = vld [vmem:[#allocation4 + $0x478] sm:$0xff]
    %v803 = vld [vmem:[#allocation4 + $0x480] sm:$0xff]
    %v804 = vld [vmem:[#allocation4 + $0x488] sm:$0xff]
    %v805 = vld [vmem:[#allocation4 + $0x490] sm:$0xff]
    %v806 = vld [vmem:[#allocation4 + $0x498] sm:$0xff]
    %v807 = vld [vmem:[#allocation4 + $0x4a0] sm:$0xff]
    %v808 = vld [vmem:[#allocation4 + $0x4a8] sm:$0xff]
    %v809 = vld [vmem:[#allocation4 + $0x4b0] sm:$0xff]
    %v810 = vld [vmem:[#allocation4 + $0x4b8] sm:$0xff]
    %v811 = vld [vmem:[#allocation4 + $0x4c0] sm:$0xff]
    %v812 = vld [vmem:[#allocation4 + $0x4c8] sm:$0xff]
    %v813 = vld [vmem:[#allocation4 + $0x4d0] sm:$0xff]
    %v814 = vld [vmem:[#allocation4 + $0x4d8] sm:$0xff]
    %v815 = vld [vmem:[#allocation4 + $0x4e0] sm:$0xff]
    %v816 = vld [vmem:[#allocation4 + $0x4e8] sm:$0xff]
    %v817 = vld [vmem:[#allocation4 + $0x4f0] sm:$0xff]
    %v818 = vld [vmem:[#allocation4 + $0x4f8] sm:$0xff]
    %v819 = vld [vmem:[#allocation4 + $0x500] sm:$0xff]
    %v820 = vld [vmem:[#allocation4 + $0x508] sm:$0xff]
    %v821 = vld [vmem:[#allocation4 + $0x510] sm:$0xff]
    %v822 = vld [vmem:[#allocation4 + $0x518] sm:$0xff]
    %v823 = vld [vmem:[#allocation4 + $0x520] sm:$0xff]
    %v824 = vld [vmem:[#allocation4 + $0x528] sm:$0xff]
    %v825 = vld [vmem:[#allocation4 + $0x530] sm:$0xff]
    %v826 = vld [vmem:[#allocation4 + $0x538] sm:$0xff]
    %v827 = vld [vmem:[#allocation4 + $0x540] sm:$0xff]
    %v828 = vld [vmem:[#allocation4 + $0x548] sm:$0xff]
    %v829 = vld [vmem:[#allocation4 + $0x550] sm:$0xff]
    %v830 = vld [vmem:[#allocation4 + $0x558] sm:$0xff]
    %v831 = vld [vmem:[#allocation4 + $0x560] sm:$0xff]
    %v832 = vld [vmem:[#allocation4 + $0x568] sm:$0xff]
    %v833 = vld [vmem:[#allocation4 + $0x570] sm:$0xff]
    %v834 = vld [vmem:[#allocation4 + $0x578] sm:$0xff]
    %v835 = vld [vmem:[#allocation4 + $0x580] sm:$0xff]
    %v836 = vld [vmem:[#allocation4 + $0x588] sm:$0xff]
    %v837 = vld [vmem:[#allocation4 + $0x590] sm:$0xff]
    %v838 = vld [vmem:[#allocation4 + $0x598] sm:$0xff]
    %v839 = vld [vmem:[#allocation4 + $0x5a0] sm:$0xff]
    %v840 = vld [vmem:[#allocation4 + $0x5a8] sm:$0xff]
    %v841 = vld [vmem:[#allocation4 + $0x5b0] sm:$0xff]
    %v842 = vld [vmem:[#allocation4 + $0x5b8] sm:$0xff]
    %v843 = vld [vmem:[#allocation4 + $0x5c0] sm:$0xff]
    %v844 = vld [vmem:[#allocation4 + $0x5c8] sm:$0xff]
    %v845 = vld [vmem:[#allocation4 + $0x5d0] sm:$0xff]
    %v846 = vld [vmem:[#allocation4 + $0x5d8] sm:$0xff]
    %v847 = vld [vmem:[#allocation4 + $0x5e0] sm:$0xff]
    %v848 = vld [vmem:[#allocation4 + $0x5e8] sm:$0xff]
    %v849 = vld [vmem:[#allocation4 + $0x5f0] sm:$0xff]
    %v850 = vld [vmem:[#allocation4 + $0x5f8] sm:$0xff]
    %v851 = vld [vmem:[#allocation4 + $0x600] sm:$0xff]
    %v852 = vld [vmem:[#allocation4 + $0x608] sm:$0xff]
    %v853 = vld [vmem:[#allocation4 + $0x610] sm:$0xff]
    %v854 = vld [vmem:[#allocation4 + $0x618] sm:$0xff]
    %v855 = vld [vmem:[#allocation4 + $0x620] sm:$0xff]
    %v856 = vld [vmem:[#allocation4 + $0x628] sm:$0xff]
    %v857 = vld [vmem:[#allocation4 + $0x630] sm:$0xff]
    %v858 = vld [vmem:[#allocation4 + $0x638] sm:$0xff]
    %v859 = vld [vmem:[#allocation4 + $0x640] sm:$0xff]
    %v860 = vld [vmem:[#allocation4 + $0x648] sm:$0xff]
    %v861 = vld [vmem:[#allocation4 + $0x650] sm:$0xff]
    %v862 = vld [vmem:[#allocation4 + $0x658] sm:$0xff]
    %v863 = vld [vmem:[#allocation4 + $0x660] sm:$0xff]
    %v864 = vld [vmem:[#allocation4 + $0x668] sm:$0xff]
    %v865 = vld [vmem:[#allocation4 + $0x670] sm:$0xff]
    %v866 = vld [vmem:[#allocation4 + $0x678] sm:$0xff]
    %v867 = vld [vmem:[#allocation4 + $0x680] sm:$0xff]
    %v868 = vld [vmem:[#allocation4 + $0x688] sm:$0xff]
    %v869 = vld [vmem:[#allocation4 + $0x690] sm:$0xff]
    %v870 = vld [vmem:[#allocation4 + $0x698] sm:$0xff]
    %v871 = vld [vmem:[#allocation4 + $0x6a0] sm:$0xff]
    %v872 = vld [vmem:[#allocation4 + $0x6a8] sm:$0xff]
    %v873 = vld [vmem:[#allocation4 + $0x6b0] sm:$0xff]
    %v874 = vld [vmem:[#allocation4 + $0x6b8] sm:$0xff]
    %v875 = vld [vmem:[#allocation4 + $0x6c0] sm:$0xff]
    %v876 = vld [vmem:[#allocation4 + $0x6c8] sm:$0xff]
    %v877 = vld [vmem:[#allocation4 + $0x6d0] sm:$0xff]
    %v878 = vld [vmem:[#allocation4 + $0x6d8] sm:$0xff]
    %v879 = vld [vmem:[#allocation4 + $0x6e0] sm:$0xff]
    %v880 = vld [vmem:[#allocation4 + $0x6e8] sm:$0xff]
    %v881 = vld [vmem:[#allocation4 + $0x6f0] sm:$0xff]
    %v882 = vld [vmem:[#allocation4 + $0x6f8] sm:$0xff]
    %v883 = vld [vmem:[#allocation4 + $0x700] sm:$0xff]
    %v884 = vld [vmem:[#allocation4 + $0x708] sm:$0xff]
    %v885 = vld [vmem:[#allocation4 + $0x710] sm:$0xff]
    %v886 = vld [vmem:[#allocation4 + $0x718] sm:$0xff]
    %v887 = vld [vmem:[#allocation4 + $0x720] sm:$0xff]
    %v888 = vld [vmem:[#allocation4 + $0x728] sm:$0xff]
    %v889 = vld [vmem:[#allocation4 + $0x730] sm:$0xff]
    %v890 = vld [vmem:[#allocation4 + $0x738] sm:$0xff]
    %v891 = vld [vmem:[#allocation4 + $0x740] sm:$0xff]
    %v892 = vld [vmem:[#allocation4 + $0x748] sm:$0xff]
    %v893 = vld [vmem:[#allocation4 + $0x750] sm:$0xff]
    %v894 = vld [vmem:[#allocation4 + $0x758] sm:$0xff]
    %v895 = vld [vmem:[#allocation4 + $0x760] sm:$0xff]
    %v896 = vld [vmem:[#allocation4 + $0x768] sm:$0xff]
    %v897 = vld [vmem:[#allocation4 + $0x770] sm:$0xff]
    %v898 = vld [vmem:[#allocation4 + $0x778] sm:$0xff]
    %v899 = vld [vmem:[#allocation4 + $0x780] sm:$0xff]
    %v900 = vld [vmem:[#allocation4 + $0x788] sm:$0xff]
    %v901 = vld [vmem:[#allocation4 + $0x790] sm:$0xff]
    %v902 = vld [vmem:[#allocation4 + $0x798] sm:$0xff]
    %v903 = vld [vmem:[#allocation4 + $0x7a0] sm:$0xff]
    %v904 = vld [vmem:[#allocation4 + $0x7a8] sm:$0xff]
    %v905 = vld [vmem:[#allocation4 + $0x7b0] sm:$0xff]
    %v906 = vld [vmem:[#allocation4 + $0x7b8] sm:$0xff]
    %v907 = vld [vmem:[#allocation4 + $0x7c0] sm:$0xff]
    %v908 = vld [vmem:[#allocation4 + $0x7c8] sm:$0xff]
    %v909 = vld [vmem:[#allocation4 + $0x7d0] sm:$0xff]
    %v910 = vld [vmem:[#allocation4 + $0x7d8] sm:$0xff]
    %v911 = vld [vmem:[#allocation4 + $0x7e0] sm:$0xff]
    %v912 = vld [vmem:[#allocation4 + $0x7e8] sm:$0xff]
    %v913 = vld [vmem:[#allocation4 + $0x7f0] sm:$0xff]
    %v914 = vld [vmem:[#allocation4 + $0x7f8] sm:$0xff]
    %s915 = smul.u32 0, 8
    %s916 = smul.addr %s915, 8
    %s917 = scalar_lea.vmem [#allocation2], %s916
    %v918 = vld [vmem:[%s917] sm:$0xff]
    %v919 = vld [vmem:[%s917 + $0x8] sm:$0xff]
    %v920 = vld [vmem:[%s917 + $0x10] sm:$0xff]
    %v921 = vld [vmem:[%s917 + $0x18] sm:$0xff]
    %v922 = vld [vmem:[%s917 + $0x20] sm:$0xff]
    %v923 = vld [vmem:[%s917 + $0x28] sm:$0xff]
    %v924 = vld [vmem:[%s917 + $0x30] sm:$0xff]
    %v925 = vld [vmem:[%s917 + $0x38] sm:$0xff]
    %926 = vmatprep.subr.mxu0 %v660
    %927 = vmatpush1.msra.mxu0 %v659
    %928 = vmatprep.subr.mxu0 %v668
    %929 = vmatpush1.msra.mxu0 %v667
    %930 = vmatprep.subr.mxu0 %v676
    %931 = vmatpush1.msra.mxu0 %v675
    %932 = vmatprep.subr.mxu0 %v684
    %933 = vmatpush1.msra.mxu0 %v683
    %934 = vmatprep.subr.mxu0 %v692
    %935 = vmatpush1.msra.mxu0 %v691
    %936 = vmatprep.subr.mxu0 %v700
    %937 = vmatpush1.msra.mxu0 %v699
    %938 = vmatprep.subr.mxu0 %v708
    %939 = vmatpush1.msra.mxu0 %v707
    %940 = vmatprep.subr.mxu0 %v716
    %941 = vmatpush1.msra.mxu0 %v715
    %942 = vmatprep.subr.mxu0 %v724
    %943 = vmatpush1.msra.mxu0 %v723
    %944 = vmatprep.subr.mxu0 %v732
    %945 = vmatpush1.msra.mxu0 %v731
    %946 = vmatprep.subr.mxu0 %v740
    %947 = vmatpush1.msra.mxu0 %v739
    %948 = vmatprep.subr.mxu0 %v748
    %949 = vmatpush1.msra.mxu0 %v747
    %950 = vmatprep.subr.mxu0 %v756
    %951 = vmatpush1.msra.mxu0 %v755
    %952 = vmatprep.subr.mxu0 %v764
    %953 = vmatpush1.msra.mxu0 %v763
    %954 = vmatprep.subr.mxu0 %v772
    %955 = vmatpush1.msra.mxu0 %v771
    %956 = vmatprep.subr.mxu0 %v780
    %957 = vmatpush1.msra.mxu0 %v779
    %958 = vmatprep.subr.mxu0 %v788
    %959 = vmatpush1.msra.mxu0 %v787
    %960 = vmatprep.subr.mxu0 %v796
    %961 = vmatpush1.msra.mxu0 %v795
    %962 = vmatprep.subr.mxu0 %v804
    %963 = vmatpush1.msra.mxu0 %v803
    %964 = vmatprep.subr.mxu0 %v812
    %965 = vmatpush1.msra.mxu0 %v811
    %966 = vmatprep.subr.mxu0 %v820
    %967 = vmatpush1.msra.mxu0 %v819
    %968 = vmatprep.subr.mxu0 %v828
    %969 = vmatpush1.msra.mxu0 %v827
    %970 = vmatprep.subr.mxu0 %v836
    %971 = vmatpush1.msra.mxu0 %v835
    %972 = vmatprep.subr.mxu0 %v844
    %973 = vmatpush1.msra.mxu0 %v843
    %974 = vmatprep.subr.mxu0 %v852
    %975 = vmatpush1.msra.mxu0 %v851
    %976 = vmatprep.subr.mxu0 %v860
    %977 = vmatpush1.msra.mxu0 %v859
    %978 = vmatprep.subr.mxu0 %v868
    %979 = vmatpush1.msra.mxu0 %v867
    %980 = vmatprep.subr.mxu0 %v876
    %981 = vmatpush1.msra.mxu0 %v875
    %982 = vmatprep.subr.mxu0 %v884
    %983 = vmatpush1.msra.mxu0 %v883
    %984 = vmatprep.subr.mxu0 %v892
    %985 = vmatpush1.msra.mxu0 %v891
    %986 = vmatprep.subr.mxu0 %v900
    %987 = vmatpush1.msra.mxu0 %v899
    %988 = vmatprep.subr.mxu0 %v908
    %989 = vmatpush1.msra.mxu0 %v907
    %990 = vmatprep.mubr.f32.mxu0 0.0
    %991 = vmatmul.mubr.f32.gmra.mrb[0].mxu0 0.0
    %v992 = vpop.f32.mrb[0].mxu0
    %v993 = vadd.f32 0.0, %v992
    %v994 = vpop.f32.mrb[0].mxu0
    %v995 = vadd.f32 0.0, %v994
    %996 = vdwg.mxu0
    %997 = vmatprep.subr.mxu0 %v662
    %998 = vmatpush1.msra.mxu0 %v661
    %999 = vmatprep.subr.mxu0 %v670
    %1000 = vmatpush1.msra.mxu0 %v669
    %1001 = vmatprep.subr.mxu0 %v678
    %1002 = vmatpush1.msra.mxu0 %v677
    %1003 = vmatprep.subr.mxu0 %v686
    %1004 = vmatpush1.msra.mxu0 %v685
    %1005 = vmatprep.subr.mxu0 %v694
    %1006 = vmatpush1.msra.mxu0 %v693
    %1007 = vmatprep.subr.mxu0 %v702
    %1008 = vmatpush1.msra.mxu0 %v701
    %1009 = vmatprep.subr.mxu0 %v710
    %1010 = vmatpush1.msra.mxu0 %v709
    %1011 = vmatprep.subr.mxu0 %v718
    %1012 = vmatpush1.msra.mxu0 %v717
    %1013 = vmatprep.subr.mxu0 %v726
    %1014 = vmatpush1.msra.mxu0 %v725
    %1015 = vmatprep.subr.mxu0 %v734
    %1016 = vmatpush1.msra.mxu0 %v733
    %1017 = vmatprep.subr.mxu0 %v742
    %1018 = vmatpush1.msra.mxu0 %v741
    %1019 = vmatprep.subr.mxu0 %v750
    %1020 = vmatpush1.msra.mxu0 %v749
    %1021 = vmatprep.subr.mxu0 %v758
    %1022 = vmatpush1.msra.mxu0 %v757
    %1023 = vmatprep.subr.mxu0 %v766
    %1024 = vmatpush1.msra.mxu0 %v765
    %1025 = vmatprep.subr.mxu0 %v774
    %1026 = vmatpush1.msra.mxu0 %v773
    %1027 = vmatprep.subr.mxu0 %v782
    %1028 = vmatpush1.msra.mxu0 %v781
    %1029 = vmatprep.subr.mxu0 %v790
    %1030 = vmatpush1.msra.mxu0 %v789
    %1031 = vmatprep.subr.mxu0 %v798
    %1032 = vmatpush1.msra.mxu0 %v797
    %1033 = vmatprep.subr.mxu0 %v806
    %1034 = vmatpush1.msra.mxu0 %v805
    %1035 = vmatprep.subr.mxu0 %v814
    %1036 = vmatpush1.msra.mxu0 %v813
    %1037 = vmatprep.subr.mxu0 %v822
    %1038 = vmatpush1.msra.mxu0 %v821
    %1039 = vmatprep.subr.mxu0 %v830
    %1040 = vmatpush1.msra.mxu0 %v829
    %1041 = vmatprep.subr.mxu0 %v838
    %1042 = vmatpush1.msra.mxu0 %v837
    %1043 = vmatprep.subr.mxu0 %v846
    %1044 = vmatpush1.msra.mxu0 %v845
    %1045 = vmatprep.subr.mxu0 %v854
    %1046 = vmatpush1.msra.mxu0 %v853
    %1047 = vmatprep.subr.mxu0 %v862
    %1048 = vmatpush1.msra.mxu0 %v861
    %1049 = vmatprep.subr.mxu0 %v870
    %1050 = vmatpush1.msra.mxu0 %v869
    %1051 = vmatprep.subr.mxu0 %v878
    %1052 = vmatpush1.msra.mxu0 %v877
    %1053 = vmatprep.subr.mxu0 %v886
    %1054 = vmatpush1.msra.mxu0 %v885
    %1055 = vmatprep.subr.mxu0 %v894
    %1056 = vmatpush1.msra.mxu0 %v893
    %1057 = vmatprep.subr.mxu0 %v902
    %1058 = vmatpush1.msra.mxu0 %v901
    %1059 = vmatprep.subr.mxu0 %v910
    %1060 = vmatpush1.msra.mxu0 %v909
    %1061 = vmatprep.mubr.f32.mxu0 0.0
    %1062 = vmatmul.mubr.f32.gmra.mrb[0].mxu0 0.0
    %v1063 = vpop.f32.mrb[0].mxu0
    %v1064 = vadd.f32 0.0, %v1063
    %v1065 = vpop.f32.mrb[0].mxu0
    %v1066 = vadd.f32 0.0, %v1065
    %1067 = vdwg.mxu0
    %1068 = vmatprep.subr.mxu0 %v664
    %1069 = vmatpush1.msra.mxu0 %v663
    %1070 = vmatprep.subr.mxu0 %v672
    %1071 = vmatpush1.msra.mxu0 %v671
    %1072 = vmatprep.subr.mxu0 %v680
    %1073 = vmatpush1.msra.mxu0 %v679
    %1074 = vmatprep.subr.mxu0 %v688
    %1075 = vmatpush1.msra.mxu0 %v687
    %1076 = vmatprep.subr.mxu0 %v696
    %1077 = vmatpush1.msra.mxu0 %v695
    %1078 = vmatprep.subr.mxu0 %v704
    %1079 = vmatpush1.msra.mxu0 %v703
    %1080 = vmatprep.subr.mxu0 %v712
    %1081 = vmatpush1.msra.mxu0 %v711
    %1082 = vmatprep.subr.mxu0 %v720
    %1083 = vmatpush1.msra.mxu0 %v719
    %1084 = vmatprep.subr.mxu0 %v728
    %1085 = vmatpush1.msra.mxu0 %v727
    %1086 = vmatprep.subr.mxu0 %v736
    %1087 = vmatpush1.msra.mxu0 %v735
    %1088 = vmatprep.subr.mxu0 %v744
    %1089 = vmatpush1.msra.mxu0 %v743
    %1090 = vmatprep.subr.mxu0 %v752
    %1091 = vmatpush1.msra.mxu0 %v751
    %1092 = vmatprep.subr.mxu0 %v760
    %1093 = vmatpush1.msra.mxu0 %v759
    %1094 = vmatprep.subr.mxu0 %v768
    %1095 = vmatpush1.msra.mxu0 %v767
    %1096 = vmatprep.subr.mxu0 %v776
    %1097 = vmatpush1.msra.mxu0 %v775
    %1098 = vmatprep.subr.mxu0 %v784
    %1099 = vmatpush1.msra.mxu0 %v783
    %1100 = vmatprep.subr.mxu0 %v792
    %1101 = vmatpush1.msra.mxu0 %v791
    %1102 = vmatprep.subr.mxu0 %v800
    %1103 = vmatpush1.msra.mxu0 %v799
    %1104 = vmatprep.subr.mxu0 %v808
    %1105 = vmatpush1.msra.mxu0 %v807
    %1106 = vmatprep.subr.mxu0 %v816
    %1107 = vmatpush1.msra.mxu0 %v815
    %1108 = vmatprep.subr.mxu0 %v824
    %1109 = vmatpush1.msra.mxu0 %v823
    %1110 = vmatprep.subr.mxu0 %v832
    %1111 = vmatpush1.msra.mxu0 %v831
    %1112 = vmatprep.subr.mxu0 %v840
    %1113 = vmatpush1.msra.mxu0 %v839
    %1114 = vmatprep.subr.mxu0 %v848
    %1115 = vmatpush1.msra.mxu0 %v847
    %1116 = vmatprep.subr.mxu0 %v856
    %1117 = vmatpush1.msra.mxu0 %v855
    %1118 = vmatprep.subr.mxu0 %v864
    %1119 = vmatpush1.msra.mxu0 %v863
    %1120 = vmatprep.subr.mxu0 %v872
    %1121 = vmatpush1.msra.mxu0 %v871
    %1122 = vmatprep.subr.mxu0 %v880
    %1123 = vmatpush1.msra.mxu0 %v879
    %1124 = vmatprep.subr.mxu0 %v888
    %1125 = vmatpush1.msra.mxu0 %v887
    %1126 = vmatprep.subr.mxu0 %v896
    %1127 = vmatpush1.msra.mxu0 %v895
    %1128 = vmatprep.subr.mxu0 %v904
    %1129 = vmatpush1.msra.mxu0 %v903
    %1130 = vmatprep.subr.mxu0 %v912
    %1131 = vmatpush1.msra.mxu0 %v911
    %1132 = vmatprep.mubr.f32.mxu0 0.0
    %1133 = vmatmul.mubr.f32.gmra.mrb[0].mxu0 0.0
    %v1134 = vpop.f32.mrb[0].mxu0
    %v1135 = vadd.f32 0.0, %v1134
    %v1136 = vpop.f32.mrb[0].mxu0
    %v1137 = vadd.f32 0.0, %v1136
    %1138 = vdwg.mxu0
    %1139 = vmatprep.subr.mxu0 %v666
    %1140 = vmatpush1.msra.mxu0 %v665
    %1141 = vmatprep.subr.mxu0 %v674
    %1142 = vmatpush1.msra.mxu0 %v673
    %1143 = vmatprep.subr.mxu0 %v682
    %1144 = vmatpush1.msra.mxu0 %v681
    %1145 = vmatprep.subr.mxu0 %v690
    %1146 = vmatpush1.msra.mxu0 %v689
    %1147 = vmatprep.subr.mxu0 %v698
    %1148 = vmatpush1.msra.mxu0 %v697
    %1149 = vmatprep.subr.mxu0 %v706
    %1150 = vmatpush1.msra.mxu0 %v705
    %1151 = vmatprep.subr.mxu0 %v714
    %1152 = vmatpush1.msra.mxu0 %v713
    %1153 = vmatprep.subr.mxu0 %v722
    %1154 = vmatpush1.msra.mxu0 %v721
    %1155 = vmatprep.subr.mxu0 %v730
    %1156 = vmatpush1.msra.mxu0 %v729
    %1157 = vmatprep.subr.mxu0 %v738
    %1158 = vmatpush1.msra.mxu0 %v737
    %1159 = vmatprep.subr.mxu0 %v746
    %1160 = vmatpush1.msra.mxu0 %v745
    %1161 = vmatprep.subr.mxu0 %v754
    %1162 = vmatpush1.msra.mxu0 %v753
    %1163 = vmatprep.subr.mxu0 %v762
    %1164 = vmatpush1.msra.mxu0 %v761
    %1165 = vmatprep.subr.mxu0 %v770
    %1166 = vmatpush1.msra.mxu0 %v769
    %1167 = vmatprep.subr.mxu0 %v778
    %1168 = vmatpush1.msra.mxu0 %v777
    %1169 = vmatprep.subr.mxu0 %v786
    %1170 = vmatpush1.msra.mxu0 %v785
    %1171 = vmatprep.subr.mxu0 %v794
    %1172 = vmatpush1.msra.mxu0 %v793
    %1173 = vmatprep.subr.mxu0 %v802
    %1174 = vmatpush1.msra.mxu0 %v801
    %1175 = vmatprep.subr.mxu0 %v810
    %1176 = vmatpush1.msra.mxu0 %v809
    %1177 = vmatprep.subr.mxu0 %v818
    %1178 = vmatpush1.msra.mxu0 %v817
    %1179 = vmatprep.subr.mxu0 %v826
    %1180 = vmatpush1.msra.mxu0 %v825
    %1181 = vmatprep.subr.mxu0 %v834
    %1182 = vmatpush1.msra.mxu0 %v833
    %1183 = vmatprep.subr.mxu0 %v842
    %1184 = vmatpush1.msra.mxu0 %v841
    %1185 = vmatprep.subr.mxu0 %v850
    %1186 = vmatpush1.msra.mxu0 %v849
    %1187 = vmatprep.subr.mxu0 %v858
    %1188 = vmatpush1.msra.mxu0 %v857
    %1189 = vmatprep.subr.mxu0 %v866
    %1190 = vmatpush1.msra.mxu0 %v865
    %1191 = vmatprep.subr.mxu0 %v874
    %1192 = vmatpush1.msra.mxu0 %v873
    %1193 = vmatprep.subr.mxu0 %v882
    %1194 = vmatpush1.msra.mxu0 %v881
    %1195 = vmatprep.subr.mxu0 %v890
    %1196 = vmatpush1.msra.mxu0 %v889
    %1197 = vmatprep.subr.mxu0 %v898
    %1198 = vmatpush1.msra.mxu0 %v897
    %1199 = vmatprep.subr.mxu0 %v906
    %1200 = vmatpush1.msra.mxu0 %v905
    %1201 = vmatprep.subr.mxu0 %v914
    %1202 = vmatpush1.msra.mxu0 %v913
    %1203 = vmatprep.mubr.f32.mxu0 0.0
    %1204 = vmatmul.mubr.f32.gmra.mrb[0].mxu0 0.0
    %v1205 = vpop.f32.mrb[0].mxu0
    %v1206 = vadd.f32 0.0, %v1205
    %v1207 = vpop.f32.mrb[0].mxu0
    %v1208 = vadd.f32 0.0, %v1207
    %1209 = vdwg.mxu0
    %v1210 = vadd.f32 %v918, %v993
    %v1211 = vadd.f32 %v919, %v995
    %v1212 = vadd.f32 %v920, %v1064
    %v1213 = vadd.f32 %v921, %v1066
    %v1214 = vadd.f32 %v922, %v1135
    %v1215 = vadd.f32 %v923, %v1137
    %v1216 = vadd.f32 %v924, %v1206
    %v1217 = vadd.f32 %v925, %v1208
    %v1218 = vxor.u32 %v1210, 2147483648
    %v1219 = vxor.u32 %v1211, 2147483648
    %v1220 = vmul.f32 %v1218, 1.442695
    %v1221 = vpow.pop %v1220
    %v1222 = vmul.f32 %v1219, 1.442695
    %v1223 = vpow.pop %v1222
    %v1224 = vadd.f32 %v1221, 1.0
    %v1225 = vadd.f32 %v1223, 1.0
    %v1226 = vrcp.pop %v1224
    %v1227 = vmul.f32 1.0, %v1226
    %v1228 = vrcp.pop %v1225
    %v1229 = vmul.f32 1.0, %v1228
    %v1230 = vxor.u32 %v1212, 2147483648
    %v1231 = vxor.u32 %v1213, 2147483648
    %v1232 = vmul.f32 %v1230, 1.442695
    %v1233 = vpow.pop %v1232
    %v1234 = vmul.f32 %v1231, 1.442695
    %v1235 = vpow.pop %v1234
    %v1236 = vadd.f32 %v1233, 1.0
    %v1237 = vadd.f32 %v1235, 1.0
    %v1238 = vrcp.pop %v1236
    %v1239 = vmul.f32 1.0, %v1238
    %v1240 = vrcp.pop %v1237
    %v1241 = vmul.f32 1.0, %v1240
    %v1242 = vtanh.pop %v1214
    %v1243 = vtanh.pop %v1215
    %v1244 = vxor.u32 %v1216, 2147483648
    %v1245 = vxor.u32 %v1217, 2147483648
    %v1246 = vmul.f32 %v1244, 1.442695
    %v1247 = vpow.pop %v1246
    %v1248 = vmul.f32 %v1245, 1.442695
    %v1249 = vpow.pop %v1248
    %v1250 = vadd.f32 %v1247, 1.0
    %v1251 = vadd.f32 %v1249, 1.0
    %v1252 = vrcp.pop %v1250
    %v1253 = vmul.f32 1.0, %v1252
    %v1254 = vrcp.pop %v1251
    %v1255 = vmul.f32 1.0, %v1254
    %v1256 = vmul.f32 %v1239, 0.0
    %v1257 = vmul.f32 %v1241, 0.0
    %v1258 = vmul.f32 %v1227, %v1242
    %v1259 = vmul.f32 %v1229, %v1243
    %v1260 = vadd.f32 %v1256, %v1258
    %v1261 = vadd.f32 %v1257, %v1259
    %v1262 = vtanh.pop %v1260
    %v1263 = vtanh.pop %v1261
    %v1264 = vmul.f32 %v1253, %v1262
    %v1265 = vmul.f32 %v1255, %v1263
    %s1266 = smul.u32 0, 2
    %s1267 = smul.addr %s1266, 8
    %s1268 = scalar_lea.vmem [#allocation3], %s1267
    %1269 = vst [vmem:[%s1268] sm:$0xff] %v1264
    %1270 = vst [vmem:[%s1268 + $0x8] sm:$0xff] %v1265
    %s1271 = smul.u32 1, 8
    %s1272 = smul.addr %s1271, 8
    %s1273 = scalar_lea.vmem [#allocation2], %s1272
    %v1274 = vld [vmem:[%s1273] sm:$0xff]
    %v1275 = vld [vmem:[%s1273 + $0x8] sm:$0xff]
    %v1276 = vld [vmem:[%s1273 + $0x10] sm:$0xff]
    %v1277 = vld [vmem:[%s1273 + $0x18] sm:$0xff]
    %v1278 = vld [vmem:[%s1273 + $0x20] sm:$0xff]
    %v1279 = vld [vmem:[%s1273 + $0x28] sm:$0xff]
    %v1280 = vld [vmem:[%s1273 + $0x30] sm:$0xff]
    %v1281 = vld [vmem:[%s1273 + $0x38] sm:$0xff]
    %1282 = vmatprep.subr.mxu0 %v660
    %1283 = vmatpush1.msra.mxu0 %v659
    %1284 = vmatprep.subr.mxu0 %v668
    %1285 = vmatpush1.msra.mxu0 %v667
    %1286 = vmatprep.subr.mxu0 %v676
    %1287 = vmatpush1.msra.mxu0 %v675
    %1288 = vmatprep.subr.mxu0 %v684
    %1289 = vmatpush1.msra.mxu0 %v683
    %1290 = vmatprep.subr.mxu0 %v692
    %1291 = vmatpush1.msra.mxu0 %v691
    %1292 = vmatprep.subr.mxu0 %v700
    %1293 = vmatpush1.msra.mxu0 %v699
    %1294 = vmatprep.subr.mxu0 %v708
    %1295 = vmatpush1.msra.mxu0 %v707
    %1296 = vmatprep.subr.mxu0 %v716
    %1297 = vmatpush1.msra.mxu0 %v715
    %1298 = vmatprep.subr.mxu0 %v724
    %1299 = vmatpush1.msra.mxu0 %v723
    %1300 = vmatprep.subr.mxu0 %v732
    %1301 = vmatpush1.msra.mxu0 %v731
    %1302 = vmatprep.subr.mxu0 %v740
    %1303 = vmatpush1.msra.mxu0 %v739
    %1304 = vmatprep.subr.mxu0 %v748
    %1305 = vmatpush1.msra.mxu0 %v747
    %1306 = vmatprep.subr.mxu0 %v756
    %1307 = vmatpush1.msra.mxu0 %v755
    %1308 = vmatprep.subr.mxu0 %v764
    %1309 = vmatpush1.msra.mxu0 %v763
    %1310 = vmatprep.subr.mxu0 %v772
    %1311 = vmatpush1.msra.mxu0 %v771
    %1312 = vmatprep.subr.mxu0 %v780
    %1313 = vmatpush1.msra.mxu0 %v779
    %1314 = vmatprep.subr.mxu0 %v788
    %1315 = vmatpush1.msra.mxu0 %v787
    %1316 = vmatprep.subr.mxu0 %v796
    %1317 = vmatpush1.msra.mxu0 %v795
    %1318 = vmatprep.subr.mxu0 %v804
    %1319 = vmatpush1.msra.mxu0 %v803
    %1320 = vmatprep.subr.mxu0 %v812
    %1321 = vmatpush1.msra.mxu0 %v811
    %1322 = vmatprep.subr.mxu0 %v820
    %1323 = vmatpush1.msra.mxu0 %v819
    %1324 = vmatprep.subr.mxu0 %v828
    %1325 = vmatpush1.msra.mxu0 %v827
    %1326 = vmatprep.subr.mxu0 %v836
    %1327 = vmatpush1.msra.mxu0 %v835
    %1328 = vmatprep.subr.mxu0 %v844
    %1329 = vmatpush1.msra.mxu0 %v843
    %1330 = vmatprep.subr.mxu0 %v852
    %1331 = vmatpush1.msra.mxu0 %v851
    %1332 = vmatprep.subr.mxu0 %v860
    %1333 = vmatpush1.msra.mxu0 %v859
    %1334 = vmatprep.subr.mxu0 %v868
    %1335 = vmatpush1.msra.mxu0 %v867
    %1336 = vmatprep.subr.mxu0 %v876
    %1337 = vmatpush1.msra.mxu0 %v875
    %1338 = vmatprep.subr.mxu0 %v884
    %1339 = vmatpush1.msra.mxu0 %v883
    %1340 = vmatprep.subr.mxu0 %v892
    %1341 = vmatpush1.msra.mxu0 %v891
    %1342 = vmatprep.subr.mxu0 %v900
    %1343 = vmatpush1.msra.mxu0 %v899
    %1344 = vmatprep.subr.mxu0 %v908
    %1345 = vmatpush1.msra.mxu0 %v907
    %1346 = vmatprep.mubr.f32.mxu0 %v1265
    %1347 = vmatmul.mubr.f32.gmra.mrb[0].mxu0 %v1264
    %v1348 = vpop.f32.mrb[0].mxu0
    %v1349 = vadd.f32 0.0, %v1348
    %v1350 = vpop.f32.mrb[0].mxu0
    %v1351 = vadd.f32 0.0, %v1350
    %1352 = vdwg.mxu0
    %1353 = vmatprep.subr.mxu0 %v662
    %1354 = vmatpush1.msra.mxu0 %v661
    %1355 = vmatprep.subr.mxu0 %v670
    %1356 = vmatpush1.msra.mxu0 %v669
    %1357 = vmatprep.subr.mxu0 %v678
    %1358 = vmatpush1.msra.mxu0 %v677
    %1359 = vmatprep.subr.mxu0 %v686
    %1360 = vmatpush1.msra.mxu0 %v685
    %1361 = vmatprep.subr.mxu0 %v694
    %1362 = vmatpush1.msra.mxu0 %v693
    %1363 = vmatprep.subr.mxu0 %v702
    %1364 = vmatpush1.msra.mxu0 %v701
    %1365 = vmatprep.subr.mxu0 %v710
    %1366 = vmatpush1.msra.mxu0 %v709
    %1367 = vmatprep.subr.mxu0 %v718
    %1368 = vmatpush1.msra.mxu0 %v717
    %1369 = vmatprep.subr.mxu0 %v726
    %1370 = vmatpush1.msra.mxu0 %v725
    %1371 = vmatprep.subr.mxu0 %v734
    %1372 = vmatpush1.msra.mxu0 %v733
    %1373 = vmatprep.subr.mxu0 %v742
    %1374 = vmatpush1.msra.mxu0 %v741
    %1375 = vmatprep.subr.mxu0 %v750
    %1376 = vmatpush1.msra.mxu0 %v749
    %1377 = vmatprep.subr.mxu0 %v758
    %1378 = vmatpush1.msra.mxu0 %v757
    %1379 = vmatprep.subr.mxu0 %v766
    %1380 = vmatpush1.msra.mxu0 %v765
    %1381 = vmatprep.subr.mxu0 %v774
    %1382 = vmatpush1.msra.mxu0 %v773
    %1383 = vmatprep.subr.mxu0 %v782
    %1384 = vmatpush1.msra.mxu0 %v781
    %1385 = vmatprep.subr.mxu0 %v790
    %1386 = vmatpush1.msra.mxu0 %v789
    %1387 = vmatprep.subr.mxu0 %v798
    %1388 = vmatpush1.msra.mxu0 %v797
    %1389 = vmatprep.subr.mxu0 %v806
    %1390 = vmatpush1.msra.mxu0 %v805
    %1391 = vmatprep.subr.mxu0 %v814
    %1392 = vmatpush1.msra.mxu0 %v813
    %1393 = vmatprep.subr.mxu0 %v822
    %1394 = vmatpush1.msra.mxu0 %v821
    %1395 = vmatprep.subr.mxu0 %v830
    %1396 = vmatpush1.msra.mxu0 %v829
    %1397 = vmatprep.subr.mxu0 %v838
    %1398 = vmatpush1.msra.mxu0 %v837
    %1399 = vmatprep.subr.mxu0 %v846
    %1400 = vmatpush1.msra.mxu0 %v845
    %1401 = vmatprep.subr.mxu0 %v854
    %1402 = vmatpush1.msra.mxu0 %v853
    %1403 = vmatprep.subr.mxu0 %v862
    %1404 = vmatpush1.msra.mxu0 %v861
    %1405 = vmatprep.subr.mxu0 %v870
    %1406 = vmatpush1.msra.mxu0 %v869
    %1407 = vmatprep.subr.mxu0 %v878
    %1408 = vmatpush1.msra.mxu0 %v877
    %1409 = vmatprep.subr.mxu0 %v886
    %1410 = vmatpush1.msra.mxu0 %v885
    %1411 = vmatprep.subr.mxu0 %v894
    %1412 = vmatpush1.msra.mxu0 %v893
    %1413 = vmatprep.subr.mxu0 %v902
    %1414 = vmatpush1.msra.mxu0 %v901
    %1415 = vmatprep.subr.mxu0 %v910
    %1416 = vmatpush1.msra.mxu0 %v909
    %1417 = vmatprep.mubr.f32.mxu0 %v1265
    %1418 = vmatmul.mubr.f32.gmra.mrb[0].mxu0 %v1264
    %v1419 = vpop.f32.mrb[0].mxu0
    %v1420 = vadd.f32 0.0, %v1419
    %v1421 = vpop.f32.mrb[0].mxu0
    %v1422 = vadd.f32 0.0, %v1421
    %1423 = vdwg.mxu0
    %1424 = vmatprep.subr.mxu0 %v664
    %1425 = vmatpush1.msra.mxu0 %v663
    %1426 = vmatprep.subr.mxu0 %v672
    %1427 = vmatpush1.msra.mxu0 %v671
    %1428 = vmatprep.subr.mxu0 %v680
    %1429 = vmatpush1.msra.mxu0 %v679
    %1430 = vmatprep.subr.mxu0 %v688
    %1431 = vmatpush1.msra.mxu0 %v687
    %1432 = vmatprep.subr.mxu0 %v696
    %1433 = vmatpush1.msra.mxu0 %v695
    %1434 = vmatprep.subr.mxu0 %v704
    %1435 = vmatpush1.msra.mxu0 %v703
    %1436 = vmatprep.subr.mxu0 %v712
    %1437 = vmatpush1.msra.mxu0 %v711
    %1438 = vmatprep.subr.mxu0 %v720
    %1439 = vmatpush1.msra.mxu0 %v719
    %1440 = vmatprep.subr.mxu0 %v728
    %1441 = vmatpush1.msra.mxu0 %v727
    %1442 = vmatprep.subr.mxu0 %v736
    %1443 = vmatpush1.msra.mxu0 %v735
    %1444 = vmatprep.subr.mxu0 %v744
    %1445 = vmatpush1.msra.mxu0 %v743
    %1446 = vmatprep.subr.mxu0 %v752
    %1447 = vmatpush1.msra.mxu0 %v751
    %1448 = vmatprep.subr.mxu0 %v760
    %1449 = vmatpush1.msra.mxu0 %v759
    %1450 = vmatprep.subr.mxu0 %v768
    %1451 = vmatpush1.msra.mxu0 %v767
    %1452 = vmatprep.subr.mxu0 %v776
    %1453 = vmatpush1.msra.mxu0 %v775
    %1454 = vmatprep.subr.mxu0 %v784
    %1455 = vmatpush1.msra.mxu0 %v783
    %1456 = vmatprep.subr.mxu0 %v792
    %1457 = vmatpush1.msra.mxu0 %v791
    %1458 = vmatprep.subr.mxu0 %v800
    %1459 = vmatpush1.msra.mxu0 %v799
    %1460 = vmatprep.subr.mxu0 %v808
    %1461 = vmatpush1.msra.mxu0 %v807
    %1462 = vmatprep.subr.mxu0 %v816
    %1463 = vmatpush1.msra.mxu0 %v815
    %1464 = vmatprep.subr.mxu0 %v824
    %1465 = vmatpush1.msra.mxu0 %v823
    %1466 = vmatprep.subr.mxu0 %v832
    %1467 = vmatpush1.msra.mxu0 %v831
    %1468 = vmatprep.subr.mxu0 %v840
    %1469 = vmatpush1.msra.mxu0 %v839
    %1470 = vmatprep.subr.mxu0 %v848
    %1471 = vmatpush1.msra.mxu0 %v847
    %1472 = vmatprep.subr.mxu0 %v856
    %1473 = vmatpush1.msra.mxu0 %v855
    %1474 = vmatprep.subr.mxu0 %v864
    %1475 = vmatpush1.msra.mxu0 %v863
    %1476 = vmatprep.subr.mxu0 %v872
    %1477 = vmatpush1.msra.mxu0 %v871
    %1478 = vmatprep.subr.mxu0 %v880
    %1479 = vmatpush1.msra.mxu0 %v879
    %1480 = vmatprep.subr.mxu0 %v888
    %1481 = vmatpush1.msra.mxu0 %v887
    %1482 = vmatprep.subr.mxu0 %v896
    %1483 = vmatpush1.msra.mxu0 %v895
    %1484 = vmatprep.subr.mxu0 %v904
    %1485 = vmatpush1.msra.mxu0 %v903
    %1486 = vmatprep.subr.mxu0 %v912
    %1487 = vmatpush1.msra.mxu0 %v911
    %1488 = vmatprep.mubr.f32.mxu0 %v1265
    %1489 = vmatmul.mubr.f32.gmra.mrb[0].mxu0 %v1264
    %v1490 = vpop.f32.mrb[0].mxu0
    %v1491 = vadd.f32 0.0, %v1490
    %v1492 = vpop.f32.mrb[0].mxu0
    %v1493 = vadd.f32 0.0, %v1492
    %1494 = vdwg.mxu0
    %1495 = vmatprep.subr.mxu0 %v666
    %1496 = vmatpush1.msra.mxu0 %v665
    %1497 = vmatprep.subr.mxu0 %v674
    %1498 = vmatpush1.msra.mxu0 %v673
    %1499 = vmatprep.subr.mxu0 %v682
    %1500 = vmatpush1.msra.mxu0 %v681
    %1501 = vmatprep.subr.mxu0 %v690
    %1502 = vmatpush1.msra.mxu0 %v689
    %1503 = vmatprep.subr.mxu0 %v698
    %1504 = vmatpush1.msra.mxu0 %v697
    %1505 = vmatprep.subr.mxu0 %v706
    %1506 = vmatpush1.msra.mxu0 %v705
    %1507 = vmatprep.subr.mxu0 %v714
    %1508 = vmatpush1.msra.mxu0 %v713
    %1509 = vmatprep.subr.mxu0 %v722
    %1510 = vmatpush1.msra.mxu0 %v721
    %1511 = vmatprep.subr.mxu0 %v730
    %1512 = vmatpush1.msra.mxu0 %v729
    %1513 = vmatprep.subr.mxu0 %v738
    %1514 = vmatpush1.msra.mxu0 %v737
    %1515 = vmatprep.subr.mxu0 %v746
    %1516 = vmatpush1.msra.mxu0 %v745
    %1517 = vmatprep.subr.mxu0 %v754
    %1518 = vmatpush1.msra.mxu0 %v753
    %1519 = vmatprep.subr.mxu0 %v762
    %1520 = vmatpush1.msra.mxu0 %v761
    %1521 = vmatprep.subr.mxu0 %v770
    %1522 = vmatpush1.msra.mxu0 %v769
    %1523 = vmatprep.subr.mxu0 %v778
    %1524 = vmatpush1.msra.mxu0 %v777
    %1525 = vmatprep.subr.mxu0 %v786
    %1526 = vmatpush1.msra.mxu0 %v785
    %1527 = vmatprep.subr.mxu0 %v794
    %1528 = vmatpush1.msra.mxu0 %v793
    %1529 = vmatprep.subr.mxu0 %v802
    %1530 = vmatpush1.msra.mxu0 %v801
    %1531 = vmatprep.subr.mxu0 %v810
    %1532 = vmatpush1.msra.mxu0 %v809
    %1533 = vmatprep.subr.mxu0 %v818
    %1534 = vmatpush1.msra.mxu0 %v817
    %1535 = vmatprep.subr.mxu0 %v826
    %1536 = vmatpush1.msra.mxu0 %v825
    %1537 = vmatprep.subr.mxu0 %v834
    %1538 = vmatpush1.msra.mxu0 %v833
    %1539 = vmatprep.subr.mxu0 %v842
    %1540 = vmatpush1.msra.mxu0 %v841
    %1541 = vmatprep.subr.mxu0 %v850
    %1542 = vmatpush1.msra.mxu0 %v849
    %1543 = vmatprep.subr.mxu0 %v858
    %1544 = vmatpush1.msra.mxu0 %v857
    %1545 = vmatprep.subr.mxu0 %v866
    %1546 = vmatpush1.msra.mxu0 %v865
    %1547 = vmatprep.subr.mxu0 %v874
    %1548 = vmatpush1.msra.mxu0 %v873
    %1549 = vmatprep.subr.mxu0 %v882
    %1550 = vmatpush1.msra.mxu0 %v881
    %1551 = vmatprep.subr.mxu0 %v890
    %1552 = vmatpush1.msra.mxu0 %v889
    %1553 = vmatprep.subr.mxu0 %v898
    %1554 = vmatpush1.msra.mxu0 %v897
    %1555 = vmatprep.subr.mxu0 %v906
    %1556 = vmatpush1.msra.mxu0 %v905
    %1557 = vmatprep.subr.mxu0 %v914
    %1558 = vmatpush1.msra.mxu0 %v913
    %1559 = vmatprep.mubr.f32.mxu0 %v1265
    %1560 = vmatmul.mubr.f32.gmra.mrb[0].mxu0 %v1264
    %v1561 = vpop.f32.mrb[0].mxu0
    %v1562 = vadd.f32 0.0, %v1561
    %v1563 = vpop.f32.mrb[0].mxu0
    %v1564 = vadd.f32 0.0, %v1563
    %1565 = vdwg.mxu0
    %v1566 = vadd.f32 %v1274, %v1349
    %v1567 = vadd.f32 %v1275, %v1351
    %v1568 = vadd.f32 %v1276, %v1420
    %v1569 = vadd.f32 %v1277, %v1422
    %v1570 = vadd.f32 %v1278, %v1491
    %v1571 = vadd.f32 %v1279, %v1493
    %v1572 = vadd.f32 %v1280, %v1562
    %v1573 = vadd.f32 %v1281, %v1564
    %v1574 = vxor.u32 %v1566, 2147483648
    %v1575 = vxor.u32 %v1567, 2147483648
    %v1576 = vmul.f32 %v1574, 1.442695
    %v1577 = vpow.pop %v1576
    %v1578 = vmul.f32 %v1575, 1.442695
    %v1579 = vpow.pop %v1578
    %v1580 = vadd.f32 %v1577, 1.0
    %v1581 = vadd.f32 %v1579, 1.0
    %v1582 = vrcp.pop %v1580
    %v1583 = vmul.f32 1.0, %v1582
    %v1584 = vrcp.pop %v1581
    %v1585 = vmul.f32 1.0, %v1584
    %v1586 = vxor.u32 %v1568, 2147483648
    %v1587 = vxor.u32 %v1569, 2147483648
    %v1588 = vmul.f32 %v1586, 1.442695
    %v1589 = vpow.pop %v1588
    %v1590 = vmul.f32 %v1587, 1.442695
    %v1591 = vpow.pop %v1590
    %v1592 = vadd.f32 %v1589, 1.0
    %v1593 = vadd.f32 %v1591, 1.0
    %v1594 = vrcp.pop %v1592
    %v1595 = vmul.f32 1.0, %v1594
    %v1596 = vrcp.pop %v1593
    %v1597 = vmul.f32 1.0, %v1596
    %v1598 = vtanh.pop %v1570
    %v1599 = vtanh.pop %v1571
    %v1600 = vxor.u32 %v1572, 2147483648
    %v1601 = vxor.u32 %v1573, 2147483648
    %v1602 = vmul.f32 %v1600, 1.442695
    %v1603 = vpow.pop %v1602
    %v1604 = vmul.f32 %v1601, 1.442695
    %v1605 = vpow.pop %v1604
    %v1606 = vadd.f32 %v1603, 1.0
    %v1607 = vadd.f32 %v1605, 1.0
    %v1608 = vrcp.pop %v1606
    %v1609 = vmul.f32 1.0, %v1608
    %v1610 = vrcp.pop %v1607
    %v1611 = vmul.f32 1.0, %v1610
    %v1612 = vmul.f32 %v1595, %v1260
    %v1613 = vmul.f32 %v1597, %v1261
    %v1614 = vmul.f32 %v1583, %v1598
    %v1615 = vmul.f32 %v1585, %v1599
    %v1616 = vadd.f32 %v1612, %v1614
    %v1617 = vadd.f32 %v1613, %v1615
    %v1618 = vtanh.pop %v1616
    %v1619 = vtanh.pop %v1617
    %v1620 = vmul.f32 %v1609, %v1618
    %v1621 = vmul.f32 %v1611, %v1619
    %s1622 = smul.u32 1, 2
    %s1623 = smul.addr %s1622, 8
    %s1624 = scalar_lea.vmem [#allocation3], %s1623
    %1625 = vst [vmem:[%s1624] sm:$0xff] %v1620
    %1626 = vst [vmem:[%s1624 + $0x8] sm:$0xff] %v1621
    %s1627 = smul.u32 2, 8
    %s1628 = smul.addr %s1627, 8
    %s1629 = scalar_lea.vmem [#allocation2], %s1628
    %v1630 = vld [vmem:[%s1629] sm:$0xff]
    %v1631 = vld [vmem:[%s1629 + $0x8] sm:$0xff]
    %v1632 = vld [vmem:[%s1629 + $0x10] sm:$0xff]
    %v1633 = vld [vmem:[%s1629 + $0x18] sm:$0xff]
    %v1634 = vld [vmem:[%s1629 + $0x20] sm:$0xff]
    %v1635 = vld [vmem:[%s1629 + $0x28] sm:$0xff]
    %v1636 = vld [vmem:[%s1629 + $0x30] sm:$0xff]
    %v1637 = vld [vmem:[%s1629 + $0x38] sm:$0xff]
    %1638 = vmatprep.subr.mxu0 %v660
    %1639 = vmatpush1.msra.mxu0 %v659
    %1640 = vmatprep.subr.mxu0 %v668
    %1641 = vmatpush1.msra.mxu0 %v667
    %1642 = vmatprep.subr.mxu0 %v676
    %1643 = vmatpush1.msra.mxu0 %v675
    %1644 = vmatprep.subr.mxu0 %v684
    %1645 = vmatpush1.msra.mxu0 %v683
    %1646 = vmatprep.subr.mxu0 %v692
    %1647 = vmatpush1.msra.mxu0 %v691
    %1648 = vmatprep.subr.mxu0 %v700
    %1649 = vmatpush1.msra.mxu0 %v699
    %1650 = vmatprep.subr.mxu0 %v708
    %1651 = vmatpush1.msra.mxu0 %v707
    %1652 = vmatprep.subr.mxu0 %v716
    %1653 = vmatpush1.msra.mxu0 %v715
    %1654 = vmatprep.subr.mxu0 %v724
    %1655 = vmatpush1.msra.mxu0 %v723
    %1656 = vmatprep.subr.mxu0 %v732
    %1657 = vmatpush1.msra.mxu0 %v731
    %1658 = vmatprep.subr.mxu0 %v740
    %1659 = vmatpush1.msra.mxu0 %v739
    %1660 = vmatprep.subr.mxu0 %v748
    %1661 = vmatpush1.msra.mxu0 %v747
    %1662 = vmatprep.subr.mxu0 %v756
    %1663 = vmatpush1.msra.mxu0 %v755
    %1664 = vmatprep.subr.mxu0 %v764
    %1665 = vmatpush1.msra.mxu0 %v763
    %1666 = vmatprep.subr.mxu0 %v772
    %1667 = vmatpush1.msra.mxu0 %v771
    %1668 = vmatprep.subr.mxu0 %v780
    %1669 = vmatpush1.msra.mxu0 %v779
    %1670 = vmatprep.subr.mxu0 %v788
    %1671 = vmatpush1.msra.mxu0 %v787
    %1672 = vmatprep.subr.mxu0 %v796
    %1673 = vmatpush1.msra.mxu0 %v795
    %1674 = vmatprep.subr.mxu0 %v804
    %1675 = vmatpush1.msra.mxu0 %v803
    %1676 = vmatprep.subr.mxu0 %v812
    %1677 = vmatpush1.msra.mxu0 %v811
    %1678 = vmatprep.subr.mxu0 %v820
    %1679 = vmatpush1.msra.mxu0 %v819
    %1680 = vmatprep.subr.mxu0 %v828
    %1681 = vmatpush1.msra.mxu0 %v827
    %1682 = vmatprep.subr.mxu0 %v836
    %1683 = vmatpush1.msra.mxu0 %v835
    %1684 = vmatprep.subr.mxu0 %v844
    %1685 = vmatpush1.msra.mxu0 %v843
    %1686 = vmatprep.subr.mxu0 %v852
    %1687 = vmatpush1.msra.mxu0 %v851
    %1688 = vmatprep.subr.mxu0 %v860
    %1689 = vmatpush1.msra.mxu0 %v859
    %1690 = vmatprep.subr.mxu0 %v868
    %1691 = vmatpush1.msra.mxu0 %v867
    %1692 = vmatprep.subr.mxu0 %v876
    %1693 = vmatpush1.msra.mxu0 %v875
    %1694 = vmatprep.subr.mxu0 %v884
    %1695 = vmatpush1.msra.mxu0 %v883
    %1696 = vmatprep.subr.mxu0 %v892
    %1697 = vmatpush1.msra.mxu0 %v891
    %1698 = vmatprep.subr.mxu0 %v900
    %1699 = vmatpush1.msra.mxu0 %v899
    %1700 = vmatprep.subr.mxu0 %v908
    %1701 = vmatpush1.msra.mxu0 %v907
    %1702 = vmatprep.mubr.f32.mxu0 %v1621
    %1703 = vmatmul.mubr.f32.gmra.mrb[0].mxu0 %v1620
    %v1704 = vpop.f32.mrb[0].mxu0
    %v1705 = vadd.f32 0.0, %v1704
    %v1706 = vpop.f32.mrb[0].mxu0
    %v1707 = vadd.f32 0.0, %v1706
    %1708 = vdwg.mxu0
    %1709 = vmatprep.subr.mxu0 %v662
    %1710 = vmatpush1.msra.mxu0 %v661
    %1711 = vmatprep.subr.mxu0 %v670
    %1712 = vmatpush1.msra.mxu0 %v669
    %1713 = vmatprep.subr.mxu0 %v678
    %1714 = vmatpush1.msra.mxu0 %v677
    %1715 = vmatprep.subr.mxu0 %v686
    %1716 = vmatpush1.msra.mxu0 %v685
    %1717 = vmatprep.subr.mxu0 %v694
    %1718 = vmatpush1.msra.mxu0 %v693
    %1719 = vmatprep.subr.mxu0 %v702
    %1720 = vmatpush1.msra.mxu0 %v701
    %1721 = vmatprep.subr.mxu0 %v710
    %1722 = vmatpush1.msra.mxu0 %v709
    %1723 = vmatprep.subr.mxu0 %v718
    %1724 = vmatpush1.msra.mxu0 %v717
    %1725 = vmatprep.subr.mxu0 %v726
    %1726 = vmatpush1.msra.mxu0 %v725
    %1727 = vmatprep.subr.mxu0 %v734
    %1728 = vmatpush1.msra.mxu0 %v733
    %1729 = vmatprep.subr.mxu0 %v742
    %1730 = vmatpush1.msra.mxu0 %v741
    %1731 = vmatprep.subr.mxu0 %v750
    %1732 = vmatpush1.msra.mxu0 %v749
    %1733 = vmatprep.subr.mxu0 %v758
    %1734 = vmatpush1.msra.mxu0 %v757
    %1735 = vmatprep.subr.mxu0 %v766
    %1736 = vmatpush1.msra.mxu0 %v765
    %1737 = vmatprep.subr.mxu0 %v774
    %1738 = vmatpush1.msra.mxu0 %v773
    %1739 = vmatprep.subr.mxu0 %v782
    %1740 = vmatpush1.msra.mxu0 %v781
    %1741 = vmatprep.subr.mxu0 %v790
    %1742 = vmatpush1.msra.mxu0 %v789
    %1743 = vmatprep.subr.mxu0 %v798
    %1744 = vmatpush1.msra.mxu0 %v797
    %1745 = vmatprep.subr.mxu0 %v806
    %1746 = vmatpush1.msra.mxu0 %v805
    %1747 = vmatprep.subr.mxu0 %v814
    %1748 = vmatpush1.msra.mxu0 %v813
    %1749 = vmatprep.subr.mxu0 %v822
    %1750 = vmatpush1.msra.mxu0 %v821
    %1751 = vmatprep.subr.mxu0 %v830
    %1752 = vmatpush1.msra.mxu0 %v829
    %1753 = vmatprep.subr.mxu0 %v838
    %1754 = vmatpush1.msra.mxu0 %v837
    %1755 = vmatprep.subr.mxu0 %v846
    %1756 = vmatpush1.msra.mxu0 %v845
    %1757 = vmatprep.subr.mxu0 %v854
    %1758 = vmatpush1.msra.mxu0 %v853
    %1759 = vmatprep.subr.mxu0 %v862
    %1760 = vmatpush1.msra.mxu0 %v861
    %1761 = vmatprep.subr.mxu0 %v870
    %1762 = vmatpush1.msra.mxu0 %v869
    %1763 = vmatprep.subr.mxu0 %v878
    %1764 = vmatpush1.msra.mxu0 %v877
    %1765 = vmatprep.subr.mxu0 %v886
    %1766 = vmatpush1.msra.mxu0 %v885
    %1767 = vmatprep.subr.mxu0 %v894
    %1768 = vmatpush1.msra.mxu0 %v893
    %1769 = vmatprep.subr.mxu0 %v902
    %1770 = vmatpush1.msra.mxu0 %v901
    %1771 = vmatprep.subr.mxu0 %v910
    %1772 = vmatpush1.msra.mxu0 %v909
    %1773 = vmatprep.mubr.f32.mxu0 %v1621
    %1774 = vmatmul.mubr.f32.gmra.mrb[0].mxu0 %v1620
    %v1775 = vpop.f32.mrb[0].mxu0
    %v1776 = vadd.f32 0.0, %v1775
    %v1777 = vpop.f32.mrb[0].mxu0
    %v1778 = vadd.f32 0.0, %v1777
    %1779 = vdwg.mxu0
    %1780 = vmatprep.subr.mxu0 %v664
    %1781 = vmatpush1.msra.mxu0 %v663
    %1782 = vmatprep.subr.mxu0 %v672
    %1783 = vmatpush1.msra.mxu0 %v671
    %1784 = vmatprep.subr.mxu0 %v680
    %1785 = vmatpush1.msra.mxu0 %v679
    %1786 = vmatprep.subr.mxu0 %v688
    %1787 = vmatpush1.msra.mxu0 %v687
    %1788 = vmatprep.subr.mxu0 %v696
    %1789 = vmatpush1.msra.mxu0 %v695
    %1790 = vmatprep.subr.mxu0 %v704
    %1791 = vmatpush1.msra.mxu0 %v703
    %1792 = vmatprep.subr.mxu0 %v712
    %1793 = vmatpush1.msra.mxu0 %v711
    %1794 = vmatprep.subr.mxu0 %v720
    %1795 = vmatpush1.msra.mxu0 %v719
    %1796 = vmatprep.subr.mxu0 %v728
    %1797 = vmatpush1.msra.mxu0 %v727
    %1798 = vmatprep.subr.mxu0 %v736
    %1799 = vmatpush1.msra.mxu0 %v735
    %1800 = vmatprep.subr.mxu0 %v744
    %1801 = vmatpush1.msra.mxu0 %v743
    %1802 = vmatprep.subr.mxu0 %v752
    %1803 = vmatpush1.msra.mxu0 %v751
    %1804 = vmatprep.subr.mxu0 %v760
    %1805 = vmatpush1.msra.mxu0 %v759
    %1806 = vmatprep.subr.mxu0 %v768
    %1807 = vmatpush1.msra.mxu0 %v767
    %1808 = vmatprep.subr.mxu0 %v776
    %1809 = vmatpush1.msra.mxu0 %v775
    %1810 = vmatprep.subr.mxu0 %v784
    %1811 = vmatpush1.msra.mxu0 %v783
    %1812 = vmatprep.subr.mxu0 %v792
    %1813 = vmatpush1.msra.mxu0 %v791
    %1814 = vmatprep.subr.mxu0 %v800
    %1815 = vmatpush1.msra.mxu0 %v799
    %1816 = vmatprep.subr.mxu0 %v808
    %1817 = vmatpush1.msra.mxu0 %v807
    %1818 = vmatprep.subr.mxu0 %v816
    %1819 = vmatpush1.msra.mxu0 %v815
    %1820 = vmatprep.subr.mxu0 %v824
    %1821 = vmatpush1.msra.mxu0 %v823
    %1822 = vmatprep.subr.mxu0 %v832
    %1823 = vmatpush1.msra.mxu0 %v831
    %1824 = vmatprep.subr.mxu0 %v840
    %1825 = vmatpush1.msra.mxu0 %v839
    %1826 = vmatprep.subr.mxu0 %v848
    %1827 = vmatpush1.msra.mxu0 %v847
    %1828 = vmatprep.subr.mxu0 %v856
    %1829 = vmatpush1.msra.mxu0 %v855
    %1830 = vmatprep.subr.mxu0 %v864
    %1831 = vmatpush1.msra.mxu0 %v863
    %1832 = vmatprep.subr.mxu0 %v872
    %1833 = vmatpush1.msra.mxu0 %v871
    %1834 = vmatprep.subr.mxu0 %v880
    %1835 = vmatpush1.msra.mxu0 %v879
    %1836 = vmatprep.subr.mxu0 %v888
    %1837 = vmatpush1.msra.mxu0 %v887
    %1838 = vmatprep.subr.mxu0 %v896
    %1839 = vmatpush1.msra.mxu0 %v895
    %1840 = vmatprep.subr.mxu0 %v904
    %1841 = vmatpush1.msra.mxu0 %v903
    %1842 = vmatprep.subr.mxu0 %v912
    %1843 = vmatpush1.msra.mxu0 %v911
    %1844 = vmatprep.mubr.f32.mxu0 %v1621
    %1845 = vmatmul.mubr.f32.gmra.mrb[0].mxu0 %v1620
    %v1846 = vpop.f32.mrb[0].mxu0
    %v1847 = vadd.f32 0.0, %v1846
    %v1848 = vpop.f32.mrb[0].mxu0
    %v1849 = vadd.f32 0.0, %v1848
    %1850 = vdwg.mxu0
    %1851 = vmatprep.subr.mxu0 %v666
    %1852 = vmatpush1.msra.mxu0 %v665
    %1853 = vmatprep.subr.mxu0 %v674
    %1854 = vmatpush1.msra.mxu0 %v673
    %1855 = vmatprep.subr.mxu0 %v682
    %1856 = vmatpush1.msra.mxu0 %v681
    %1857 = vmatprep.subr.mxu0 %v690
    %1858 = vmatpush1.msra.mxu0 %v689
    %1859 = vmatprep.subr.mxu0 %v698
    %1860 = vmatpush1.msra.mxu0 %v697
    %1861 = vmatprep.subr.mxu0 %v706
    %1862 = vmatpush1.msra.mxu0 %v705
    %1863 = vmatprep.subr.mxu0 %v714
    %1864 = vmatpush1.msra.mxu0 %v713
    %1865 = vmatprep.subr.mxu0 %v722
    %1866 = vmatpush1.msra.mxu0 %v721
    %1867 = vmatprep.subr.mxu0 %v730
    %1868 = vmatpush1.msra.mxu0 %v729
    %1869 = vmatprep.subr.mxu0 %v738
    %1870 = vmatpush1.msra.mxu0 %v737
    %1871 = vmatprep.subr.mxu0 %v746
    %1872 = vmatpush1.msra.mxu0 %v745
    %1873 = vmatprep.subr.mxu0 %v754
    %1874 = vmatpush1.msra.mxu0 %v753
    %1875 = vmatprep.subr.mxu0 %v762
    %1876 = vmatpush1.msra.mxu0 %v761
    %1877 = vmatprep.subr.mxu0 %v770
    %1878 = vmatpush1.msra.mxu0 %v769
    %1879 = vmatprep.subr.mxu0 %v778
    %1880 = vmatpush1.msra.mxu0 %v777
    %1881 = vmatprep.subr.mxu0 %v786
    %1882 = vmatpush1.msra.mxu0 %v785
    %1883 = vmatprep.subr.mxu0 %v794
    %1884 = vmatpush1.msra.mxu0 %v793
    %1885 = vmatprep.subr.mxu0 %v802
    %1886 = vmatpush1.msra.mxu0 %v801
    %1887 = vmatprep.subr.mxu0 %v810
    %1888 = vmatpush1.msra.mxu0 %v809
    %1889 = vmatprep.subr.mxu0 %v818
    %1890 = vmatpush1.msra.mxu0 %v817
    %1891 = vmatprep.subr.mxu0 %v826
    %1892 = vmatpush1.msra.mxu0 %v825
    %1893 = vmatprep.subr.mxu0 %v834
    %1894 = vmatpush1.msra.mxu0 %v833
    %1895 = vmatprep.subr.mxu0 %v842
    %1896 = vmatpush1.msra.mxu0 %v841
    %1897 = vmatprep.subr.mxu0 %v850
    %1898 = vmatpush1.msra.mxu0 %v849
    %1899 = vmatprep.subr.mxu0 %v858
    %1900 = vmatpush1.msra.mxu0 %v857
    %1901 = vmatprep.subr.mxu0 %v866
    %1902 = vmatpush1.msra.mxu0 %v865
    %1903 = vmatprep.subr.mxu0 %v874
    %1904 = vmatpush1.msra.mxu0 %v873
    %1905 = vmatprep.subr.mxu0 %v882
    %1906 = vmatpush1.msra.mxu0 %v881
    %1907 = vmatprep.subr.mxu0 %v890
    %1908 = vmatpush1.msra.mxu0 %v889
    %1909 = vmatprep.subr.mxu0 %v898
    %1910 = vmatpush1.msra.mxu0 %v897
    %1911 = vmatprep.subr.mxu0 %v906
    %1912 = vmatpush1.msra.mxu0 %v905
    %1913 = vmatprep.subr.mxu0 %v914
    %1914 = vmatpush1.msra.mxu0 %v913
    %1915 = vmatprep.mubr.f32.mxu0 %v1621
    %1916 = vmatmul.mubr.f32.gmra.mrb[0].mxu0 %v1620
    %v1917 = vpop.f32.mrb[0].mxu0
    %v1918 = vadd.f32 0.0, %v1917
    %v1919 = vpop.f32.mrb[0].mxu0
    %v1920 = vadd.f32 0.0, %v1919
    %1921 = vdwg.mxu0
    %v1922 = vadd.f32 %v1630, %v1705
    %v1923 = vadd.f32 %v1631, %v1707
    %v1924 = vadd.f32 %v1632, %v1776
    %v1925 = vadd.f32 %v1633, %v1778
    %v1926 = vadd.f32 %v1634, %v1847
    %v1927 = vadd.f32 %v1635, %v1849
    %v1928 = vadd.f32 %v1636, %v1918
    %v1929 = vadd.f32 %v1637, %v1920
    %v1930 = vxor.u32 %v1922, 2147483648
    %v1931 = vxor.u32 %v1923, 2147483648
    %v1932 = vmul.f32 %v1930, 1.442695
    %v1933 = vpow.pop %v1932
    %v1934 = vmul.f32 %v1931, 1.442695
    %v1935 = vpow.pop %v1934
    %v1936 = vadd.f32 %v1933, 1.0
    %v1937 = vadd.f32 %v1935, 1.0
    %v1938 = vrcp.pop %v1936
    %v1939 = vmul.f32 1.0, %v1938
    %v1940 = vrcp.pop %v1937
    %v1941 = vmul.f32 1.0, %v1940
    %v1942 = vxor.u32 %v1924, 2147483648
    %v1943 = vxor.u32 %v1925, 2147483648
    %v1944 = vmul.f32 %v1942, 1.442695
    %v1945 = vpow.pop %v1944
    %v1946 = vmul.f32 %v1943, 1.442695
    %v1947 = vpow.pop %v1946
    %v1948 = vadd.f32 %v1945, 1.0
    %v1949 = vadd.f32 %v1947, 1.0
    %v1950 = vrcp.pop %v1948
    %v1951 = vmul.f32 1.0, %v1950
    %v1952 = vrcp.pop %v1949
    %v1953 = vmul.f32 1.0, %v1952
    %v1954 = vtanh.pop %v1926
    %v1955 = vtanh.pop %v1927
    %v1956 = vxor.u32 %v1928, 2147483648
    %v1957 = vxor.u32 %v1929, 2147483648
    %v1958 = vmul.f32 %v1956, 1.442695
    %v1959 = vpow.pop %v1958
    %v1960 = vmul.f32 %v1957, 1.442695
    %v1961 = vpow.pop %v1960
    %v1962 = vadd.f32 %v1959, 1.0
    %v1963 = vadd.f32 %v1961, 1.0
    %v1964 = vrcp.pop %v1962
    %v1965 = vmul.f32 1.0, %v1964
    %v1966 = vrcp.pop %v1963
    %v1967 = vmul.f32 1.0, %v1966
    %v1968 = vmul.f32 %v1951, %v1616
    %v1969 = vmul.f32 %v1953, %v1617
    %v1970 = vmul.f32 %v1939, %v1954
    %v1971 = vmul.f32 %v1941, %v1955
    %v1972 = vadd.f32 %v1968, %v1970
    %v1973 = vadd.f32 %v1969, %v1971
    %v1974 = vtanh.pop %v1972
    %v1975 = vtanh.pop %v1973
    %v1976 = vmul.f32 %v1965, %v1974
    %v1977 = vmul.f32 %v1967, %v1975
    %s1978 = smul.u32 2, 2
    %s1979 = smul.addr %s1978, 8
    %s1980 = scalar_lea.vmem [#allocation3], %s1979
    %1981 = vst [vmem:[%s1980] sm:$0xff] %v1976
    %1982 = vst [vmem:[%s1980 + $0x8] sm:$0xff] %v1977
    %s1983 = smul.u32 3, 8
    %s1984 = smul.addr %s1983, 8
    %s1985 = scalar_lea.vmem [#allocation2], %s1984
    %v1986 = vld [vmem:[%s1985] sm:$0xff]
    %v1987 = vld [vmem:[%s1985 + $0x8] sm:$0xff]
    %v1988 = vld [vmem:[%s1985 + $0x10] sm:$0xff]
    %v1989 = vld [vmem:[%s1985 + $0x18] sm:$0xff]
    %v1990 = vld [vmem:[%s1985 + $0x20] sm:$0xff]
    %v1991 = vld [vmem:[%s1985 + $0x28] sm:$0xff]
    %v1992 = vld [vmem:[%s1985 + $0x30] sm:$0xff]
    %v1993 = vld [vmem:[%s1985 + $0x38] sm:$0xff]
    %1994 = vmatprep.subr.mxu0 %v660
    %1995 = vmatpush1.msra.mxu0 %v659
    %1996 = vmatprep.subr.mxu0 %v668
    %1997 = vmatpush1.msra.mxu0 %v667
    %1998 = vmatprep.subr.mxu0 %v676
    %1999 = vmatpush1.msra.mxu0 %v675
    %2000 = vmatprep.subr.mxu0 %v684
    %2001 = vmatpush1.msra.mxu0 %v683
    %2002 = vmatprep.subr.mxu0 %v692
    %2003 = vmatpush1.msra.mxu0 %v691
    %2004 = vmatprep.subr.mxu0 %v700
    %2005 = vmatpush1.msra.mxu0 %v699
    %2006 = vmatprep.subr.mxu0 %v708
    %2007 = vmatpush1.msra.mxu0 %v707
    %2008 = vmatprep.subr.mxu0 %v716
    %2009 = vmatpush1.msra.mxu0 %v715
    %2010 = vmatprep.subr.mxu0 %v724
    %2011 = vmatpush1.msra.mxu0 %v723
    %2012 = vmatprep.subr.mxu0 %v732
    %2013 = vmatpush1.msra.mxu0 %v731
    %2014 = vmatprep.subr.mxu0 %v740
    %2015 = vmatpush1.msra.mxu0 %v739
    %2016 = vmatprep.subr.mxu0 %v748
    %2017 = vmatpush1.msra.mxu0 %v747
    %2018 = vmatprep.subr.mxu0 %v756
    %2019 = vmatpush1.msra.mxu0 %v755
    %2020 = vmatprep.subr.mxu0 %v764
    %2021 = vmatpush1.msra.mxu0 %v763
    %2022 = vmatprep.subr.mxu0 %v772
    %2023 = vmatpush1.msra.mxu0 %v771
    %2024 = vmatprep.subr.mxu0 %v780
    %2025 = vmatpush1.msra.mxu0 %v779
    %2026 = vmatprep.subr.mxu0 %v788
    %2027 = vmatpush1.msra.mxu0 %v787
    %2028 = vmatprep.subr.mxu0 %v796
    %2029 = vmatpush1.msra.mxu0 %v795
    %2030 = vmatprep.subr.mxu0 %v804
    %2031 = vmatpush1.msra.mxu0 %v803
    %2032 = vmatprep.subr.mxu0 %v812
    %2033 = vmatpush1.msra.mxu0 %v811
    %2034 = vmatprep.subr.mxu0 %v820
    %2035 = vmatpush1.msra.mxu0 %v819
    %2036 = vmatprep.subr.mxu0 %v828
    %2037 = vmatpush1.msra.mxu0 %v827
    %2038 = vmatprep.subr.mxu0 %v836
    %2039 = vmatpush1.msra.mxu0 %v835
    %2040 = vmatprep.subr.mxu0 %v844
    %2041 = vmatpush1.msra.mxu0 %v843
    %2042 = vmatprep.subr.mxu0 %v852
    %2043 = vmatpush1.msra.mxu0 %v851
    %2044 = vmatprep.subr.mxu0 %v860
    %2045 = vmatpush1.msra.mxu0 %v859
    %2046 = vmatprep.subr.mxu0 %v868
    %2047 = vmatpush1.msra.mxu0 %v867
    %2048 = vmatprep.subr.mxu0 %v876
    %2049 = vmatpush1.msra.mxu0 %v875
    %2050 = vmatprep.subr.mxu0 %v884
    %2051 = vmatpush1.msra.mxu0 %v883
    %2052 = vmatprep.subr.mxu0 %v892
    %2053 = vmatpush1.msra.mxu0 %v891
    %2054 = vmatprep.subr.mxu0 %v900
    %2055 = vmatpush1.msra.mxu0 %v899
    %2056 = vmatprep.subr.mxu0 %v908
    %2057 = vmatpush1.msra.mxu0 %v907
    %2058 = vmatprep.mubr.f32.mxu0 %v1977
    %2059 = vmatmul.mubr.f32.gmra.mrb[0].mxu0 %v1976
    %v2060 = vpop.f32.mrb[0].mxu0
    %v2061 = vadd.f32 0.0, %v2060
    %v2062 = vpop.f32.mrb[0].mxu0
    %v2063 = vadd.f32 0.0, %v2062
    %2064 = vdwg.mxu0
    %2065 = vmatprep.subr.mxu0 %v662
    %2066 = vmatpush1.msra.mxu0 %v661
    %2067 = vmatprep.subr.mxu0 %v670
    %2068 = vmatpush1.msra.mxu0 %v669
    %2069 = vmatprep.subr.mxu0 %v678
    %2070 = vmatpush1.msra.mxu0 %v677
    %2071 = vmatprep.subr.mxu0 %v686
    %2072 = vmatpush1.msra.mxu0 %v685
    %2073 = vmatprep.subr.mxu0 %v694
    %2074 = vmatpush1.msra.mxu0 %v693
    %2075 = vmatprep.subr.mxu0 %v702
    %2076 = vmatpush1.msra.mxu0 %v701
    %2077 = vmatprep.subr.mxu0 %v710
    %2078 = vmatpush1.msra.mxu0 %v709
    %2079 = vmatprep.subr.mxu0 %v718
    %2080 = vmatpush1.msra.mxu0 %v717
    %2081 = vmatprep.subr.mxu0 %v726
    %2082 = vmatpush1.msra.mxu0 %v725
    %2083 = vmatprep.subr.mxu0 %v734
    %2084 = vmatpush1.msra.mxu0 %v733
    %2085 = vmatprep.subr.mxu0 %v742
    %2086 = vmatpush1.msra.mxu0 %v741
    %2087 = vmatprep.subr.mxu0 %v750
    %2088 = vmatpush1.msra.mxu0 %v749
    %2089 = vmatprep.subr.mxu0 %v758
    %2090 = vmatpush1.msra.mxu0 %v757
    %2091 = vmatprep.subr.mxu0 %v766
    %2092 = vmatpush1.msra.mxu0 %v765
    %2093 = vmatprep.subr.mxu0 %v774
    %2094 = vmatpush1.msra.mxu0 %v773
    %2095 = vmatprep.subr.mxu0 %v782
    %2096 = vmatpush1.msra.mxu0 %v781
    %2097 = vmatprep.subr.mxu0 %v790
    %2098 = vmatpush1.msra.mxu0 %v789
    %2099 = vmatprep.subr.mxu0 %v798
    %2100 = vmatpush1.msra.mxu0 %v797
    %2101 = vmatprep.subr.mxu0 %v806
    %2102 = vmatpush1.msra.mxu0 %v805
    %2103 = vmatprep.subr.mxu0 %v814
    %2104 = vmatpush1.msra.mxu0 %v813
    %2105 = vmatprep.subr.mxu0 %v822
    %2106 = vmatpush1.msra.mxu0 %v821
    %2107 = vmatprep.subr.mxu0 %v830
    %2108 = vmatpush1.msra.mxu0 %v829
    %2109 = vmatprep.subr.mxu0 %v838
    %2110 = vmatpush1.msra.mxu0 %v837
    %2111 = vmatprep.subr.mxu0 %v846
    %2112 = vmatpush1.msra.mxu0 %v845
    %2113 = vmatprep.subr.mxu0 %v854
    %2114 = vmatpush1.msra.mxu0 %v853
    %2115 = vmatprep.subr.mxu0 %v862
    %2116 = vmatpush1.msra.mxu0 %v861
    %2117 = vmatprep.subr.mxu0 %v870
    %2118 = vmatpush1.msra.mxu0 %v869
    %2119 = vmatprep.subr.mxu0 %v878
    %2120 = vmatpush1.msra.mxu0 %v877
    %2121 = vmatprep.subr.mxu0 %v886
    %2122 = vmatpush1.msra.mxu0 %v885
    %2123 = vmatprep.subr.mxu0 %v894
    %2124 = vmatpush1.msra.mxu0 %v893
    %2125 = vmatprep.subr.mxu0 %v902
    %2126 = vmatpush1.msra.mxu0 %v901
    %2127 = vmatprep.subr.mxu0 %v910
    %2128 = vmatpush1.msra.mxu0 %v909
    %2129 = vmatprep.mubr.f32.mxu0 %v1977
    %2130 = vmatmul.mubr.f32.gmra.mrb[0].mxu0 %v1976
    %v2131 = vpop.f32.mrb[0].mxu0
    %v2132 = vadd.f32 0.0, %v2131
    %v2133 = vpop.f32.mrb[0].mxu0
    %v2134 = vadd.f32 0.0, %v2133
    %2135 = vdwg.mxu0
    %2136 = vmatprep.subr.mxu0 %v664
    %2137 = vmatpush1.msra.mxu0 %v663
    %2138 = vmatprep.subr.mxu0 %v672
    %2139 = vmatpush1.msra.mxu0 %v671
    %2140 = vmatprep.subr.mxu0 %v680
    %2141 = vmatpush1.msra.mxu0 %v679
    %2142 = vmatprep.subr.mxu0 %v688
    %2143 = vmatpush1.msra.mxu0 %v687
    %2144 = vmatprep.subr.mxu0 %v696
    %2145 = vmatpush1.msra.mxu0 %v695
    %2146 = vmatprep.subr.mxu0 %v704
    %2147 = vmatpush1.msra.mxu0 %v703
    %2148 = vmatprep.subr.mxu0 %v712
    %2149 = vmatpush1.msra.mxu0 %v711
    %2150 = vmatprep.subr.mxu0 %v720
    %2151 = vmatpush1.msra.mxu0 %v719
    %2152 = vmatprep.subr.mxu0 %v728
    %2153 = vmatpush1.msra.mxu0 %v727
    %2154 = vmatprep.subr.mxu0 %v736
    %2155 = vmatpush1.msra.mxu0 %v735
    %2156 = vmatprep.subr.mxu0 %v744
    %2157 = vmatpush1.msra.mxu0 %v743
    %2158 = vmatprep.subr.mxu0 %v752
    %2159 = vmatpush1.msra.mxu0 %v751
    %2160 = vmatprep.subr.mxu0 %v760
    %2161 = vmatpush1.msra.mxu0 %v759
    %2162 = vmatprep.subr.mxu0 %v768
    %2163 = vmatpush1.msra.mxu0 %v767
    %2164 = vmatprep.subr.mxu0 %v776
    %2165 = vmatpush1.msra.mxu0 %v775
    %2166 = vmatprep.subr.mxu0 %v784
    %2167 = vmatpush1.msra.mxu0 %v783
    %2168 = vmatprep.subr.mxu0 %v792
    %2169 = vmatpush1.msra.mxu0 %v791
    %2170 = vmatprep.subr.mxu0 %v800
    %2171 = vmatpush1.msra.mxu0 %v799
    %2172 = vmatprep.subr.mxu0 %v808
    %2173 = vmatpush1.msra.mxu0 %v807
    %2174 = vmatprep.subr.mxu0 %v816
    %2175 = vmatpush1.msra.mxu0 %v815
    %2176 = vmatprep.subr.mxu0 %v824
    %2177 = vmatpush1.msra.mxu0 %v823
    %2178 = vmatprep.subr.mxu0 %v832
    %2179 = vmatpush1.msra.mxu0 %v831
    %2180 = vmatprep.subr.mxu0 %v840
    %2181 = vmatpush1.msra.mxu0 %v839
    %2182 = vmatprep.subr.mxu0 %v848
    %2183 = vmatpush1.msra.mxu0 %v847
    %2184 = vmatprep.subr.mxu0 %v856
    %2185 = vmatpush1.msra.mxu0 %v855
    %2186 = vmatprep.subr.mxu0 %v864
    %2187 = vmatpush1.msra.mxu0 %v863
    %2188 = vmatprep.subr.mxu0 %v872
    %2189 = vmatpush1.msra.mxu0 %v871
    %2190 = vmatprep.subr.mxu0 %v880
    %2191 = vmatpush1.msra.mxu0 %v879
    %2192 = vmatprep.subr.mxu0 %v888
    %2193 = vmatpush1.msra.mxu0 %v887
    %2194 = vmatprep.subr.mxu0 %v896
    %2195 = vmatpush1.msra.mxu0 %v895
    %2196 = vmatprep.subr.mxu0 %v904
    %2197 = vmatpush1.msra.mxu0 %v903
    %2198 = vmatprep.subr.mxu0 %v912
    %2199 = vmatpush1.msra.mxu0 %v911
    %2200 = vmatprep.mubr.f32.mxu0 %v1977
    %2201 = vmatmul.mubr.f32.gmra.mrb[0].mxu0 %v1976
    %v2202 = vpop.f32.mrb[0].mxu0
    %v2203 = vadd.f32 0.0, %v2202
    %v2204 = vpop.f32.mrb[0].mxu0
    %v2205 = vadd.f32 0.0, %v2204
    %2206 = vdwg.mxu0
    %2207 = vmatprep.subr.mxu0 %v666
    %2208 = vmatpush1.msra.mxu0 %v665
    %2209 = vmatprep.subr.mxu0 %v674
    %2210 = vmatpush1.msra.mxu0 %v673
    %2211 = vmatprep.subr.mxu0 %v682
    %2212 = vmatpush1.msra.mxu0 %v681
    %2213 = vmatprep.subr.mxu0 %v690
    %2214 = vmatpush1.msra.mxu0 %v689
    %2215 = vmatprep.subr.mxu0 %v698
    %2216 = vmatpush1.msra.mxu0 %v697
    %2217 = vmatprep.subr.mxu0 %v706
    %2218 = vmatpush1.msra.mxu0 %v705
    %2219 = vmatprep.subr.mxu0 %v714
    %2220 = vmatpush1.msra.mxu0 %v713
    %2221 = vmatprep.subr.mxu0 %v722
    %2222 = vmatpush1.msra.mxu0 %v721
    %2223 = vmatprep.subr.mxu0 %v730
    %2224 = vmatpush1.msra.mxu0 %v729
    %2225 = vmatprep.subr.mxu0 %v738
    %2226 = vmatpush1.msra.mxu0 %v737
    %2227 = vmatprep.subr.mxu0 %v746
    %2228 = vmatpush1.msra.mxu0 %v745
    %2229 = vmatprep.subr.mxu0 %v754
    %2230 = vmatpush1.msra.mxu0 %v753
    %2231 = vmatprep.subr.mxu0 %v762
    %2232 = vmatpush1.msra.mxu0 %v761
    %2233 = vmatprep.subr.mxu0 %v770
    %2234 = vmatpush1.msra.mxu0 %v769
    %2235 = vmatprep.subr.mxu0 %v778
    %2236 = vmatpush1.msra.mxu0 %v777
    %2237 = vmatprep.subr.mxu0 %v786
    %2238 = vmatpush1.msra.mxu0 %v785
    %2239 = vmatprep.subr.mxu0 %v794
    %2240 = vmatpush1.msra.mxu0 %v793
    %2241 = vmatprep.subr.mxu0 %v802
    %2242 = vmatpush1.msra.mxu0 %v801
    %2243 = vmatprep.subr.mxu0 %v810
    %2244 = vmatpush1.msra.mxu0 %v809
    %2245 = vmatprep.subr.mxu0 %v818
    %2246 = vmatpush1.msra.mxu0 %v817
    %2247 = vmatprep.subr.mxu0 %v826
    %2248 = vmatpush1.msra.mxu0 %v825
    %2249 = vmatprep.subr.mxu0 %v834
    %2250 = vmatpush1.msra.mxu0 %v833
    %2251 = vmatprep.subr.mxu0 %v842
    %2252 = vmatpush1.msra.mxu0 %v841
    %2253 = vmatprep.subr.mxu0 %v850
    %2254 = vmatpush1.msra.mxu0 %v849
    %2255 = vmatprep.subr.mxu0 %v858
    %2256 = vmatpush1.msra.mxu0 %v857
    %2257 = vmatprep.subr.mxu0 %v866
    %2258 = vmatpush1.msra.mxu0 %v865
    %2259 = vmatprep.subr.mxu0 %v874
    %2260 = vmatpush1.msra.mxu0 %v873
    %2261 = vmatprep.subr.mxu0 %v882
    %2262 = vmatpush1.msra.mxu0 %v881
    %2263 = vmatprep.subr.mxu0 %v890
    %2264 = vmatpush1.msra.mxu0 %v889
    %2265 = vmatprep.subr.mxu0 %v898
    %2266 = vmatpush1.msra.mxu0 %v897
    %2267 = vmatprep.subr.mxu0 %v906
    %2268 = vmatpush1.msra.mxu0 %v905
    %2269 = vmatprep.subr.mxu0 %v914
    %2270 = vmatpush1.msra.mxu0 %v913
    %2271 = vmatprep.mubr.f32.mxu0 %v1977
    %2272 = vmatmul.mubr.f32.gmra.mrb[0].mxu0 %v1976
    %v2273 = vpop.f32.mrb[0].mxu0
    %v2274 = vadd.f32 0.0, %v2273
    %v2275 = vpop.f32.mrb[0].mxu0
    %v2276 = vadd.f32 0.0, %v2275
    %2277 = vdwg.mxu0
    %v2278 = vadd.f32 %v1986, %v2061
    %v2279 = vadd.f32 %v1987, %v2063
    %v2280 = vadd.f32 %v1988, %v2132
    %v2281 = vadd.f32 %v1989, %v2134
    %v2282 = vadd.f32 %v1990, %v2203
    %v2283 = vadd.f32 %v1991, %v2205
    %v2284 = vadd.f32 %v1992, %v2274
    %v2285 = vadd.f32 %v1993, %v2276
    %v2286 = vxor.u32 %v2278, 2147483648
    %v2287 = vxor.u32 %v2279, 2147483648
    %v2288 = vmul.f32 %v2286, 1.442695
    %v2289 = vpow.pop %v2288
    %v2290 = vmul.f32 %v2287, 1.442695
    %v2291 = vpow.pop %v2290
    %v2292 = vadd.f32 %v2289, 1.0
    %v2293 = vadd.f32 %v2291, 1.0
    %v2294 = vrcp.pop %v2292
    %v2295 = vmul.f32 1.0, %v2294
    %v2296 = vrcp.pop %v2293
    %v2297 = vmul.f32 1.0, %v2296
    %v2298 = vxor.u32 %v2280, 2147483648
    %v2299 = vxor.u32 %v2281, 2147483648
    %v2300 = vmul.f32 %v2298, 1.442695
    %v2301 = vpow.pop %v2300
    %v2302 = vmul.f32 %v2299, 1.442695
    %v2303 = vpow.pop %v2302
    %v2304 = vadd.f32 %v2301, 1.0
    %v2305 = vadd.f32 %v2303, 1.0
    %v2306 = vrcp.pop %v2304
    %v2307 = vmul.f32 1.0, %v2306
    %v2308 = vrcp.pop %v2305
    %v2309 = vmul.f32 1.0, %v2308
    %v2310 = vtanh.pop %v2282
    %v2311 = vtanh.pop %v2283
    %v2312 = vxor.u32 %v2284, 2147483648
    %v2313 = vxor.u32 %v2285, 2147483648
    %v2314 = vmul.f32 %v2312, 1.442695
    %v2315 = vpow.pop %v2314
    %v2316 = vmul.f32 %v2313, 1.442695
    %v2317 = vpow.pop %v2316
    %v2318 = vadd.f32 %v2315, 1.0
    %v2319 = vadd.f32 %v2317, 1.0
    %v2320 = vrcp.pop %v2318
    %v2321 = vmul.f32 1.0, %v2320
    %v2322 = vrcp.pop %v2319
    %v2323 = vmul.f32 1.0, %v2322
    %v2324 = vmul.f32 %v2307, %v1972
    %v2325 = vmul.f32 %v2309, %v1973
    %v2326 = vmul.f32 %v2295, %v2310
    %v2327 = vmul.f32 %v2297, %v2311
    %v2328 = vadd.f32 %v2324, %v2326
    %v2329 = vadd.f32 %v2325, %v2327
    %v2330 = vtanh.pop %v2328
    %v2331 = vtanh.pop %v2329
    %v2332 = vmul.f32 %v2321, %v2330
    %v2333 = vmul.f32 %v2323, %v2331
    %s2334 = smul.u32 3, 2
    %s2335 = smul.addr %s2334, 8
    %s2336 = scalar_lea.vmem [#allocation3], %s2335
    %2337 = vst [vmem:[%s2336] sm:$0xff] %v2332
    %2338 = vst [vmem:[%s2336 + $0x8] sm:$0xff] %v2333
    %s2339 = smul.u32 4, 8
    %s2340 = smul.addr %s2339, 8
    %s2341 = scalar_lea.vmem [#allocation2], %s2340
    %v2342 = vld [vmem:[%s2341] sm:$0xff]
    %v2343 = vld [vmem:[%s2341 + $0x8] sm:$0xff]
    %v2344 = vld [vmem:[%s2341 + $0x10] sm:$0xff]
    %v2345 = vld [vmem:[%s2341 + $0x18] sm:$0xff]
    %v2346 = vld [vmem:[%s2341 + $0x20] sm:$0xff]
    %v2347 = vld [vmem:[%s2341 + $0x28] sm:$0xff]
    %v2348 = vld [vmem:[%s2341 + $0x30] sm:$0xff]
    %v2349 = vld [vmem:[%s2341 + $0x38] sm:$0xff]
    %2350 = vmatprep.subr.mxu0 %v660
    %2351 = vmatpush1.msra.mxu0 %v659
    %2352 = vmatprep.subr.mxu0 %v668
    %2353 = vmatpush1.msra.mxu0 %v667
    %2354 = vmatprep.subr.mxu0 %v676
    %2355 = vmatpush1.msra.mxu0 %v675
    %2356 = vmatprep.subr.mxu0 %v684
    %2357 = vmatpush1.msra.mxu0 %v683
    %2358 = vmatprep.subr.mxu0 %v692
    %2359 = vmatpush1.msra.mxu0 %v691
    %2360 = vmatprep.subr.mxu0 %v700
    %2361 = vmatpush1.msra.mxu0 %v699
    %2362 = vmatprep.subr.mxu0 %v708
    %2363 = vmatpush1.msra.mxu0 %v707
    %2364 = vmatprep.subr.mxu0 %v716
    %2365 = vmatpush1.msra.mxu0 %v715
    %2366 = vmatprep.subr.mxu0 %v724
    %2367 = vmatpush1.msra.mxu0 %v723
    %2368 = vmatprep.subr.mxu0 %v732
    %2369 = vmatpush1.msra.mxu0 %v731
    %2370 = vmatprep.subr.mxu0 %v740
    %2371 = vmatpush1.msra.mxu0 %v739
    %2372 = vmatprep.subr.mxu0 %v748
    %2373 = vmatpush1.msra.mxu0 %v747
    %2374 = vmatprep.subr.mxu0 %v756
    %2375 = vmatpush1.msra.mxu0 %v755
    %2376 = vmatprep.subr.mxu0 %v764
    %2377 = vmatpush1.msra.mxu0 %v763
    %2378 = vmatprep.subr.mxu0 %v772
    %2379 = vmatpush1.msra.mxu0 %v771
    %2380 = vmatprep.subr.mxu0 %v780
    %2381 = vmatpush1.msra.mxu0 %v779
    %2382 = vmatprep.subr.mxu0 %v788
    %2383 = vmatpush1.msra.mxu0 %v787
    %2384 = vmatprep.subr.mxu0 %v796
    %2385 = vmatpush1.msra.mxu0 %v795
    %2386 = vmatprep.subr.mxu0 %v804
    %2387 = vmatpush1.msra.mxu0 %v803
    %2388 = vmatprep.subr.mxu0 %v812
    %2389 = vmatpush1.msra.mxu0 %v811
    %2390 = vmatprep.subr.mxu0 %v820
    %2391 = vmatpush1.msra.mxu0 %v819
    %2392 = vmatprep.subr.mxu0 %v828
    %2393 = vmatpush1.msra.mxu0 %v827
    %2394 = vmatprep.subr.mxu0 %v836
    %2395 = vmatpush1.msra.mxu0 %v835
    %2396 = vmatprep.subr.mxu0 %v844
    %2397 = vmatpush1.msra.mxu0 %v843
    %2398 = vmatprep.subr.mxu0 %v852
    %2399 = vmatpush1.msra.mxu0 %v851
    %2400 = vmatprep.subr.mxu0 %v860
    %2401 = vmatpush1.msra.mxu0 %v859
    %2402 = vmatprep.subr.mxu0 %v868
    %2403 = vmatpush1.msra.mxu0 %v867
    %2404 = vmatprep.subr.mxu0 %v876
    %2405 = vmatpush1.msra.mxu0 %v875
    %2406 = vmatprep.subr.mxu0 %v884
    %2407 = vmatpush1.msra.mxu0 %v883
    %2408 = vmatprep.subr.mxu0 %v892
    %2409 = vmatpush1.msra.mxu0 %v891
    %2410 = vmatprep.subr.mxu0 %v900
    %2411 = vmatpush1.msra.mxu0 %v899
    %2412 = vmatprep.subr.mxu0 %v908
    %2413 = vmatpush1.msra.mxu0 %v907
    %2414 = vmatprep.mubr.f32.mxu0 %v2333
    %2415 = vmatmul.mubr.f32.gmra.mrb[0].mxu0 %v2332
    %v2416 = vpop.f32.mrb[0].mxu0
    %v2417 = vadd.f32 0.0, %v2416
    %v2418 = vpop.f32.mrb[0].mxu0
    %v2419 = vadd.f32 0.0, %v2418
    %2420 = vdwg.mxu0
    %2421 = vmatprep.subr.mxu0 %v662
    %2422 = vmatpush1.msra.mxu0 %v661
    %2423 = vmatprep.subr.mxu0 %v670
    %2424 = vmatpush1.msra.mxu0 %v669
    %2425 = vmatprep.subr.mxu0 %v678
    %2426 = vmatpush1.msra.mxu0 %v677
    %2427 = vmatprep.subr.mxu0 %v686
    %2428 = vmatpush1.msra.mxu0 %v685
    %2429 = vmatprep.subr.mxu0 %v694
    %2430 = vmatpush1.msra.mxu0 %v693
    %2431 = vmatprep.subr.mxu0 %v702
    %2432 = vmatpush1.msra.mxu0 %v701
    %2433 = vmatprep.subr.mxu0 %v710
    %2434 = vmatpush1.msra.mxu0 %v709
    %2435 = vmatprep.subr.mxu0 %v718
    %2436 = vmatpush1.msra.mxu0 %v717
    %2437 = vmatprep.subr.mxu0 %v726
    %2438 = vmatpush1.msra.mxu0 %v725
    %2439 = vmatprep.subr.mxu0 %v734
    %2440 = vmatpush1.msra.mxu0 %v733
    %2441 = vmatprep.subr.mxu0 %v742
    %2442 = vmatpush1.msra.mxu0 %v741
    %2443 = vmatprep.subr.mxu0 %v750
    %2444 = vmatpush1.msra.mxu0 %v749
    %2445 = vmatprep.subr.mxu0 %v758
    %2446 = vmatpush1.msra.mxu0 %v757
    %2447 = vmatprep.subr.mxu0 %v766
    %2448 = vmatpush1.msra.mxu0 %v765
    %2449 = vmatprep.subr.mxu0 %v774
    %2450 = vmatpush1.msra.mxu0 %v773
    %2451 = vmatprep.subr.mxu0 %v782
    %2452 = vmatpush1.msra.mxu0 %v781
    %2453 = vmatprep.subr.mxu0 %v790
    %2454 = vmatpush1.msra.mxu0 %v789
    %2455 = vmatprep.subr.mxu0 %v798
    %2456 = vmatpush1.msra.mxu0 %v797
    %2457 = vmatprep.subr.mxu0 %v806
    %2458 = vmatpush1.msra.mxu0 %v805
    %2459 = vmatprep.subr.mxu0 %v814
    %2460 = vmatpush1.msra.mxu0 %v813
    %2461 = vmatprep.subr.mxu0 %v822
    %2462 = vmatpush1.msra.mxu0 %v821
    %2463 = vmatprep.subr.mxu0 %v830
    %2464 = vmatpush1.msra.mxu0 %v829
    %2465 = vmatprep.subr.mxu0 %v838
    %2466 = vmatpush1.msra.mxu0 %v837
    %2467 = vmatprep.subr.mxu0 %v846
    %2468 = vmatpush1.msra.mxu0 %v845
    %2469 = vmatprep.subr.mxu0 %v854
    %2470 = vmatpush1.msra.mxu0 %v853
    %2471 = vmatprep.subr.mxu0 %v862
    %2472 = vmatpush1.msra.mxu0 %v861
    %2473 = vmatprep.subr.mxu0 %v870
    %2474 = vmatpush1.msra.mxu0 %v869
    %2475 = vmatprep.subr.mxu0 %v878
    %2476 = vmatpush1.msra.mxu0 %v877
    %2477 = vmatprep.subr.mxu0 %v886
    %2478 = vmatpush1.msra.mxu0 %v885
    %2479 = vmatprep.subr.mxu0 %v894
    %2480 = vmatpush1.msra.mxu0 %v893
    %2481 = vmatprep.subr.mxu0 %v902
    %2482 = vmatpush1.msra.mxu0 %v901
    %2483 = vmatprep.subr.mxu0 %v910
    %2484 = vmatpush1.msra.mxu0 %v909
    %2485 = vmatprep.mubr.f32.mxu0 %v2333
    %2486 = vmatmul.mubr.f32.gmra.mrb[0].mxu0 %v2332
    %v2487 = vpop.f32.mrb[0].mxu0
    %v2488 = vadd.f32 0.0, %v2487
    %v2489 = vpop.f32.mrb[0].mxu0
    %v2490 = vadd.f32 0.0, %v2489
    %2491 = vdwg.mxu0
    %2492 = vmatprep.subr.mxu0 %v664
    %2493 = vmatpush1.msra.mxu0 %v663
    %2494 = vmatprep.subr.mxu0 %v672
    %2495 = vmatpush1.msra.mxu0 %v671
    %2496 = vmatprep.subr.mxu0 %v680
    %2497 = vmatpush1.msra.mxu0 %v679
    %2498 = vmatprep.subr.mxu0 %v688
    %2499 = vmatpush1.msra.mxu0 %v687
    %2500 = vmatprep.subr.mxu0 %v696
    %2501 = vmatpush1.msra.mxu0 %v695
    %2502 = vmatprep.subr.mxu0 %v704
    %2503 = vmatpush1.msra.mxu0 %v703
    %2504 = vmatprep.subr.mxu0 %v712
    %2505 = vmatpush1.msra.mxu0 %v711
    %2506 = vmatprep.subr.mxu0 %v720
    %2507 = vmatpush1.msra.mxu0 %v719
    %2508 = vmatprep.subr.mxu0 %v728
    %2509 = vmatpush1.msra.mxu0 %v727
    %2510 = vmatprep.subr.mxu0 %v736
    %2511 = vmatpush1.msra.mxu0 %v735
    %2512 = vmatprep.subr.mxu0 %v744
    %2513 = vmatpush1.msra.mxu0 %v743
    %2514 = vmatprep.subr.mxu0 %v752
    %2515 = vmatpush1.msra.mxu0 %v751
    %2516 = vmatprep.subr.mxu0 %v760
    %2517 = vmatpush1.msra.mxu0 %v759
    %2518 = vmatprep.subr.mxu0 %v768
    %2519 = vmatpush1.msra.mxu0 %v767
    %2520 = vmatprep.subr.mxu0 %v776
    %2521 = vmatpush1.msra.mxu0 %v775
    %2522 = vmatprep.subr.mxu0 %v784
    %2523 = vmatpush1.msra.mxu0 %v783
    %2524 = vmatprep.subr.mxu0 %v792
    %2525 = vmatpush1.msra.mxu0 %v791
    %2526 = vmatprep.subr.mxu0 %v800
    %2527 = vmatpush1.msra.mxu0 %v799
    %2528 = vmatprep.subr.mxu0 %v808
    %2529 = vmatpush1.msra.mxu0 %v807
    %2530 = vmatprep.subr.mxu0 %v816
    %2531 = vmatpush1.msra.mxu0 %v815
    %2532 = vmatprep.subr.mxu0 %v824
    %2533 = vmatpush1.msra.mxu0 %v823
    %2534 = vmatprep.subr.mxu0 %v832
    %2535 = vmatpush1.msra.mxu0 %v831
    %2536 = vmatprep.subr.mxu0 %v840
    %2537 = vmatpush1.msra.mxu0 %v839
    %2538 = vmatprep.subr.mxu0 %v848
    %2539 = vmatpush1.msra.mxu0 %v847
    %2540 = vmatprep.subr.mxu0 %v856
    %2541 = vmatpush1.msra.mxu0 %v855
    %2542 = vmatprep.subr.mxu0 %v864
    %2543 = vmatpush1.msra.mxu0 %v863
    %2544 = vmatprep.subr.mxu0 %v872
    %2545 = vmatpush1.msra.mxu0 %v871
    %2546 = vmatprep.subr.mxu0 %v880
    %2547 = vmatpush1.msra.mxu0 %v879
    %2548 = vmatprep.subr.mxu0 %v888
    %2549 = vmatpush1.msra.mxu0 %v887
    %2550 = vmatprep.subr.mxu0 %v896
    %2551 = vmatpush1.msra.mxu0 %v895
    %2552 = vmatprep.subr.mxu0 %v904
    %2553 = vmatpush1.msra.mxu0 %v903
    %2554 = vmatprep.subr.mxu0 %v912
    %2555 = vmatpush1.msra.mxu0 %v911
    %2556 = vmatprep.mubr.f32.mxu0 %v2333
    %2557 = vmatmul.mubr.f32.gmra.mrb[0].mxu0 %v2332
    %v2558 = vpop.f32.mrb[0].mxu0
    %v2559 = vadd.f32 0.0, %v2558
    %v2560 = vpop.f32.mrb[0].mxu0
    %v2561 = vadd.f32 0.0, %v2560
    %2562 = vdwg.mxu0
    %2563 = vmatprep.subr.mxu0 %v666
    %2564 = vmatpush1.msra.mxu0 %v665
    %2565 = vmatprep.subr.mxu0 %v674
    %2566 = vmatpush1.msra.mxu0 %v673
    %2567 = vmatprep.subr.mxu0 %v682
    %2568 = vmatpush1.msra.mxu0 %v681
    %2569 = vmatprep.subr.mxu0 %v690
    %2570 = vmatpush1.msra.mxu0 %v689
    %2571 = vmatprep.subr.mxu0 %v698
    %2572 = vmatpush1.msra.mxu0 %v697
    %2573 = vmatprep.subr.mxu0 %v706
    %2574 = vmatpush1.msra.mxu0 %v705
    %2575 = vmatprep.subr.mxu0 %v714
    %2576 = vmatpush1.msra.mxu0 %v713
    %2577 = vmatprep.subr.mxu0 %v722
    %2578 = vmatpush1.msra.mxu0 %v721
    %2579 = vmatprep.subr.mxu0 %v730
    %2580 = vmatpush1.msra.mxu0 %v729
    %2581 = vmatprep.subr.mxu0 %v738
    %2582 = vmatpush1.msra.mxu0 %v737
    %2583 = vmatprep.subr.mxu0 %v746
    %2584 = vmatpush1.msra.mxu0 %v745
    %2585 = vmatprep.subr.mxu0 %v754
    %2586 = vmatpush1.msra.mxu0 %v753
    %2587 = vmatprep.subr.mxu0 %v762
    %2588 = vmatpush1.msra.mxu0 %v761
    %2589 = vmatprep.subr.mxu0 %v770
    %2590 = vmatpush1.msra.mxu0 %v769
    %2591 = vmatprep.subr.mxu0 %v778
    %2592 = vmatpush1.msra.mxu0 %v777
    %2593 = vmatprep.subr.mxu0 %v786
    %2594 = vmatpush1.msra.mxu0 %v785
    %2595 = vmatprep.subr.mxu0 %v794
    %2596 = vmatpush1.msra.mxu0 %v793
    %2597 = vmatprep.subr.mxu0 %v802
    %2598 = vmatpush1.msra.mxu0 %v801
    %2599 = vmatprep.subr.mxu0 %v810
    %2600 = vmatpush1.msra.mxu0 %v809
    %2601 = vmatprep.subr.mxu0 %v818
    %2602 = vmatpush1.msra.mxu0 %v817
    %2603 = vmatprep.subr.mxu0 %v826
    %2604 = vmatpush1.msra.mxu0 %v825
    %2605 = vmatprep.subr.mxu0 %v834
    %2606 = vmatpush1.msra.mxu0 %v833
    %2607 = vmatprep.subr.mxu0 %v842
    %2608 = vmatpush1.msra.mxu0 %v841
    %2609 = vmatprep.subr.mxu0 %v850
    %2610 = vmatpush1.msra.mxu0 %v849
    %2611 = vmatprep.subr.mxu0 %v858
    %2612 = vmatpush1.msra.mxu0 %v857
    %2613 = vmatprep.subr.mxu0 %v866
    %2614 = vmatpush1.msra.mxu0 %v865
    %2615 = vmatprep.subr.mxu0 %v874
    %2616 = vmatpush1.msra.mxu0 %v873
    %2617 = vmatprep.subr.mxu0 %v882
    %2618 = vmatpush1.msra.mxu0 %v881
    %2619 = vmatprep.subr.mxu0 %v890
    %2620 = vmatpush1.msra.mxu0 %v889
    %2621 = vmatprep.subr.mxu0 %v898
    %2622 = vmatpush1.msra.mxu0 %v897
    %2623 = vmatprep.subr.mxu0 %v906
    %2624 = vmatpush1.msra.mxu0 %v905
    %2625 = vmatprep.subr.mxu0 %v914
    %2626 = vmatpush1.msra.mxu0 %v913
    %2627 = vmatprep.mubr.f32.mxu0 %v2333
    %2628 = vmatmul.mubr.f32.gmra.mrb[0].mxu0 %v2332
    %v2629 = vpop.f32.mrb[0].mxu0
    %v2630 = vadd.f32 0.0, %v2629
    %v2631 = vpop.f32.mrb[0].mxu0
    %v2632 = vadd.f32 0.0, %v2631
    %2633 = vdwg.mxu0
    %v2634 = vadd.f32 %v2342, %v2417
    %v2635 = vadd.f32 %v2343, %v2419
    %v2636 = vadd.f32 %v2344, %v2488
    %v2637 = vadd.f32 %v2345, %v2490
    %v2638 = vadd.f32 %v2346, %v2559
    %v2639 = vadd.f32 %v2347, %v2561
    %v2640 = vadd.f32 %v2348, %v2630
    %v2641 = vadd.f32 %v2349, %v2632
    %v2642 = vxor.u32 %v2634, 2147483648
    %v2643 = vxor.u32 %v2635, 2147483648
    %v2644 = vmul.f32 %v2642, 1.442695
    %v2645 = vpow.pop %v2644
    %v2646 = vmul.f32 %v2643, 1.442695
    %v2647 = vpow.pop %v2646
    %v2648 = vadd.f32 %v2645, 1.0
    %v2649 = vadd.f32 %v2647, 1.0
    %v2650 = vrcp.pop %v2648
    %v2651 = vmul.f32 1.0, %v2650
    %v2652 = vrcp.pop %v2649
    %v2653 = vmul.f32 1.0, %v2652
    %v2654 = vxor.u32 %v2636, 2147483648
    %v2655 = vxor.u32 %v2637, 2147483648
    %v2656 = vmul.f32 %v2654, 1.442695
    %v2657 = vpow.pop %v2656
    %v2658 = vmul.f32 %v2655, 1.442695
    %v2659 = vpow.pop %v2658
    %v2660 = vadd.f32 %v2657, 1.0
    %v2661 = vadd.f32 %v2659, 1.0
    %v2662 = vrcp.pop %v2660
    %v2663 = vmul.f32 1.0, %v2662
    %v2664 = vrcp.pop %v2661
    %v2665 = vmul.f32 1.0, %v2664
    %v2666 = vtanh.pop %v2638
    %v2667 = vtanh.pop %v2639
    %v2668 = vxor.u32 %v2640, 2147483648
    %v2669 = vxor.u32 %v2641, 2147483648
    %v2670 = vmul.f32 %v2668, 1.442695
    %v2671 = vpow.pop %v2670
    %v2672 = vmul.f32 %v2669, 1.442695
    %v2673 = vpow.pop %v2672
    %v2674 = vadd.f32 %v2671, 1.0
    %v2675 = vadd.f32 %v2673, 1.0
    %v2676 = vrcp.pop %v2674
    %v2677 = vmul.f32 1.0, %v2676
    %v2678 = vrcp.pop %v2675
    %v2679 = vmul.f32 1.0, %v2678
    %v2680 = vmul.f32 %v2663, %v2328
    %v2681 = vmul.f32 %v2665, %v2329
    %v2682 = vmul.f32 %v2651, %v2666
    %v2683 = vmul.f32 %v2653, %v2667
    %v2684 = vadd.f32 %v2680, %v2682
    %v2685 = vadd.f32 %v2681, %v2683
    %v2686 = vtanh.pop %v2684
    %v2687 = vtanh.pop %v2685
    %v2688 = vmul.f32 %v2677, %v2686
    %v2689 = vmul.f32 %v2679, %v2687
    %s2690 = smul.u32 4, 2
    %s2691 = smul.addr %s2690, 8
    %s2692 = scalar_lea.vmem [#allocation3], %s2691
    %2693 = vst [vmem:[%s2692] sm:$0xff] %v2688
    %2694 = vst [vmem:[%s2692 + $0x8] sm:$0xff] %v2689
    %s2695 = smul.u32 5, 8
    %s2696 = smul.addr %s2695, 8
    %s2697 = scalar_lea.vmem [#allocation2], %s2696
    %v2698 = vld [vmem:[%s2697] sm:$0xff]
    %v2699 = vld [vmem:[%s2697 + $0x8] sm:$0xff]
    %v2700 = vld [vmem:[%s2697 + $0x10] sm:$0xff]
    %v2701 = vld [vmem:[%s2697 + $0x18] sm:$0xff]
    %v2702 = vld [vmem:[%s2697 + $0x20] sm:$0xff]
    %v2703 = vld [vmem:[%s2697 + $0x28] sm:$0xff]
    %v2704 = vld [vmem:[%s2697 + $0x30] sm:$0xff]
    %v2705 = vld [vmem:[%s2697 + $0x38] sm:$0xff]
    %2706 = vmatprep.subr.mxu0 %v660
    %2707 = vmatpush1.msra.mxu0 %v659
    %2708 = vmatprep.subr.mxu0 %v668
    %2709 = vmatpush1.msra.mxu0 %v667
    %2710 = vmatprep.subr.mxu0 %v676
    %2711 = vmatpush1.msra.mxu0 %v675
    %2712 = vmatprep.subr.mxu0 %v684
    %2713 = vmatpush1.msra.mxu0 %v683
    %2714 = vmatprep.subr.mxu0 %v692
    %2715 = vmatpush1.msra.mxu0 %v691
    %2716 = vmatprep.subr.mxu0 %v700
    %2717 = vmatpush1.msra.mxu0 %v699
    %2718 = vmatprep.subr.mxu0 %v708
    %2719 = vmatpush1.msra.mxu0 %v707
    %2720 = vmatprep.subr.mxu0 %v716
    %2721 = vmatpush1.msra.mxu0 %v715
    %2722 = vmatprep.subr.mxu0 %v724
    %2723 = vmatpush1.msra.mxu0 %v723
    %2724 = vmatprep.subr.mxu0 %v732
    %2725 = vmatpush1.msra.mxu0 %v731
    %2726 = vmatprep.subr.mxu0 %v740
    %2727 = vmatpush1.msra.mxu0 %v739
    %2728 = vmatprep.subr.mxu0 %v748
    %2729 = vmatpush1.msra.mxu0 %v747
    %2730 = vmatprep.subr.mxu0 %v756
    %2731 = vmatpush1.msra.mxu0 %v755
    %2732 = vmatprep.subr.mxu0 %v764
    %2733 = vmatpush1.msra.mxu0 %v763
    %2734 = vmatprep.subr.mxu0 %v772
    %2735 = vmatpush1.msra.mxu0 %v771
    %2736 = vmatprep.subr.mxu0 %v780
    %2737 = vmatpush1.msra.mxu0 %v779
    %2738 = vmatprep.subr.mxu0 %v788
    %2739 = vmatpush1.msra.mxu0 %v787
    %2740 = vmatprep.subr.mxu0 %v796
    %2741 = vmatpush1.msra.mxu0 %v795
    %2742 = vmatprep.subr.mxu0 %v804
    %2743 = vmatpush1.msra.mxu0 %v803
    %2744 = vmatprep.subr.mxu0 %v812
    %2745 = vmatpush1.msra.mxu0 %v811
    %2746 = vmatprep.subr.mxu0 %v820
    %2747 = vmatpush1.msra.mxu0 %v819
    %2748 = vmatprep.subr.mxu0 %v828
    %2749 = vmatpush1.msra.mxu0 %v827
    %2750 = vmatprep.subr.mxu0 %v836
    %2751 = vmatpush1.msra.mxu0 %v835
    %2752 = vmatprep.subr.mxu0 %v844
    %2753 = vmatpush1.msra.mxu0 %v843
    %2754 = vmatprep.subr.mxu0 %v852
    %2755 = vmatpush1.msra.mxu0 %v851
    %2756 = vmatprep.subr.mxu0 %v860
    %2757 = vmatpush1.msra.mxu0 %v859
    %2758 = vmatprep.subr.mxu0 %v868
    %2759 = vmatpush1.msra.mxu0 %v867
    %2760 = vmatprep.subr.mxu0 %v876
    %2761 = vmatpush1.msra.mxu0 %v875
    %2762 = vmatprep.subr.mxu0 %v884
    %2763 = vmatpush1.msra.mxu0 %v883
    %2764 = vmatprep.subr.mxu0 %v892
    %2765 = vmatpush1.msra.mxu0 %v891
    %2766 = vmatprep.subr.mxu0 %v900
    %2767 = vmatpush1.msra.mxu0 %v899
    %2768 = vmatprep.subr.mxu0 %v908
    %2769 = vmatpush1.msra.mxu0 %v907
    %2770 = vmatprep.mubr.f32.mxu0 %v2689
    %2771 = vmatmul.mubr.f32.gmra.mrb[0].mxu0 %v2688
    %v2772 = vpop.f32.mrb[0].mxu0
    %v2773 = vadd.f32 0.0, %v2772
    %v2774 = vpop.f32.mrb[0].mxu0
    %v2775 = vadd.f32 0.0, %v2774
    %2776 = vdwg.mxu0
    %2777 = vmatprep.subr.mxu0 %v662
    %2778 = vmatpush1.msra.mxu0 %v661
    %2779 = vmatprep.subr.mxu0 %v670
    %2780 = vmatpush1.msra.mxu0 %v669
    %2781 = vmatprep.subr.mxu0 %v678
    %2782 = vmatpush1.msra.mxu0 %v677
    %2783 = vmatprep.subr.mxu0 %v686
    %2784 = vmatpush1.msra.mxu0 %v685
    %2785 = vmatprep.subr.mxu0 %v694
    %2786 = vmatpush1.msra.mxu0 %v693
    %2787 = vmatprep.subr.mxu0 %v702
    %2788 = vmatpush1.msra.mxu0 %v701
    %2789 = vmatprep.subr.mxu0 %v710
    %2790 = vmatpush1.msra.mxu0 %v709
    %2791 = vmatprep.subr.mxu0 %v718
    %2792 = vmatpush1.msra.mxu0 %v717
    %2793 = vmatprep.subr.mxu0 %v726
    %2794 = vmatpush1.msra.mxu0 %v725
    %2795 = vmatprep.subr.mxu0 %v734
    %2796 = vmatpush1.msra.mxu0 %v733
    %2797 = vmatprep.subr.mxu0 %v742
    %2798 = vmatpush1.msra.mxu0 %v741
    %2799 = vmatprep.subr.mxu0 %v750
    %2800 = vmatpush1.msra.mxu0 %v749
    %2801 = vmatprep.subr.mxu0 %v758
    %2802 = vmatpush1.msra.mxu0 %v757
    %2803 = vmatprep.subr.mxu0 %v766
    %2804 = vmatpush1.msra.mxu0 %v765
    %2805 = vmatprep.subr.mxu0 %v774
    %2806 = vmatpush1.msra.mxu0 %v773
    %2807 = vmatprep.subr.mxu0 %v782
    %2808 = vmatpush1.msra.mxu0 %v781
    %2809 = vmatprep.subr.mxu0 %v790
    %2810 = vmatpush1.msra.mxu0 %v789
    %2811 = vmatprep.subr.mxu0 %v798
    %2812 = vmatpush1.msra.mxu0 %v797
    %2813 = vmatprep.subr.mxu0 %v806
    %2814 = vmatpush1.msra.mxu0 %v805
    %2815 = vmatprep.subr.mxu0 %v814
    %2816 = vmatpush1.msra.mxu0 %v813
    %2817 = vmatprep.subr.mxu0 %v822
    %2818 = vmatpush1.msra.mxu0 %v821
    %2819 = vmatprep.subr.mxu0 %v830
    %2820 = vmatpush1.msra.mxu0 %v829
    %2821 = vmatprep.subr.mxu0 %v838
    %2822 = vmatpush1.msra.mxu0 %v837
    %2823 = vmatprep.subr.mxu0 %v846
    %2824 = vmatpush1.msra.mxu0 %v845
    %2825 = vmatprep.subr.mxu0 %v854
    %2826 = vmatpush1.msra.mxu0 %v853
    %2827 = vmatprep.subr.mxu0 %v862
    %2828 = vmatpush1.msra.mxu0 %v861
    %2829 = vmatprep.subr.mxu0 %v870
    %2830 = vmatpush1.msra.mxu0 %v869
    %2831 = vmatprep.subr.mxu0 %v878
    %2832 = vmatpush1.msra.mxu0 %v877
    %2833 = vmatprep.subr.mxu0 %v886
    %2834 = vmatpush1.msra.mxu0 %v885
    %2835 = vmatprep.subr.mxu0 %v894
    %2836 = vmatpush1.msra.mxu0 %v893
    %2837 = vmatprep.subr.mxu0 %v902
    %2838 = vmatpush1.msra.mxu0 %v901
    %2839 = vmatprep.subr.mxu0 %v910
    %2840 = vmatpush1.msra.mxu0 %v909
    %2841 = vmatprep.mubr.f32.mxu0 %v2689
    %2842 = vmatmul.mubr.f32.gmra.mrb[0].mxu0 %v2688
    %v2843 = vpop.f32.mrb[0].mxu0
    %v2844 = vadd.f32 0.0, %v2843
    %v2845 = vpop.f32.mrb[0].mxu0
    %v2846 = vadd.f32 0.0, %v2845
    %2847 = vdwg.mxu0
    %2848 = vmatprep.subr.mxu0 %v664
    %2849 = vmatpush1.msra.mxu0 %v663
    %2850 = vmatprep.subr.mxu0 %v672
    %2851 = vmatpush1.msra.mxu0 %v671
    %2852 = vmatprep.subr.mxu0 %v680
    %2853 = vmatpush1.msra.mxu0 %v679
    %2854 = vmatprep.subr.mxu0 %v688
    %2855 = vmatpush1.msra.mxu0 %v687
    %2856 = vmatprep.subr.mxu0 %v696
    %2857 = vmatpush1.msra.mxu0 %v695
    %2858 = vmatprep.subr.mxu0 %v704
    %2859 = vmatpush1.msra.mxu0 %v703
    %2860 = vmatprep.subr.mxu0 %v712
    %2861 = vmatpush1.msra.mxu0 %v711
    %2862 = vmatprep.subr.mxu0 %v720
    %2863 = vmatpush1.msra.mxu0 %v719
    %2864 = vmatprep.subr.mxu0 %v728
    %2865 = vmatpush1.msra.mxu0 %v727
    %2866 = vmatprep.subr.mxu0 %v736
    %2867 = vmatpush1.msra.mxu0 %v735
    %2868 = vmatprep.subr.mxu0 %v744
    %2869 = vmatpush1.msra.mxu0 %v743
    %2870 = vmatprep.subr.mxu0 %v752
    %2871 = vmatpush1.msra.mxu0 %v751
    %2872 = vmatprep.subr.mxu0 %v760
    %2873 = vmatpush1.msra.mxu0 %v759
    %2874 = vmatprep.subr.mxu0 %v768
    %2875 = vmatpush1.msra.mxu0 %v767
    %2876 = vmatprep.subr.mxu0 %v776
    %2877 = vmatpush1.msra.mxu0 %v775
    %2878 = vmatprep.subr.mxu0 %v784
    %2879 = vmatpush1.msra.mxu0 %v783
    %2880 = vmatprep.subr.mxu0 %v792
    %2881 = vmatpush1.msra.mxu0 %v791
    %2882 = vmatprep.subr.mxu0 %v800
    %2883 = vmatpush1.msra.mxu0 %v799
    %2884 = vmatprep.subr.mxu0 %v808
    %2885 = vmatpush1.msra.mxu0 %v807
    %2886 = vmatprep.subr.mxu0 %v816
    %2887 = vmatpush1.msra.mxu0 %v815
    %2888 = vmatprep.subr.mxu0 %v824
    %2889 = vmatpush1.msra.mxu0 %v823
    %2890 = vmatprep.subr.mxu0 %v832
    %2891 = vmatpush1.msra.mxu0 %v831
    %2892 = vmatprep.subr.mxu0 %v840
    %2893 = vmatpush1.msra.mxu0 %v839
    %2894 = vmatprep.subr.mxu0 %v848
    %2895 = vmatpush1.msra.mxu0 %v847
    %2896 = vmatprep.subr.mxu0 %v856
    %2897 = vmatpush1.msra.mxu0 %v855
    %2898 = vmatprep.subr.mxu0 %v864
    %2899 = vmatpush1.msra.mxu0 %v863
    %2900 = vmatprep.subr.mxu0 %v872
    %2901 = vmatpush1.msra.mxu0 %v871
    %2902 = vmatprep.subr.mxu0 %v880
    %2903 = vmatpush1.msra.mxu0 %v879
    %2904 = vmatprep.subr.mxu0 %v888
    %2905 = vmatpush1.msra.mxu0 %v887
    %2906 = vmatprep.subr.mxu0 %v896
    %2907 = vmatpush1.msra.mxu0 %v895
    %2908 = vmatprep.subr.mxu0 %v904
    %2909 = vmatpush1.msra.mxu0 %v903
    %2910 = vmatprep.subr.mxu0 %v912
    %2911 = vmatpush1.msra.mxu0 %v911
    %2912 = vmatprep.mubr.f32.mxu0 %v2689
    %2913 = vmatmul.mubr.f32.gmra.mrb[0].mxu0 %v2688
    %v2914 = vpop.f32.mrb[0].mxu0
    %v2915 = vadd.f32 0.0, %v2914
    %v2916 = vpop.f32.mrb[0].mxu0
    %v2917 = vadd.f32 0.0, %v2916
    %2918 = vdwg.mxu0
    %2919 = vmatprep.subr.mxu0 %v666
    %2920 = vmatpush1.msra.mxu0 %v665
    %2921 = vmatprep.subr.mxu0 %v674
    %2922 = vmatpush1.msra.mxu0 %v673
    %2923 = vmatprep.subr.mxu0 %v682
    %2924 = vmatpush1.msra.mxu0 %v681
    %2925 = vmatprep.subr.mxu0 %v690
    %2926 = vmatpush1.msra.mxu0 %v689
    %2927 = vmatprep.subr.mxu0 %v698
    %2928 = vmatpush1.msra.mxu0 %v697
    %2929 = vmatprep.subr.mxu0 %v706
    %2930 = vmatpush1.msra.mxu0 %v705
    %2931 = vmatprep.subr.mxu0 %v714
    %2932 = vmatpush1.msra.mxu0 %v713
    %2933 = vmatprep.subr.mxu0 %v722
    %2934 = vmatpush1.msra.mxu0 %v721
    %2935 = vmatprep.subr.mxu0 %v730
    %2936 = vmatpush1.msra.mxu0 %v729
    %2937 = vmatprep.subr.mxu0 %v738
    %2938 = vmatpush1.msra.mxu0 %v737
    %2939 = vmatprep.subr.mxu0 %v746
    %2940 = vmatpush1.msra.mxu0 %v745
    %2941 = vmatprep.subr.mxu0 %v754
    %2942 = vmatpush1.msra.mxu0 %v753
    %2943 = vmatprep.subr.mxu0 %v762
    %2944 = vmatpush1.msra.mxu0 %v761
    %2945 = vmatprep.subr.mxu0 %v770
    %2946 = vmatpush1.msra.mxu0 %v769
    %2947 = vmatprep.subr.mxu0 %v778
    %2948 = vmatpush1.msra.mxu0 %v777
    %2949 = vmatprep.subr.mxu0 %v786
    %2950 = vmatpush1.msra.mxu0 %v785
    %2951 = vmatprep.subr.mxu0 %v794
    %2952 = vmatpush1.msra.mxu0 %v793
    %2953 = vmatprep.subr.mxu0 %v802
    %2954 = vmatpush1.msra.mxu0 %v801
    %2955 = vmatprep.subr.mxu0 %v810
    %2956 = vmatpush1.msra.mxu0 %v809
    %2957 = vmatprep.subr.mxu0 %v818
    %2958 = vmatpush1.msra.mxu0 %v817
    %2959 = vmatprep.subr.mxu0 %v826
    %2960 = vmatpush1.msra.mxu0 %v825
    %2961 = vmatprep.subr.mxu0 %v834
    %2962 = vmatpush1.msra.mxu0 %v833
    %2963 = vmatprep.subr.mxu0 %v842
    %2964 = vmatpush1.msra.mxu0 %v841
    %2965 = vmatprep.subr.mxu0 %v850
    %2966 = vmatpush1.msra.mxu0 %v849
    %2967 = vmatprep.subr.mxu0 %v858
    %2968 = vmatpush1.msra.mxu0 %v857
    %2969 = vmatprep.subr.mxu0 %v866
    %2970 = vmatpush1.msra.mxu0 %v865
    %2971 = vmatprep.subr.mxu0 %v874
    %2972 = vmatpush1.msra.mxu0 %v873
    %2973 = vmatprep.subr.mxu0 %v882
    %2974 = vmatpush1.msra.mxu0 %v881
    %2975 = vmatprep.subr.mxu0 %v890
    %2976 = vmatpush1.msra.mxu0 %v889
    %2977 = vmatprep.subr.mxu0 %v898
    %2978 = vmatpush1.msra.mxu0 %v897
    %2979 = vmatprep.subr.mxu0 %v906
    %2980 = vmatpush1.msra.mxu0 %v905
    %2981 = vmatprep.subr.mxu0 %v914
    %2982 = vmatpush1.msra.mxu0 %v913
    %2983 = vmatprep.mubr.f32.mxu0 %v2689
    %2984 = vmatmul.mubr.f32.gmra.mrb[0].mxu0 %v2688
    %v2985 = vpop.f32.mrb[0].mxu0
    %v2986 = vadd.f32 0.0, %v2985
    %v2987 = vpop.f32.mrb[0].mxu0
    %v2988 = vadd.f32 0.0, %v2987
    %2989 = vdwg.mxu0
    %v2990 = vadd.f32 %v2698, %v2773
    %v2991 = vadd.f32 %v2699, %v2775
    %v2992 = vadd.f32 %v2700, %v2844
    %v2993 = vadd.f32 %v2701, %v2846
    %v2994 = vadd.f32 %v2702, %v2915
    %v2995 = vadd.f32 %v2703, %v2917
    %v2996 = vadd.f32 %v2704, %v2986
    %v2997 = vadd.f32 %v2705, %v2988
    %v2998 = vxor.u32 %v2990, 2147483648
    %v2999 = vxor.u32 %v2991, 2147483648
    %v3000 = vmul.f32 %v2998, 1.442695
    %v3001 = vpow.pop %v3000
    %v3002 = vmul.f32 %v2999, 1.442695
    %v3003 = vpow.pop %v3002
    %v3004 = vadd.f32 %v3001, 1.0
    %v3005 = vadd.f32 %v3003, 1.0
    %v3006 = vrcp.pop %v3004
    %v3007 = vmul.f32 1.0, %v3006
    %v3008 = vrcp.pop %v3005
    %v3009 = vmul.f32 1.0, %v3008
    %v3010 = vxor.u32 %v2992, 2147483648
    %v3011 = vxor.u32 %v2993, 2147483648
    %v3012 = vmul.f32 %v3010, 1.442695
    %v3013 = vpow.pop %v3012
    %v3014 = vmul.f32 %v3011, 1.442695
    %v3015 = vpow.pop %v3014
    %v3016 = vadd.f32 %v3013, 1.0
    %v3017 = vadd.f32 %v3015, 1.0
    %v3018 = vrcp.pop %v3016
    %v3019 = vmul.f32 1.0, %v3018
    %v3020 = vrcp.pop %v3017
    %v3021 = vmul.f32 1.0, %v3020
    %v3022 = vtanh.pop %v2994
    %v3023 = vtanh.pop %v2995
    %v3024 = vxor.u32 %v2996, 2147483648
    %v3025 = vxor.u32 %v2997, 2147483648
    %v3026 = vmul.f32 %v3024, 1.442695
    %v3027 = vpow.pop %v3026
    %v3028 = vmul.f32 %v3025, 1.442695
    %v3029 = vpow.pop %v3028
    %v3030 = vadd.f32 %v3027, 1.0
    %v3031 = vadd.f32 %v3029, 1.0
    %v3032 = vrcp.pop %v3030
    %v3033 = vmul.f32 1.0, %v3032
    %v3034 = vrcp.pop %v3031
    %v3035 = vmul.f32 1.0, %v3034
    %v3036 = vmul.f32 %v3019, %v2684
    %v3037 = vmul.f32 %v3021, %v2685
    %v3038 = vmul.f32 %v3007, %v3022
    %v3039 = vmul.f32 %v3009, %v3023
    %v3040 = vadd.f32 %v3036, %v3038
    %v3041 = vadd.f32 %v3037, %v3039
    %v3042 = vtanh.pop %v3040
    %v3043 = vtanh.pop %v3041
    %v3044 = vmul.f32 %v3033, %v3042
    %v3045 = vmul.f32 %v3035, %v3043
    %s3046 = smul.u32 5, 2
    %s3047 = smul.addr %s3046, 8
    %s3048 = scalar_lea.vmem [#allocation3], %s3047
    %3049 = vst [vmem:[%s3048] sm:$0xff] %v3044
    %3050 = vst [vmem:[%s3048 + $0x8] sm:$0xff] %v3045
    %s3051 = smul.u32 6, 8
    %s3052 = smul.addr %s3051, 8
    %s3053 = scalar_lea.vmem [#allocation2], %s3052
    %v3054 = vld [vmem:[%s3053] sm:$0xff]
    %v3055 = vld [vmem:[%s3053 + $0x8] sm:$0xff]
    %v3056 = vld [vmem:[%s3053 + $0x10] sm:$0xff]
    %v3057 = vld [vmem:[%s3053 + $0x18] sm:$0xff]
    %v3058 = vld [vmem:[%s3053 + $0x20] sm:$0xff]
    %v3059 = vld [vmem:[%s3053 + $0x28] sm:$0xff]
    %v3060 = vld [vmem:[%s3053 + $0x30] sm:$0xff]
    %v3061 = vld [vmem:[%s3053 + $0x38] sm:$0xff]
    %3062 = vmatprep.subr.mxu0 %v660
    %3063 = vmatpush1.msra.mxu0 %v659
    %3064 = vmatprep.subr.mxu0 %v668
    %3065 = vmatpush1.msra.mxu0 %v667
    %3066 = vmatprep.subr.mxu0 %v676
    %3067 = vmatpush1.msra.mxu0 %v675
    %3068 = vmatprep.subr.mxu0 %v684
    %3069 = vmatpush1.msra.mxu0 %v683
    %3070 = vmatprep.subr.mxu0 %v692
    %3071 = vmatpush1.msra.mxu0 %v691
    %3072 = vmatprep.subr.mxu0 %v700
    %3073 = vmatpush1.msra.mxu0 %v699
    %3074 = vmatprep.subr.mxu0 %v708
    %3075 = vmatpush1.msra.mxu0 %v707
    %3076 = vmatprep.subr.mxu0 %v716
    %3077 = vmatpush1.msra.mxu0 %v715
    %3078 = vmatprep.subr.mxu0 %v724
    %3079 = vmatpush1.msra.mxu0 %v723
    %3080 = vmatprep.subr.mxu0 %v732
    %3081 = vmatpush1.msra.mxu0 %v731
    %3082 = vmatprep.subr.mxu0 %v740
    %3083 = vmatpush1.msra.mxu0 %v739
    %3084 = vmatprep.subr.mxu0 %v748
    %3085 = vmatpush1.msra.mxu0 %v747
    %3086 = vmatprep.subr.mxu0 %v756
    %3087 = vmatpush1.msra.mxu0 %v755
    %3088 = vmatprep.subr.mxu0 %v764
    %3089 = vmatpush1.msra.mxu0 %v763
    %3090 = vmatprep.subr.mxu0 %v772
    %3091 = vmatpush1.msra.mxu0 %v771
    %3092 = vmatprep.subr.mxu0 %v780
    %3093 = vmatpush1.msra.mxu0 %v779
    %3094 = vmatprep.subr.mxu0 %v788
    %3095 = vmatpush1.msra.mxu0 %v787
    %3096 = vmatprep.subr.mxu0 %v796
    %3097 = vmatpush1.msra.mxu0 %v795
    %3098 = vmatprep.subr.mxu0 %v804
    %3099 = vmatpush1.msra.mxu0 %v803
    %3100 = vmatprep.subr.mxu0 %v812
    %3101 = vmatpush1.msra.mxu0 %v811
    %3102 = vmatprep.subr.mxu0 %v820
    %3103 = vmatpush1.msra.mxu0 %v819
    %3104 = vmatprep.subr.mxu0 %v828
    %3105 = vmatpush1.msra.mxu0 %v827
    %3106 = vmatprep.subr.mxu0 %v836
    %3107 = vmatpush1.msra.mxu0 %v835
    %3108 = vmatprep.subr.mxu0 %v844
    %3109 = vmatpush1.msra.mxu0 %v843
    %3110 = vmatprep.subr.mxu0 %v852
    %3111 = vmatpush1.msra.mxu0 %v851
    %3112 = vmatprep.subr.mxu0 %v860
    %3113 = vmatpush1.msra.mxu0 %v859
    %3114 = vmatprep.subr.mxu0 %v868
    %3115 = vmatpush1.msra.mxu0 %v867
    %3116 = vmatprep.subr.mxu0 %v876
    %3117 = vmatpush1.msra.mxu0 %v875
    %3118 = vmatprep.subr.mxu0 %v884
    %3119 = vmatpush1.msra.mxu0 %v883
    %3120 = vmatprep.subr.mxu0 %v892
    %3121 = vmatpush1.msra.mxu0 %v891
    %3122 = vmatprep.subr.mxu0 %v900
    %3123 = vmatpush1.msra.mxu0 %v899
    %3124 = vmatprep.subr.mxu0 %v908
    %3125 = vmatpush1.msra.mxu0 %v907
    %3126 = vmatprep.mubr.f32.mxu0 %v3045
    %3127 = vmatmul.mubr.f32.gmra.mrb[0].mxu0 %v3044
    %v3128 = vpop.f32.mrb[0].mxu0
    %v3129 = vadd.f32 0.0, %v3128
    %v3130 = vpop.f32.mrb[0].mxu0
    %v3131 = vadd.f32 0.0, %v3130
    %3132 = vdwg.mxu0
    %3133 = vmatprep.subr.mxu0 %v662
    %3134 = vmatpush1.msra.mxu0 %v661
    %3135 = vmatprep.subr.mxu0 %v670
    %3136 = vmatpush1.msra.mxu0 %v669
    %3137 = vmatprep.subr.mxu0 %v678
    %3138 = vmatpush1.msra.mxu0 %v677
    %3139 = vmatprep.subr.mxu0 %v686
    %3140 = vmatpush1.msra.mxu0 %v685
    %3141 = vmatprep.subr.mxu0 %v694
    %3142 = vmatpush1.msra.mxu0 %v693
    %3143 = vmatprep.subr.mxu0 %v702
    %3144 = vmatpush1.msra.mxu0 %v701
    %3145 = vmatprep.subr.mxu0 %v710
    %3146 = vmatpush1.msra.mxu0 %v709
    %3147 = vmatprep.subr.mxu0 %v718
    %3148 = vmatpush1.msra.mxu0 %v717
    %3149 = vmatprep.subr.mxu0 %v726
    %3150 = vmatpush1.msra.mxu0 %v725
    %3151 = vmatprep.subr.mxu0 %v734
    %3152 = vmatpush1.msra.mxu0 %v733
    %3153 = vmatprep.subr.mxu0 %v742
    %3154 = vmatpush1.msra.mxu0 %v741
    %3155 = vmatprep.subr.mxu0 %v750
    %3156 = vmatpush1.msra.mxu0 %v749
    %3157 = vmatprep.subr.mxu0 %v758
    %3158 = vmatpush1.msra.mxu0 %v757
    %3159 = vmatprep.subr.mxu0 %v766
    %3160 = vmatpush1.msra.mxu0 %v765
    %3161 = vmatprep.subr.mxu0 %v774
    %3162 = vmatpush1.msra.mxu0 %v773
    %3163 = vmatprep.subr.mxu0 %v782
    %3164 = vmatpush1.msra.mxu0 %v781
    %3165 = vmatprep.subr.mxu0 %v790
    %3166 = vmatpush1.msra.mxu0 %v789
    %3167 = vmatprep.subr.mxu0 %v798
    %3168 = vmatpush1.msra.mxu0 %v797
    %3169 = vmatprep.subr.mxu0 %v806
    %3170 = vmatpush1.msra.mxu0 %v805
    %3171 = vmatprep.subr.mxu0 %v814
    %3172 = vmatpush1.msra.mxu0 %v813
    %3173 = vmatprep.subr.mxu0 %v822
    %3174 = vmatpush1.msra.mxu0 %v821
    %3175 = vmatprep.subr.mxu0 %v830
    %3176 = vmatpush1.msra.mxu0 %v829
    %3177 = vmatprep.subr.mxu0 %v838
    %3178 = vmatpush1.msra.mxu0 %v837
    %3179 = vmatprep.subr.mxu0 %v846
    %3180 = vmatpush1.msra.mxu0 %v845
    %3181 = vmatprep.subr.mxu0 %v854
    %3182 = vmatpush1.msra.mxu0 %v853
    %3183 = vmatprep.subr.mxu0 %v862
    %3184 = vmatpush1.msra.mxu0 %v861
    %3185 = vmatprep.subr.mxu0 %v870
    %3186 = vmatpush1.msra.mxu0 %v869
    %3187 = vmatprep.subr.mxu0 %v878
    %3188 = vmatpush1.msra.mxu0 %v877
    %3189 = vmatprep.subr.mxu0 %v886
    %3190 = vmatpush1.msra.mxu0 %v885
    %3191 = vmatprep.subr.mxu0 %v894
    %3192 = vmatpush1.msra.mxu0 %v893
    %3193 = vmatprep.subr.mxu0 %v902
    %3194 = vmatpush1.msra.mxu0 %v901
    %3195 = vmatprep.subr.mxu0 %v910
    %3196 = vmatpush1.msra.mxu0 %v909
    %3197 = vmatprep.mubr.f32.mxu0 %v3045
    %3198 = vmatmul.mubr.f32.gmra.mrb[0].mxu0 %v3044
    %v3199 = vpop.f32.mrb[0].mxu0
    %v3200 = vadd.f32 0.0, %v3199
    %v3201 = vpop.f32.mrb[0].mxu0
    %v3202 = vadd.f32 0.0, %v3201
    %3203 = vdwg.mxu0
    %3204 = vmatprep.subr.mxu0 %v664
    %3205 = vmatpush1.msra.mxu0 %v663
    %3206 = vmatprep.subr.mxu0 %v672
    %3207 = vmatpush1.msra.mxu0 %v671
    %3208 = vmatprep.subr.mxu0 %v680
    %3209 = vmatpush1.msra.mxu0 %v679
    %3210 = vmatprep.subr.mxu0 %v688
    %3211 = vmatpush1.msra.mxu0 %v687
    %3212 = vmatprep.subr.mxu0 %v696
    %3213 = vmatpush1.msra.mxu0 %v695
    %3214 = vmatprep.subr.mxu0 %v704
    %3215 = vmatpush1.msra.mxu0 %v703
    %3216 = vmatprep.subr.mxu0 %v712
    %3217 = vmatpush1.msra.mxu0 %v711
    %3218 = vmatprep.subr.mxu0 %v720
    %3219 = vmatpush1.msra.mxu0 %v719
    %3220 = vmatprep.subr.mxu0 %v728
    %3221 = vmatpush1.msra.mxu0 %v727
    %3222 = vmatprep.subr.mxu0 %v736
    %3223 = vmatpush1.msra.mxu0 %v735
    %3224 = vmatprep.subr.mxu0 %v744
    %3225 = vmatpush1.msra.mxu0 %v743
    %3226 = vmatprep.subr.mxu0 %v752
    %3227 = vmatpush1.msra.mxu0 %v751
    %3228 = vmatprep.subr.mxu0 %v760
    %3229 = vmatpush1.msra.mxu0 %v759
    %3230 = vmatprep.subr.mxu0 %v768
    %3231 = vmatpush1.msra.mxu0 %v767
    %3232 = vmatprep.subr.mxu0 %v776
    %3233 = vmatpush1.msra.mxu0 %v775
    %3234 = vmatprep.subr.mxu0 %v784
    %3235 = vmatpush1.msra.mxu0 %v783
    %3236 = vmatprep.subr.mxu0 %v792
    %3237 = vmatpush1.msra.mxu0 %v791
    %3238 = vmatprep.subr.mxu0 %v800
    %3239 = vmatpush1.msra.mxu0 %v799
    %3240 = vmatprep.subr.mxu0 %v808
    %3241 = vmatpush1.msra.mxu0 %v807
    %3242 = vmatprep.subr.mxu0 %v816
    %3243 = vmatpush1.msra.mxu0 %v815
    %3244 = vmatprep.subr.mxu0 %v824
    %3245 = vmatpush1.msra.mxu0 %v823
    %3246 = vmatprep.subr.mxu0 %v832
    %3247 = vmatpush1.msra.mxu0 %v831
    %3248 = vmatprep.subr.mxu0 %v840
    %3249 = vmatpush1.msra.mxu0 %v839
    %3250 = vmatprep.subr.mxu0 %v848
    %3251 = vmatpush1.msra.mxu0 %v847
    %3252 = vmatprep.subr.mxu0 %v856
    %3253 = vmatpush1.msra.mxu0 %v855
    %3254 = vmatprep.subr.mxu0 %v864
    %3255 = vmatpush1.msra.mxu0 %v863
    %3256 = vmatprep.subr.mxu0 %v872
    %3257 = vmatpush1.msra.mxu0 %v871
    %3258 = vmatprep.subr.mxu0 %v880
    %3259 = vmatpush1.msra.mxu0 %v879
    %3260 = vmatprep.subr.mxu0 %v888
    %3261 = vmatpush1.msra.mxu0 %v887
    %3262 = vmatprep.subr.mxu0 %v896
    %3263 = vmatpush1.msra.mxu0 %v895
    %3264 = vmatprep.subr.mxu0 %v904
    %3265 = vmatpush1.msra.mxu0 %v903
    %3266 = vmatprep.subr.mxu0 %v912
    %3267 = vmatpush1.msra.mxu0 %v911
    %3268 = vmatprep.mubr.f32.mxu0 %v3045
    %3269 = vmatmul.mubr.f32.gmra.mrb[0].mxu0 %v3044
    %v3270 = vpop.f32.mrb[0].mxu0
    %v3271 = vadd.f32 0.0, %v3270
    %v3272 = vpop.f32.mrb[0].mxu0
    %v3273 = vadd.f32 0.0, %v3272
    %3274 = vdwg.mxu0
    %3275 = vmatprep.subr.mxu0 %v666
    %3276 = vmatpush1.msra.mxu0 %v665
    %3277 = vmatprep.subr.mxu0 %v674
    %3278 = vmatpush1.msra.mxu0 %v673
    %3279 = vmatprep.subr.mxu0 %v682
    %3280 = vmatpush1.msra.mxu0 %v681
    %3281 = vmatprep.subr.mxu0 %v690
    %3282 = vmatpush1.msra.mxu0 %v689
    %3283 = vmatprep.subr.mxu0 %v698
    %3284 = vmatpush1.msra.mxu0 %v697
    %3285 = vmatprep.subr.mxu0 %v706
    %3286 = vmatpush1.msra.mxu0 %v705
    %3287 = vmatprep.subr.mxu0 %v714
    %3288 = vmatpush1.msra.mxu0 %v713
    %3289 = vmatprep.subr.mxu0 %v722
    %3290 = vmatpush1.msra.mxu0 %v721
    %3291 = vmatprep.subr.mxu0 %v730
    %3292 = vmatpush1.msra.mxu0 %v729
    %3293 = vmatprep.subr.mxu0 %v738
    %3294 = vmatpush1.msra.mxu0 %v737
    %3295 = vmatprep.subr.mxu0 %v746
    %3296 = vmatpush1.msra.mxu0 %v745
    %3297 = vmatprep.subr.mxu0 %v754
    %3298 = vmatpush1.msra.mxu0 %v753
    %3299 = vmatprep.subr.mxu0 %v762
    %3300 = vmatpush1.msra.mxu0 %v761
    %3301 = vmatprep.subr.mxu0 %v770
    %3302 = vmatpush1.msra.mxu0 %v769
    %3303 = vmatprep.subr.mxu0 %v778
    %3304 = vmatpush1.msra.mxu0 %v777
    %3305 = vmatprep.subr.mxu0 %v786
    %3306 = vmatpush1.msra.mxu0 %v785
    %3307 = vmatprep.subr.mxu0 %v794
    %3308 = vmatpush1.msra.mxu0 %v793
    %3309 = vmatprep.subr.mxu0 %v802
    %3310 = vmatpush1.msra.mxu0 %v801
    %3311 = vmatprep.subr.mxu0 %v810
    %3312 = vmatpush1.msra.mxu0 %v809
    %3313 = vmatprep.subr.mxu0 %v818
    %3314 = vmatpush1.msra.mxu0 %v817
    %3315 = vmatprep.subr.mxu0 %v826
    %3316 = vmatpush1.msra.mxu0 %v825
    %3317 = vmatprep.subr.mxu0 %v834
    %3318 = vmatpush1.msra.mxu0 %v833
    %3319 = vmatprep.subr.mxu0 %v842
    %3320 = vmatpush1.msra.mxu0 %v841
    %3321 = vmatprep.subr.mxu0 %v850
    %3322 = vmatpush1.msra.mxu0 %v849
    %3323 = vmatprep.subr.mxu0 %v858
    %3324 = vmatpush1.msra.mxu0 %v857
    %3325 = vmatprep.subr.mxu0 %v866
    %3326 = vmatpush1.msra.mxu0 %v865
    %3327 = vmatprep.subr.mxu0 %v874
    %3328 = vmatpush1.msra.mxu0 %v873
    %3329 = vmatprep.subr.mxu0 %v882
    %3330 = vmatpush1.msra.mxu0 %v881
    %3331 = vmatprep.subr.mxu0 %v890
    %3332 = vmatpush1.msra.mxu0 %v889
    %3333 = vmatprep.subr.mxu0 %v898
    %3334 = vmatpush1.msra.mxu0 %v897
    %3335 = vmatprep.subr.mxu0 %v906
    %3336 = vmatpush1.msra.mxu0 %v905
    %3337 = vmatprep.subr.mxu0 %v914
    %3338 = vmatpush1.msra.mxu0 %v913
    %3339 = vmatprep.mubr.f32.mxu0 %v3045
    %3340 = vmatmul.mubr.f32.gmra.mrb[0].mxu0 %v3044
    %v3341 = vpop.f32.mrb[0].mxu0
    %v3342 = vadd.f32 0.0, %v3341
    %v3343 = vpop.f32.mrb[0].mxu0
    %v3344 = vadd.f32 0.0, %v3343
    %3345 = vdwg.mxu0
    %v3346 = vadd.f32 %v3054, %v3129
    %v3347 = vadd.f32 %v3055, %v3131
    %v3348 = vadd.f32 %v3056, %v3200
    %v3349 = vadd.f32 %v3057, %v3202
    %v3350 = vadd.f32 %v3058, %v3271
    %v3351 = vadd.f32 %v3059, %v3273
    %v3352 = vadd.f32 %v3060, %v3342
    %v3353 = vadd.f32 %v3061, %v3344
    %v3354 = vxor.u32 %v3346, 2147483648
    %v3355 = vxor.u32 %v3347, 2147483648
    %v3356 = vmul.f32 %v3354, 1.442695
    %v3357 = vpow.pop %v3356
    %v3358 = vmul.f32 %v3355, 1.442695
    %v3359 = vpow.pop %v3358
    %v3360 = vadd.f32 %v3357, 1.0
    %v3361 = vadd.f32 %v3359, 1.0
    %v3362 = vrcp.pop %v3360
    %v3363 = vmul.f32 1.0, %v3362
    %v3364 = vrcp.pop %v3361
    %v3365 = vmul.f32 1.0, %v3364
    %v3366 = vxor.u32 %v3348, 2147483648
    %v3367 = vxor.u32 %v3349, 2147483648
    %v3368 = vmul.f32 %v3366, 1.442695
    %v3369 = vpow.pop %v3368
    %v3370 = vmul.f32 %v3367, 1.442695
    %v3371 = vpow.pop %v3370
    %v3372 = vadd.f32 %v3369, 1.0
    %v3373 = vadd.f32 %v3371, 1.0
    %v3374 = vrcp.pop %v3372
    %v3375 = vmul.f32 1.0, %v3374
    %v3376 = vrcp.pop %v3373
    %v3377 = vmul.f32 1.0, %v3376
    %v3378 = vtanh.pop %v3350
    %v3379 = vtanh.pop %v3351
    %v3380 = vxor.u32 %v3352, 2147483648
    %v3381 = vxor.u32 %v3353, 2147483648
    %v3382 = vmul.f32 %v3380, 1.442695
    %v3383 = vpow.pop %v3382
    %v3384 = vmul.f32 %v3381, 1.442695
    %v3385 = vpow.pop %v3384
    %v3386 = vadd.f32 %v3383, 1.0
    %v3387 = vadd.f32 %v3385, 1.0
    %v3388 = vrcp.pop %v3386
    %v3389 = vmul.f32 1.0, %v3388
    %v3390 = vrcp.pop %v3387
    %v3391 = vmul.f32 1.0, %v3390
    %v3392 = vmul.f32 %v3375, %v3040
    %v3393 = vmul.f32 %v3377, %v3041
    %v3394 = vmul.f32 %v3363, %v3378
    %v3395 = vmul.f32 %v3365, %v3379
    %v3396 = vadd.f32 %v3392, %v3394
    %v3397 = vadd.f32 %v3393, %v3395
    %v3398 = vtanh.pop %v3396
    %v3399 = vtanh.pop %v3397
    %v3400 = vmul.f32 %v3389, %v3398
    %v3401 = vmul.f32 %v3391, %v3399
    %s3402 = smul.u32 6, 2
    %s3403 = smul.addr %s3402, 8
    %s3404 = scalar_lea.vmem [#allocation3], %s3403
    %3405 = vst [vmem:[%s3404] sm:$0xff] %v3400
    %3406 = vst [vmem:[%s3404 + $0x8] sm:$0xff] %v3401
    %s3407 = smul.u32 7, 8
    %s3408 = smul.addr %s3407, 8
    %s3409 = scalar_lea.vmem [#allocation2], %s3408
    %v3410 = vld [vmem:[%s3409] sm:$0xff]
    %v3411 = vld [vmem:[%s3409 + $0x8] sm:$0xff]
    %v3412 = vld [vmem:[%s3409 + $0x10] sm:$0xff]
    %v3413 = vld [vmem:[%s3409 + $0x18] sm:$0xff]
    %v3414 = vld [vmem:[%s3409 + $0x20] sm:$0xff]
    %v3415 = vld [vmem:[%s3409 + $0x28] sm:$0xff]
    %v3416 = vld [vmem:[%s3409 + $0x30] sm:$0xff]
    %v3417 = vld [vmem:[%s3409 + $0x38] sm:$0xff]
    %3418 = vmatprep.subr.mxu0 %v660
    %3419 = vmatpush1.msra.mxu0 %v659
    %3420 = vmatprep.subr.mxu0 %v668
    %3421 = vmatpush1.msra.mxu0 %v667
    %3422 = vmatprep.subr.mxu0 %v676
    %3423 = vmatpush1.msra.mxu0 %v675
    %3424 = vmatprep.subr.mxu0 %v684
    %3425 = vmatpush1.msra.mxu0 %v683
    %3426 = vmatprep.subr.mxu0 %v692
    %3427 = vmatpush1.msra.mxu0 %v691
    %3428 = vmatprep.subr.mxu0 %v700
    %3429 = vmatpush1.msra.mxu0 %v699
    %3430 = vmatprep.subr.mxu0 %v708
    %3431 = vmatpush1.msra.mxu0 %v707
    %3432 = vmatprep.subr.mxu0 %v716
    %3433 = vmatpush1.msra.mxu0 %v715
    %3434 = vmatprep.subr.mxu0 %v724
    %3435 = vmatpush1.msra.mxu0 %v723
    %3436 = vmatprep.subr.mxu0 %v732
    %3437 = vmatpush1.msra.mxu0 %v731
    %3438 = vmatprep.subr.mxu0 %v740
    %3439 = vmatpush1.msra.mxu0 %v739
    %3440 = vmatprep.subr.mxu0 %v748
    %3441 = vmatpush1.msra.mxu0 %v747
    %3442 = vmatprep.subr.mxu0 %v756
    %3443 = vmatpush1.msra.mxu0 %v755
    %3444 = vmatprep.subr.mxu0 %v764
    %3445 = vmatpush1.msra.mxu0 %v763
    %3446 = vmatprep.subr.mxu0 %v772
    %3447 = vmatpush1.msra.mxu0 %v771
    %3448 = vmatprep.subr.mxu0 %v780
    %3449 = vmatpush1.msra.mxu0 %v779
    %3450 = vmatprep.subr.mxu0 %v788
    %3451 = vmatpush1.msra.mxu0 %v787
    %3452 = vmatprep.subr.mxu0 %v796
    %3453 = vmatpush1.msra.mxu0 %v795
    %3454 = vmatprep.subr.mxu0 %v804
    %3455 = vmatpush1.msra.mxu0 %v803
    %3456 = vmatprep.subr.mxu0 %v812
    %3457 = vmatpush1.msra.mxu0 %v811
    %3458 = vmatprep.subr.mxu0 %v820
    %3459 = vmatpush1.msra.mxu0 %v819
    %3460 = vmatprep.subr.mxu0 %v828
    %3461 = vmatpush1.msra.mxu0 %v827
    %3462 = vmatprep.subr.mxu0 %v836
    %3463 = vmatpush1.msra.mxu0 %v835
    %3464 = vmatprep.subr.mxu0 %v844
    %3465 = vmatpush1.msra.mxu0 %v843
    %3466 = vmatprep.subr.mxu0 %v852
    %3467 = vmatpush1.msra.mxu0 %v851
    %3468 = vmatprep.subr.mxu0 %v860
    %3469 = vmatpush1.msra.mxu0 %v859
    %3470 = vmatprep.subr.mxu0 %v868
    %3471 = vmatpush1.msra.mxu0 %v867
    %3472 = vmatprep.subr.mxu0 %v876
    %3473 = vmatpush1.msra.mxu0 %v875
    %3474 = vmatprep.subr.mxu0 %v884
    %3475 = vmatpush1.msra.mxu0 %v883
    %3476 = vmatprep.subr.mxu0 %v892
    %3477 = vmatpush1.msra.mxu0 %v891
    %3478 = vmatprep.subr.mxu0 %v900
    %3479 = vmatpush1.msra.mxu0 %v899
    %3480 = vmatprep.subr.mxu0 %v908
    %3481 = vmatpush1.msra.mxu0 %v907
    %3482 = vmatprep.mubr.f32.mxu0 %v3401
    %3483 = vmatmul.mubr.f32.gmra.mrb[0].mxu0 %v3400
    %v3484 = vpop.f32.mrb[0].mxu0
    %v3485 = vadd.f32 0.0, %v3484
    %v3486 = vpop.f32.mrb[0].mxu0
    %v3487 = vadd.f32 0.0, %v3486
    %3488 = vdwg.mxu0
    %3489 = vmatprep.subr.mxu0 %v662
    %3490 = vmatpush1.msra.mxu0 %v661
    %3491 = vmatprep.subr.mxu0 %v670
    %3492 = vmatpush1.msra.mxu0 %v669
    %3493 = vmatprep.subr.mxu0 %v678
    %3494 = vmatpush1.msra.mxu0 %v677
    %3495 = vmatprep.subr.mxu0 %v686
    %3496 = vmatpush1.msra.mxu0 %v685
    %3497 = vmatprep.subr.mxu0 %v694
    %3498 = vmatpush1.msra.mxu0 %v693
    %3499 = vmatprep.subr.mxu0 %v702
    %3500 = vmatpush1.msra.mxu0 %v701
    %3501 = vmatprep.subr.mxu0 %v710
    %3502 = vmatpush1.msra.mxu0 %v709
    %3503 = vmatprep.subr.mxu0 %v718
    %3504 = vmatpush1.msra.mxu0 %v717
    %3505 = vmatprep.subr.mxu0 %v726
    %3506 = vmatpush1.msra.mxu0 %v725
    %3507 = vmatprep.subr.mxu0 %v734
    %3508 = vmatpush1.msra.mxu0 %v733
    %3509 = vmatprep.subr.mxu0 %v742
    %3510 = vmatpush1.msra.mxu0 %v741
    %3511 = vmatprep.subr.mxu0 %v750
    %3512 = vmatpush1.msra.mxu0 %v749
    %3513 = vmatprep.subr.mxu0 %v758
    %3514 = vmatpush1.msra.mxu0 %v757
    %3515 = vmatprep.subr.mxu0 %v766
    %3516 = vmatpush1.msra.mxu0 %v765
    %3517 = vmatprep.subr.mxu0 %v774
    %3518 = vmatpush1.msra.mxu0 %v773
    %3519 = vmatprep.subr.mxu0 %v782
    %3520 = vmatpush1.msra.mxu0 %v781
    %3521 = vmatprep.subr.mxu0 %v790
    %3522 = vmatpush1.msra.mxu0 %v789
    %3523 = vmatprep.subr.mxu0 %v798
    %3524 = vmatpush1.msra.mxu0 %v797
    %3525 = vmatprep.subr.mxu0 %v806
    %3526 = vmatpush1.msra.mxu0 %v805
    %3527 = vmatprep.subr.mxu0 %v814
    %3528 = vmatpush1.msra.mxu0 %v813
    %3529 = vmatprep.subr.mxu0 %v822
    %3530 = vmatpush1.msra.mxu0 %v821
    %3531 = vmatprep.subr.mxu0 %v830
    %3532 = vmatpush1.msra.mxu0 %v829
    %3533 = vmatprep.subr.mxu0 %v838
    %3534 = vmatpush1.msra.mxu0 %v837
    %3535 = vmatprep.subr.mxu0 %v846
    %3536 = vmatpush1.msra.mxu0 %v845
    %3537 = vmatprep.subr.mxu0 %v854
    %3538 = vmatpush1.msra.mxu0 %v853
    %3539 = vmatprep.subr.mxu0 %v862
    %3540 = vmatpush1.msra.mxu0 %v861
    %3541 = vmatprep.subr.mxu0 %v870
    %3542 = vmatpush1.msra.mxu0 %v869
    %3543 = vmatprep.subr.mxu0 %v878
    %3544 = vmatpush1.msra.mxu0 %v877
    %3545 = vmatprep.subr.mxu0 %v886
    %3546 = vmatpush1.msra.mxu0 %v885
    %3547 = vmatprep.subr.mxu0 %v894
    %3548 = vmatpush1.msra.mxu0 %v893
    %3549 = vmatprep.subr.mxu0 %v902
    %3550 = vmatpush1.msra.mxu0 %v901
    %3551 = vmatprep.subr.mxu0 %v910
    %3552 = vmatpush1.msra.mxu0 %v909
    %3553 = vmatprep.mubr.f32.mxu0 %v3401
    %3554 = vmatmul.mubr.f32.gmra.mrb[0].mxu0 %v3400
    %v3555 = vpop.f32.mrb[0].mxu0
    %v3556 = vadd.f32 0.0, %v3555
    %v3557 = vpop.f32.mrb[0].mxu0
    %v3558 = vadd.f32 0.0, %v3557
    %3559 = vdwg.mxu0
    %3560 = vmatprep.subr.mxu0 %v664
    %3561 = vmatpush1.msra.mxu0 %v663
    %3562 = vmatprep.subr.mxu0 %v672
    %3563 = vmatpush1.msra.mxu0 %v671
    %3564 = vmatprep.subr.mxu0 %v680
    %3565 = vmatpush1.msra.mxu0 %v679
    %3566 = vmatprep.subr.mxu0 %v688
    %3567 = vmatpush1.msra.mxu0 %v687
    %3568 = vmatprep.subr.mxu0 %v696
    %3569 = vmatpush1.msra.mxu0 %v695
    %3570 = vmatprep.subr.mxu0 %v704
    %3571 = vmatpush1.msra.mxu0 %v703
    %3572 = vmatprep.subr.mxu0 %v712
    %3573 = vmatpush1.msra.mxu0 %v711
    %3574 = vmatprep.subr.mxu0 %v720
    %3575 = vmatpush1.msra.mxu0 %v719
    %3576 = vmatprep.subr.mxu0 %v728
    %3577 = vmatpush1.msra.mxu0 %v727
    %3578 = vmatprep.subr.mxu0 %v736
    %3579 = vmatpush1.msra.mxu0 %v735
    %3580 = vmatprep.subr.mxu0 %v744
    %3581 = vmatpush1.msra.mxu0 %v743
    %3582 = vmatprep.subr.mxu0 %v752
    %3583 = vmatpush1.msra.mxu0 %v751
    %3584 = vmatprep.subr.mxu0 %v760
    %3585 = vmatpush1.msra.mxu0 %v759
    %3586 = vmatprep.subr.mxu0 %v768
    %3587 = vmatpush1.msra.mxu0 %v767
    %3588 = vmatprep.subr.mxu0 %v776
    %3589 = vmatpush1.msra.mxu0 %v775
    %3590 = vmatprep.subr.mxu0 %v784
    %3591 = vmatpush1.msra.mxu0 %v783
    %3592 = vmatprep.subr.mxu0 %v792
    %3593 = vmatpush1.msra.mxu0 %v791
    %3594 = vmatprep.subr.mxu0 %v800
    %3595 = vmatpush1.msra.mxu0 %v799
    %3596 = vmatprep.subr.mxu0 %v808
    %3597 = vmatpush1.msra.mxu0 %v807
    %3598 = vmatprep.subr.mxu0 %v816
    %3599 = vmatpush1.msra.mxu0 %v815
    %3600 = vmatprep.subr.mxu0 %v824
    %3601 = vmatpush1.msra.mxu0 %v823
    %3602 = vmatprep.subr.mxu0 %v832
    %3603 = vmatpush1.msra.mxu0 %v831
    %3604 = vmatprep.subr.mxu0 %v840
    %3605 = vmatpush1.msra.mxu0 %v839
    %3606 = vmatprep.subr.mxu0 %v848
    %3607 = vmatpush1.msra.mxu0 %v847
    %3608 = vmatprep.subr.mxu0 %v856
    %3609 = vmatpush1.msra.mxu0 %v855
    %3610 = vmatprep.subr.mxu0 %v864
    %3611 = vmatpush1.msra.mxu0 %v863
    %3612 = vmatprep.subr.mxu0 %v872
    %3613 = vmatpush1.msra.mxu0 %v871
    %3614 = vmatprep.subr.mxu0 %v880
    %3615 = vmatpush1.msra.mxu0 %v879
    %3616 = vmatprep.subr.mxu0 %v888
    %3617 = vmatpush1.msra.mxu0 %v887
    %3618 = vmatprep.subr.mxu0 %v896
    %3619 = vmatpush1.msra.mxu0 %v895
    %3620 = vmatprep.subr.mxu0 %v904
    %3621 = vmatpush1.msra.mxu0 %v903
    %3622 = vmatprep.subr.mxu0 %v912
    %3623 = vmatpush1.msra.mxu0 %v911
    %3624 = vmatprep.mubr.f32.mxu0 %v3401
    %3625 = vmatmul.mubr.f32.gmra.mrb[0].mxu0 %v3400
    %v3626 = vpop.f32.mrb[0].mxu0
    %v3627 = vadd.f32 0.0, %v3626
    %v3628 = vpop.f32.mrb[0].mxu0
    %v3629 = vadd.f32 0.0, %v3628
    %3630 = vdwg.mxu0
    %3631 = vmatprep.subr.mxu0 %v666
    %3632 = vmatpush1.msra.mxu0 %v665
    %3633 = vmatprep.subr.mxu0 %v674
    %3634 = vmatpush1.msra.mxu0 %v673
    %3635 = vmatprep.subr.mxu0 %v682
    %3636 = vmatpush1.msra.mxu0 %v681
    %3637 = vmatprep.subr.mxu0 %v690
    %3638 = vmatpush1.msra.mxu0 %v689
    %3639 = vmatprep.subr.mxu0 %v698
    %3640 = vmatpush1.msra.mxu0 %v697
    %3641 = vmatprep.subr.mxu0 %v706
    %3642 = vmatpush1.msra.mxu0 %v705
    %3643 = vmatprep.subr.mxu0 %v714
    %3644 = vmatpush1.msra.mxu0 %v713
    %3645 = vmatprep.subr.mxu0 %v722
    %3646 = vmatpush1.msra.mxu0 %v721
    %3647 = vmatprep.subr.mxu0 %v730
    %3648 = vmatpush1.msra.mxu0 %v729
    %3649 = vmatprep.subr.mxu0 %v738
    %3650 = vmatpush1.msra.mxu0 %v737
    %3651 = vmatprep.subr.mxu0 %v746
    %3652 = vmatpush1.msra.mxu0 %v745
    %3653 = vmatprep.subr.mxu0 %v754
    %3654 = vmatpush1.msra.mxu0 %v753
    %3655 = vmatprep.subr.mxu0 %v762
    %3656 = vmatpush1.msra.mxu0 %v761
    %3657 = vmatprep.subr.mxu0 %v770
    %3658 = vmatpush1.msra.mxu0 %v769
    %3659 = vmatprep.subr.mxu0 %v778
    %3660 = vmatpush1.msra.mxu0 %v777
    %3661 = vmatprep.subr.mxu0 %v786
    %3662 = vmatpush1.msra.mxu0 %v785
    %3663 = vmatprep.subr.mxu0 %v794
    %3664 = vmatpush1.msra.mxu0 %v793
    %3665 = vmatprep.subr.mxu0 %v802
    %3666 = vmatpush1.msra.mxu0 %v801
    %3667 = vmatprep.subr.mxu0 %v810
    %3668 = vmatpush1.msra.mxu0 %v809
    %3669 = vmatprep.subr.mxu0 %v818
    %3670 = vmatpush1.msra.mxu0 %v817
    %3671 = vmatprep.subr.mxu0 %v826
    %3672 = vmatpush1.msra.mxu0 %v825
    %3673 = vmatprep.subr.mxu0 %v834
    %3674 = vmatpush1.msra.mxu0 %v833
    %3675 = vmatprep.subr.mxu0 %v842
    %3676 = vmatpush1.msra.mxu0 %v841
    %3677 = vmatprep.subr.mxu0 %v850
    %3678 = vmatpush1.msra.mxu0 %v849
    %3679 = vmatprep.subr.mxu0 %v858
    %3680 = vmatpush1.msra.mxu0 %v857
    %3681 = vmatprep.subr.mxu0 %v866
    %3682 = vmatpush1.msra.mxu0 %v865
    %3683 = vmatprep.subr.mxu0 %v874
    %3684 = vmatpush1.msra.mxu0 %v873
    %3685 = vmatprep.subr.mxu0 %v882
    %3686 = vmatpush1.msra.mxu0 %v881
    %3687 = vmatprep.subr.mxu0 %v890
    %3688 = vmatpush1.msra.mxu0 %v889
    %3689 = vmatprep.subr.mxu0 %v898
    %3690 = vmatpush1.msra.mxu0 %v897
    %3691 = vmatprep.subr.mxu0 %v906
    %3692 = vmatpush1.msra.mxu0 %v905
    %3693 = vmatprep.subr.mxu0 %v914
    %3694 = vmatpush1.msra.mxu0 %v913
    %3695 = vmatprep.mubr.f32.mxu0 %v3401
    %3696 = vmatmul.mubr.f32.gmra.mrb[0].mxu0 %v3400
    %v3697 = vpop.f32.mrb[0].mxu0
    %v3698 = vadd.f32 0.0, %v3697
    %v3699 = vpop.f32.mrb[0].mxu0
    %v3700 = vadd.f32 0.0, %v3699
    %3701 = vdwg.mxu0
    %v3702 = vadd.f32 %v3410, %v3485
    %v3703 = vadd.f32 %v3411, %v3487
    %v3704 = vadd.f32 %v3412, %v3556
    %v3705 = vadd.f32 %v3413, %v3558
    %v3706 = vadd.f32 %v3414, %v3627
    %v3707 = vadd.f32 %v3415, %v3629
    %v3708 = vadd.f32 %v3416, %v3698
    %v3709 = vadd.f32 %v3417, %v3700
    %v3710 = vxor.u32 %v3702, 2147483648
    %v3711 = vxor.u32 %v3703, 2147483648
    %v3712 = vmul.f32 %v3710, 1.442695
    %v3713 = vpow.pop %v3712
    %v3714 = vmul.f32 %v3711, 1.442695
    %v3715 = vpow.pop %v3714
    %v3716 = vadd.f32 %v3713, 1.0
    %v3717 = vadd.f32 %v3715, 1.0
    %v3718 = vrcp.pop %v3716
    %v3719 = vmul.f32 1.0, %v3718
    %v3720 = vrcp.pop %v3717
    %v3721 = vmul.f32 1.0, %v3720
    %v3722 = vxor.u32 %v3704, 2147483648
    %v3723 = vxor.u32 %v3705, 2147483648
    %v3724 = vmul.f32 %v3722, 1.442695
    %v3725 = vpow.pop %v3724
    %v3726 = vmul.f32 %v3723, 1.442695
    %v3727 = vpow.pop %v3726
    %v3728 = vadd.f32 %v3725, 1.0
    %v3729 = vadd.f32 %v3727, 1.0
    %v3730 = vrcp.pop %v3728
    %v3731 = vmul.f32 1.0, %v3730
    %v3732 = vrcp.pop %v3729
    %v3733 = vmul.f32 1.0, %v3732
    %v3734 = vtanh.pop %v3706
    %v3735 = vtanh.pop %v3707
    %v3736 = vxor.u32 %v3708, 2147483648
    %v3737 = vxor.u32 %v3709, 2147483648
    %v3738 = vmul.f32 %v3736, 1.442695
    %v3739 = vpow.pop %v3738
    %v3740 = vmul.f32 %v3737, 1.442695
    %v3741 = vpow.pop %v3740
    %v3742 = vadd.f32 %v3739, 1.0
    %v3743 = vadd.f32 %v3741, 1.0
    %v3744 = vrcp.pop %v3742
    %v3745 = vmul.f32 1.0, %v3744
    %v3746 = vrcp.pop %v3743
    %v3747 = vmul.f32 1.0, %v3746
    %v3748 = vmul.f32 %v3731, %v3396
    %v3749 = vmul.f32 %v3733, %v3397
    %v3750 = vmul.f32 %v3719, %v3734
    %v3751 = vmul.f32 %v3721, %v3735
    %v3752 = vadd.f32 %v3748, %v3750
    %v3753 = vadd.f32 %v3749, %v3751
    %v3754 = vtanh.pop %v3752
    %v3755 = vtanh.pop %v3753
    %v3756 = vmul.f32 %v3745, %v3754
    %v3757 = vmul.f32 %v3747, %v3755
    %s3758 = smul.u32 7, 2
    %s3759 = smul.addr %s3758, 8
    %s3760 = scalar_lea.vmem [#allocation3], %s3759
    %3761 = vst [vmem:[%s3760] sm:$0xff] %v3756
    %3762 = vst [vmem:[%s3760 + $0x8] sm:$0xff] %v3757
    %3763 = vst [vmem:[%s7] sm:$0xff] %v3756
    %3764 = vst [vmem:[%s7 + $0x8] sm:$0xff] %v3757
    %v3765 = vld [vmem:[#allocation3] sm:$0xff]
    %v3766 = vld [vmem:[#allocation3 + $0x8] sm:$0xff]
    %v3767 = vld [vmem:[#allocation3 + $0x10] sm:$0xff]
    %v3768 = vld [vmem:[#allocation3 + $0x18] sm:$0xff]
    %v3769 = vld [vmem:[#allocation3 + $0x20] sm:$0xff]
    %v3770 = vld [vmem:[#allocation3 + $0x28] sm:$0xff]
    %v3771 = vld [vmem:[#allocation3 + $0x30] sm:$0xff]
    %v3772 = vld [vmem:[#allocation3 + $0x38] sm:$0xff]
    %v3773 = vld [vmem:[#allocation3 + $0x40] sm:$0xff]
    %v3774 = vld [vmem:[#allocation3 + $0x48] sm:$0xff]
    %v3775 = vld [vmem:[#allocation3 + $0x50] sm:$0xff]
    %v3776 = vld [vmem:[#allocation3 + $0x58] sm:$0xff]
    %v3777 = vld [vmem:[#allocation3 + $0x60] sm:$0xff]
    %v3778 = vld [vmem:[#allocation3 + $0x68] sm:$0xff]
    %v3779 = vld [vmem:[#allocation3 + $0x70] sm:$0xff]
    %v3780 = vld [vmem:[#allocation3 + $0x78] sm:$0xff]
    %v3781 = vld [vmem:[%s4] sm:$0xff]
    %v3782 = vld [vmem:[%s4 + $0x8] sm:$0xff]
    %v3783 = vld [vmem:[%s4 + $0x10] sm:$0xff]
    %v3784 = vld [vmem:[%s4 + $0x18] sm:$0xff]
    %v3785 = vld [vmem:[%s4 + $0x20] sm:$0xff]
    %v3786 = vld [vmem:[%s4 + $0x28] sm:$0xff]
    %v3787 = vld [vmem:[%s4 + $0x30] sm:$0xff]
    %v3788 = vld [vmem:[%s4 + $0x38] sm:$0xff]
    %v3789 = vld [vmem:[%s4 + $0x40] sm:$0xff]
    %v3790 = vld [vmem:[%s4 + $0x48] sm:$0xff]
    %v3791 = vld [vmem:[%s4 + $0x50] sm:$0xff]
    %v3792 = vld [vmem:[%s4 + $0x58] sm:$0xff]
    %v3793 = vld [vmem:[%s4 + $0x60] sm:$0xff]
    %v3794 = vld [vmem:[%s4 + $0x68] sm:$0xff]
    %v3795 = vld [vmem:[%s4 + $0x70] sm:$0xff]
    %v3796 = vld [vmem:[%s4 + $0x78] sm:$0xff]
    %v3797 = vld [vmem:[%s4 + $0x80] sm:$0xff]
    %v3798 = vld [vmem:[%s4 + $0x88] sm:$0xff]
    %v3799 = vld [vmem:[%s4 + $0x90] sm:$0xff]
    %v3800 = vld [vmem:[%s4 + $0x98] sm:$0xff]
    %v3801 = vld [vmem:[%s4 + $0xa0] sm:$0xff]
    %v3802 = vld [vmem:[%s4 + $0xa8] sm:$0xff]
    %v3803 = vld [vmem:[%s4 + $0xb0] sm:$0xff]
    %v3804 = vld [vmem:[%s4 + $0xb8] sm:$0xff]
    %v3805 = vld [vmem:[%s4 + $0xc0] sm:$0xff]
    %v3806 = vld [vmem:[%s4 + $0xc8] sm:$0xff]
    %v3807 = vld [vmem:[%s4 + $0xd0] sm:$0xff]
    %v3808 = vld [vmem:[%s4 + $0xd8] sm:$0xff]
    %v3809 = vld [vmem:[%s4 + $0xe0] sm:$0xff]
    %v3810 = vld [vmem:[%s4 + $0xe8] sm:$0xff]
    %v3811 = vld [vmem:[%s4 + $0xf0] sm:$0xff]
    %v3812 = vld [vmem:[%s4 + $0xf8] sm:$0xff]
    %v3813 = vld [vmem:[%s5] sm:$0x1]
    %v3815 = vlaneseq
    %v3816 = vshrl.u32 %v3815, 7
    %v3817 = vsub.s32 0, %v3816
    %v3818 = vrot.slane %v3813, %v3817
    %3820 = vmatprep.subr.mxu0 0.0
    %3821 = vmatpush1.msra.mxu0 %v3781
    %3822 = vmatprep.subr.mxu0 0.0
    %3823 = vmatpush1.msra.mxu0 %v3782
    %3824 = vmatprep.subr.mxu0 0.0
    %3825 = vmatpush1.msra.mxu0 %v3783
    %3826 = vmatprep.subr.mxu0 0.0
    %3827 = vmatpush1.msra.mxu0 %v3784
    %3828 = vmatprep.subr.mxu0 0.0
    %3829 = vmatpush1.msra.mxu0 %v3785
    %3830 = vmatprep.subr.mxu0 0.0
    %3831 = vmatpush1.msra.mxu0 %v3786
    %3832 = vmatprep.subr.mxu0 0.0
    %3833 = vmatpush1.msra.mxu0 %v3787
    %3834 = vmatprep.subr.mxu0 0.0
    %3835 = vmatpush1.msra.mxu0 %v3788
    %3836 = vmatprep.subr.mxu0 0.0
    %3837 = vmatpush1.msra.mxu0 %v3789
    %3838 = vmatprep.subr.mxu0 0.0
    %3839 = vmatpush1.msra.mxu0 %v3790
    %3840 = vmatprep.subr.mxu0 0.0
    %3841 = vmatpush1.msra.mxu0 %v3791
    %3842 = vmatprep.subr.mxu0 0.0
    %3843 = vmatpush1.msra.mxu0 %v3792
    %3844 = vmatprep.subr.mxu0 0.0
    %3845 = vmatpush1.msra.mxu0 %v3793
    %3846 = vmatprep.subr.mxu0 0.0
    %3847 = vmatpush1.msra.mxu0 %v3794
    %3848 = vmatprep.subr.mxu0 0.0
    %3849 = vmatpush1.msra.mxu0 %v3795
    %3850 = vmatprep.subr.mxu0 0.0
    %3851 = vmatpush1.msra.mxu0 %v3796
    %3852 = vmatprep.subr.mxu0 0.0
    %3853 = vmatpush1.msra.mxu0 %v3797
    %3854 = vmatprep.subr.mxu0 0.0
    %3855 = vmatpush1.msra.mxu0 %v3798
    %3856 = vmatprep.subr.mxu0 0.0
    %3857 = vmatpush1.msra.mxu0 %v3799
    %3858 = vmatprep.subr.mxu0 0.0
    %3859 = vmatpush1.msra.mxu0 %v3800
    %3860 = vmatprep.subr.mxu0 0.0
    %3861 = vmatpush1.msra.mxu0 %v3801
    %3862 = vmatprep.subr.mxu0 0.0
    %3863 = vmatpush1.msra.mxu0 %v3802
    %3864 = vmatprep.subr.mxu0 0.0
    %3865 = vmatpush1.msra.mxu0 %v3803
    %3866 = vmatprep.subr.mxu0 0.0
    %3867 = vmatpush1.msra.mxu0 %v3804
    %3868 = vmatprep.subr.mxu0 0.0
    %3869 = vmatpush1.msra.mxu0 %v3805
    %3870 = vmatprep.subr.mxu0 0.0
    %3871 = vmatpush1.msra.mxu0 %v3806
    %3872 = vmatprep.subr.mxu0 0.0
    %3873 = vmatpush1.msra.mxu0 %v3807
    %3874 = vmatprep.subr.mxu0 0.0
    %3875 = vmatpush1.msra.mxu0 %v3808
    %3876 = vmatprep.subr.mxu0 0.0
    %3877 = vmatpush1.msra.mxu0 %v3809
    %3878 = vmatprep.subr.mxu0 0.0
    %3879 = vmatpush1.msra.mxu0 %v3810
    %3880 = vmatprep.subr.mxu0 0.0
    %3881 = vmatpush1.msra.mxu0 %v3811
    %3882 = vmatprep.subr.mxu0 0.0
    %3883 = vmatpush1.msra.mxu0 %v3812
    %3884 = vmatprep.mubr.f32.mxu0 %v3766
    %3885 = vmatmul.mubr.f32.gmra.mrb[0].mxu0 %v3765
    %v3886 = vpop.f32.mrb[0].mxu0
    %v3887 = vadd.f32 %v3818, %v3886
    %v3888 = vpop.f32.mrb[0].mxu0
    %3889 = vmatprep.mubr.f32.mxu0 %v3768
    %3890 = vmatmul.mubr.f32.gmra.mrb[0].mxu0 %v3767
    %v3891 = vpop.f32.mrb[0].mxu0
    %v3892 = vadd.f32 %v3818, %v3891
    %v3893 = vpop.f32.mrb[0].mxu0
    %3894 = vmatprep.mubr.f32.mxu0 %v3770
    %3895 = vmatmul.mubr.f32.gmra.mrb[0].mxu0 %v3769
    %v3896 = vpop.f32.mrb[0].mxu0
    %v3897 = vadd.f32 %v3818, %v3896
    %v3898 = vpop.f32.mrb[0].mxu0
    %3899 = vmatprep.mubr.f32.mxu0 %v3772
    %3900 = vmatmul.mubr.f32.gmra.mrb[0].mxu0 %v3771
    %v3901 = vpop.f32.mrb[0].mxu0
    %v3902 = vadd.f32 %v3818, %v3901
    %v3903 = vpop.f32.mrb[0].mxu0
    %3904 = vmatprep.mubr.f32.mxu0 %v3774
    %3905 = vmatmul.mubr.f32.gmra.mrb[0].mxu0 %v3773
    %v3906 = vpop.f32.mrb[0].mxu0
    %v3907 = vadd.f32 %v3818, %v3906
    %v3908 = vpop.f32.mrb[0].mxu0
    %3909 = vmatprep.mubr.f32.mxu0 %v3776
    %3910 = vmatmul.mubr.f32.gmra.mrb[0].mxu0 %v3775
    %v3911 = vpop.f32.mrb[0].mxu0
    %v3912 = vadd.f32 %v3818, %v3911
    %v3913 = vpop.f32.mrb[0].mxu0
    %3914 = vmatprep.mubr.f32.mxu0 %v3778
    %3915 = vmatmul.mubr.f32.gmra.mrb[0].mxu0 %v3777
    %v3916 = vpop.f32.mrb[0].mxu0
    %v3917 = vadd.f32 %v3818, %v3916
    %v3918 = vpop.f32.mrb[0].mxu0
    %3919 = vmatprep.mubr.f32.mxu0 %v3780
    %3920 = vmatmul.mubr.f32.gmra.mrb[0].mxu0 %v3779
    %v3921 = vpop.f32.mrb[0].mxu0
    %v3922 = vadd.f32 %v3818, %v3921
    %v3923 = vpop.f32.mrb[0].mxu0
    %3924 = vdwg.mxu0
    %3925 = vst [vmem:[%s6] sm:$0xff] %v3887
    %3926 = vst [vmem:[%s6 + $0x8] sm:$0xff] %v3892
    %3927 = vst [vmem:[%s6 + $0x10] sm:$0xff] %v3897
    %3928 = vst [vmem:[%s6 + $0x18] sm:$0xff] %v3902
    %3929 = vst [vmem:[%s6 + $0x20] sm:$0xff] %v3907
    %3930 = vst [vmem:[%s6 + $0x28] sm:$0xff] %v3912
    %3931 = vst [vmem:[%s6 + $0x30] sm:$0xff] %v3917
    %3932 = vst [vmem:[%s6 + $0x38] sm:$0xff] %v3922
    // Predicated region
    $region30: #{sequence_model_forward.1} parent=1 // pred_check
      _
    $region31: #{sequence_model_forward.1} parent=1 // pred_check_branch
      %3934 = sbr.rel (0) target = $region33
    $region32: #{sequence_model_forward.1} parent=1 // pred_region
      _
    $region33: #{sequence_model_forward.1} parent=1 // pred_fallthru
      _
    // Predicated region
    $region34: #{sequence_model_forward.1} parent=1 // pred_check
      _
    $region35: #{sequence_model_forward.1} parent=1 // pred_check_branch
      %3936 = sbr.rel (0) target = $region37
    $region36: #{sequence_model_forward.1} parent=1 // pred_region
      _
    $region37: #{sequence_model_forward.1} parent=1 // pred_fallthru
      _
    // Predicated region
    $region38: #{sequence_model_forward.1} parent=1 // pred_check
      _
    $region39: #{sequence_model_forward.1} parent=1 // pred_check_branch
      %3938 = sbr.rel (0) target = $region41
    $region40: #{sequence_model_forward.1} parent=1 // pred_region
      _
    $region41: #{sequence_model_forward.1} parent=1 // pred_fallthru
      _
    // Predicated region
    $region42: #{sequence_model_forward.1} parent=1 // pred_check
      _
    $region43: #{sequence_model_forward.1} parent=1 // pred_check_branch
      %3940 = sbr.rel (0) target = $region45
    $region44: #{sequence_model_forward.1} parent=1 // pred_region
      _
    $region45: #{sequence_model_forward.1} parent=1 // pred_fallthru
      _
    %3941 = vsyncpa [#allocation5], 1

</llo_original>
